<compile_context>
chip_gen: v7x
topology: tpu7x:2x2x1
jax: 0.10.0
libtpu: 0.0.40
codegen_flags: <defaults>
</compile_context>

<pallas_src>
import jax
import jax.numpy as jnp
from jax.experimental import pallas as pl
from jax.experimental.pallas import tpu as pltpu

LATENT_SIZE = 20
HIDDEN = 400
OUT = 784

# lane-aligned (multiple-of-128) padded feature dims
HIDDEN_PAD = 512
OUT_PAD = 896


def _round_up(x, m):
    return ((x + m - 1) // m) * m


def _generator_kernel(z_ref, w1_ref, b1_ref, w2_ref, b2_ref, out_ref):
    # fc1 + ReLU: bf16 MXU matmul, f32 accumulation, f32 VPU epilogue.
    z = z_ref[...].astype(jnp.bfloat16)
    h = jnp.dot(z, w1_ref[...], preferred_element_type=jnp.float32)
    h = jnp.maximum(h + b1_ref[...], 0.0)              # (TILE_B, 512) + (1, 512)
    # fc2 + Sigmoid (tanh form: one transcendental instead of exp + divide)
    logits = jnp.dot(h.astype(jnp.bfloat16), w2_ref[...],
                     preferred_element_type=jnp.float32)
    logits = logits + b2_ref[...]                      # (TILE_B, 896) + (1, 896)
    out_ref[...] = (0.5 * (1.0 + jnp.tanh(0.5 * logits))).astype(out_ref.dtype)


def _pick_tile_b(batch, tile_b=None):
    b_pad8 = _round_up(batch, 8)
    if tile_b is None:
        if b_pad8 >= 512:
            # >= 2 (roughly even) grid steps -> both v7x TCs used, DMAs pipelined;
            # multiple of 256 keeps the 256-wide MXU M dimension full on v6e/v7x.
            tile_b = min(1024, _round_up(pl.cdiv(b_pad8, 2), 256))
        else:
            tile_b = b_pad8
    return max(8, min(_round_up(tile_b, 8), b_pad8))


def _vmem_limit_bytes(tile_b):
    # double-buffered activation tiles + (double-buffered) resident weights + live
    # f32 intermediates; generous 2x headroom, clamped to [24 MiB, 48 MiB].
    z_bytes = 2 * tile_b * 128 * 4                      # latent tile, lane-padded f32
    out_bytes = 2 * tile_b * OUT_PAD * 2                # bf16 output tile
    w_bytes = 2 * (24 * HIDDEN_PAD * 2 + 8 * HIDDEN_PAD * 4
                   + HIDDEN_PAD * OUT_PAD * 2 + 8 * OUT_PAD * 4)
    interm = tile_b * HIDDEN_PAD * 4 + tile_b * OUT_PAD * 4
    est = z_bytes + out_bytes + w_bytes + interm
    return min(48 << 20, max(24 << 20, 2 * est))


def generator_forward(z, w1, b1, w2, b2, *, tile_b=None):
    """z: (B, LATENT_SIZE) f32.
    w1: (LATENT_SIZE, HIDDEN_PAD) bf16, b1: (1, HIDDEN_PAD) f32,
    w2: (HIDDEN_PAD, OUT_PAD)     bf16, b2: (1, OUT_PAD)     f32.

    Returns the PADDED (b_pad, OUT_PAD) bf16 output.  Slice [:B, :OUT] (and cast)
    at the point of use so the slice fuses into the consumer instead of adding an
    extra output-sized HBM round trip here.
    """
    B = z.shape[0]
    tile_b = _pick_tile_b(B, tile_b)
    b_pad = _round_up(B, tile_b)
    if b_pad != B:
        z = jnp.pad(z, ((0, b_pad - B), (0, 0)))
    nb = b_pad // tile_b

    cost = pl.CostEstimate(
        flops=2 * b_pad * (LATENT_SIZE * HIDDEN_PAD + HIDDEN_PAD * OUT_PAD),
        transcendentals=b_pad * OUT_PAD,                # one tanh per output element
        bytes_accessed=(z.size * 4 + w1.size * 2 + b1.size * 4
                        + w2.size * 2 + b2.size * 4 + b_pad * OUT_PAD * 2),
    )

    out = pl.pallas_call(
        _generator_kernel,
        out_shape=jax.ShapeDtypeStruct((b_pad, OUT_PAD), jnp.bfloat16),
        grid=(nb,),
        in_specs=[
            # batch-tiled activations (pipelined across the grid)
            pl.BlockSpec((tile_b, LATENT_SIZE), lambda i: (i, 0)),
            # weights/biases: constant index_map -> resident across grid steps
            pl.BlockSpec((LATENT_SIZE, HIDDEN_PAD), lambda i: (0, 0)),
            pl.BlockSpec((1, HIDDEN_PAD), lambda i: (0, 0)),
            pl.BlockSpec((HIDDEN_PAD, OUT_PAD), lambda i: (0, 0)),
            pl.BlockSpec((1, OUT_PAD), lambda i: (0, 0)),
        ],
        out_specs=pl.BlockSpec((tile_b, OUT_PAD), lambda i: (i, 0)),
        compiler_params=pltpu.CompilerParams(
            dimension_semantics=("parallel",),
            vmem_limit_bytes=_vmem_limit_bytes(tile_b),
        ),
        cost_estimate=cost,
    )(z, w1, b1, w2, b2)

    return out


def init_params(key):
    """PyTorch nn.Linear default init: U(-1/sqrt(fan_in), 1/sqrt(fan_in))."""
    k1, k2, k3, k4 = jax.random.split(key, 4)
    bound1 = 1.0 / jnp.sqrt(LATENT_SIZE)
    bound2 = 1.0 / jnp.sqrt(HIDDEN)
    # stored as [in, out] (transposed relative to PyTorch's [out, in])
    w1 = jax.random.uniform(k1, (LATENT_SIZE, HIDDEN), jnp.float32, -bound1, bound1)
    b1 = jax.random.uniform(k2, (HIDDEN,), jnp.float32, -bound1, bound1)
    w2 = jax.random.uniform(k3, (HIDDEN, OUT), jnp.float32, -bound2, bound2)
    b2 = jax.random.uniform(k4, (OUT,), jnp.float32, -bound2, bound2)
    return w1, b1, w2, b2


def pack_params(w1, b1, w2, b2):
    """Zero-pad to lane-aligned shapes; weights -> bf16, biases stay f32."""
    w1p = jnp.zeros((LATENT_SIZE, HIDDEN_PAD), jnp.float32).at[:, :HIDDEN].set(w1)
    b1p = jnp.zeros((1, HIDDEN_PAD), jnp.float32).at[0, :HIDDEN].set(b1)
    w2p = jnp.zeros((HIDDEN_PAD, OUT_PAD), jnp.float32).at[:HIDDEN, :OUT].set(w2)
    b2p = jnp.zeros((1, OUT_PAD), jnp.float32).at[0, :OUT].set(b2)
    return w1p.astype(jnp.bfloat16), b1p, w2p.astype(jnp.bfloat16), b2p


def reference_forward_exact(z, w1p, b1p, w2p, b2p):
    """Mirrors the kernel's compute (bf16 matmul inputs, f32 accumulation)."""
    zb = z.astype(jnp.bfloat16).astype(jnp.float32)
    h = jnp.maximum(zb @ w1p.astype(jnp.float32) + b1p, 0.0)
    hb = h.astype(jnp.bfloat16).astype(jnp.float32)
    return jax.nn.sigmoid(hb @ w2p.astype(jnp.float32) + b2p)[:, :OUT]


def reference_forward_f32(z, w1, b1, w2, b2):
    """Pure-f32 semantic reference (original module math)."""
    h = jnp.maximum(z @ w1 + b1[None, :], 0.0)
    return jax.nn.sigmoid(h @ w2 + b2[None, :])


if __name__ == "__main__":
    key = jax.random.PRNGKey(0)
    k_param, k_z = jax.random.split(key)
    w1, b1, w2, b2 = init_params(k_param)
    w1p, b1p, w2p, b2p = pack_params(w1, b1, w2, b2)

    batch = 512  # auto-pick -> tile_b=256, 2 grid steps (pipelined / 2-TC friendly)
    z = jax.random.normal(k_z, (batch, LATENT_SIZE), jnp.float32)

    out_pad = generator_forward(z, w1p, b1p, w2p, b2p)
    out_pad = jax.block_until_ready(out_pad)

    # slice off padding and cast at the point of use
    out = out_pad[:batch, :OUT].astype(jnp.float32)
    assert out.shape == (batch, OUT)

    # exact-ish check vs. a reference mirroring the kernel's bf16/f32 math
    # (extra slack covers the bf16 output rounding, ~2^-8 near 1.0)
    ref_exact = reference_forward_exact(z, w1p, b1p, w2p, b2p)
    assert jnp.allclose(out, ref_exact, atol=8e-3)

    # semantic check against the original pure-f32 module math
    ref_f32 = reference_forward_f32(z, w1, b1, w2, b2)
    assert jnp.allclose(out, ref_f32, atol=4e-2)

    print("KERNEL_OK")
</pallas_src>

<mosaic_0001>
module attributes {stable_mosaic.version = 11 : i64} {
  func.func @_generator_kernel(%arg0: i32, %arg1: memref<256x20xf32, #tpu.memory_space<vmem>>, %arg2: memref<20x512xbf16, #tpu.memory_space<vmem>>, %arg3: memref<1x512xf32, #tpu.memory_space<vmem>>, %arg4: memref<512x896xbf16, #tpu.memory_space<vmem>>, %arg5: memref<1x896xf32, #tpu.memory_space<vmem>>, %arg6: memref<256x896xbf16, #tpu.memory_space<vmem>>) attributes {dimension_semantics = [#tpu.dimension_semantics<parallel>], iteration_bounds = array<i64: 2>, scalar_prefetch = 0 : i64, scratch_operands = 0 : i64, tpu.core_type = #tpu.core_type<tc>, window_params = [{transform_indices = @transform_0, window_bounds = array<i64: 256, 20>}, {pipeline_mode = #tpu.pipeline_mode<synchronous>, transform_indices = @transform_1, window_bounds = array<i64: 20, 512>}, {pipeline_mode = #tpu.pipeline_mode<synchronous>, transform_indices = @transform_2, window_bounds = array<i64: 1, 512>}, {pipeline_mode = #tpu.pipeline_mode<synchronous>, transform_indices = @transform_3, window_bounds = array<i64: 512, 896>}, {pipeline_mode = #tpu.pipeline_mode<synchronous>, transform_indices = @transform_4, window_bounds = array<i64: 1, 896>}, {transform_indices = @transform_5, window_bounds = array<i64: 256, 896>}]} {
    %c0 = arith.constant 0 : index
    %c0_0 = arith.constant 0 : index
    %0 = vector.load %arg1[%c0, %c0_0] : memref<256x20xf32, #tpu.memory_space<vmem>>, vector<256x20xf32>
    %1 = arith.truncf %0 : vector<256x20xf32> to vector<256x20xbf16>
    %c0_1 = arith.constant 0 : index
    %c0_2 = arith.constant 0 : index
    %2 = vector.load %arg2[%c0_1, %c0_2] : memref<20x512xbf16, #tpu.memory_space<vmem>>, vector<20x512xbf16>
    %cst = arith.constant dense<0.000000e+00> : vector<256x512xf32>
    %3 = tpu.matmul %1, %2, %cst {dimension_numbers = #tpu.dot_dimension_numbers<[1], [0], [0], [1], [0, 0, 1, 1], [], []>} : vector<256x20xbf16>, vector<20x512xbf16>, vector<256x512xf32> -> vector<256x512xf32>
    %c0_3 = arith.constant 0 : index
    %c0_4 = arith.constant 0 : index
    %4 = vector.load %arg3[%c0_3, %c0_4] : memref<1x512xf32, #tpu.memory_space<vmem>>, vector<1x512xf32>
    %5 = vector.broadcast %4 : vector<1x512xf32> to vector<256x512xf32>
    %6 = arith.addf %3, %5 : vector<256x512xf32>
    %cst_5 = arith.constant 0.000000e+00 : f32
    %7 = vector.broadcast %cst_5 : f32 to vector<256x512xf32>
    %8 = arith.maximumf %6, %7 : vector<256x512xf32>
    %9 = arith.truncf %8 : vector<256x512xf32> to vector<256x512xbf16>
    %c0_6 = arith.constant 0 : index
    %c0_7 = arith.constant 0 : index
    %10 = vector.load %arg4[%c0_6, %c0_7] : memref<512x896xbf16, #tpu.memory_space<vmem>>, vector<512x896xbf16>
    %cst_8 = arith.constant dense<0.000000e+00> : vector<256x896xf32>
    %11 = tpu.matmul %9, %10, %cst_8 {dimension_numbers = #tpu.dot_dimension_numbers<[1], [0], [0], [1], [0, 0, 1, 1], [], []>} : vector<256x512xbf16>, vector<512x896xbf16>, vector<256x896xf32> -> vector<256x896xf32>
    %c0_9 = arith.constant 0 : index
    %c0_10 = arith.constant 0 : index
    %12 = vector.load %arg5[%c0_9, %c0_10] : memref<1x896xf32, #tpu.memory_space<vmem>>, vector<1x896xf32>
    %13 = vector.broadcast %12 : vector<1x896xf32> to vector<256x896xf32>
    %14 = arith.addf %11, %13 : vector<256x896xf32>
    %cst_11 = arith.constant 5.000000e-01 : f32
    %15 = vector.broadcast %cst_11 : f32 to vector<256x896xf32>
    %16 = arith.mulf %15, %14 : vector<256x896xf32>
    %17 = math.tanh %16 : vector<256x896xf32>
    %cst_12 = arith.constant 1.000000e+00 : f32
    %18 = vector.broadcast %cst_12 : f32 to vector<256x896xf32>
    %19 = arith.addf %18, %17 : vector<256x896xf32>
    %cst_13 = arith.constant 5.000000e-01 : f32
    %20 = vector.broadcast %cst_13 : f32 to vector<256x896xf32>
    %21 = arith.mulf %20, %19 : vector<256x896xf32>
    %22 = arith.truncf %21 : vector<256x896xf32> to vector<256x896xbf16>
    %c0_14 = arith.constant 0 : index
    %c0_15 = arith.constant 0 : index
    %23 = vector.load %arg6[%c0_14, %c0_15] : memref<256x896xbf16, #tpu.memory_space<vmem>>, vector<256x896xbf16>
    tpu.vector_store %arg6[%c0_14, %c0_15], %22 {strides = array<i32>} : memref<256x896xbf16, #tpu.memory_space<vmem>>, vector<256x896xbf16>,
    return
  }
  func.func @transform_0(%arg0: i32) -> (i32, i32) {
    %c0_i32 = arith.constant 0 : i32
    %c0_i32_0 = arith.constant 0 : i32
    return %arg0, %c0_i32 : i32, i32
  }
  func.func @transform_1(%arg0: i32) -> (i32, i32) {
    %c0_i32 = arith.constant 0 : i32
    %c0_i32_0 = arith.constant 0 : i32
    %c0_i32_1 = arith.constant 0 : i32
    return %c0_i32, %c0_i32_0 : i32, i32
  }
  func.func @transform_2(%arg0: i32) -> (i32, i32) {
    %c0_i32 = arith.constant 0 : i32
    %c0_i32_0 = arith.constant 0 : i32
    %c0_i32_1 = arith.constant 0 : i32
    return %c0_i32, %c0_i32_0 : i32, i32
  }
  func.func @transform_3(%arg0: i32) -> (i32, i32) {
    %c0_i32 = arith.constant 0 : i32
    %c0_i32_0 = arith.constant 0 : i32
    %c0_i32_1 = arith.constant 0 : i32
    return %c0_i32, %c0_i32_0 : i32, i32
  }
  func.func @transform_4(%arg0: i32) -> (i32, i32) {
    %c0_i32 = arith.constant 0 : i32
    %c0_i32_0 = arith.constant 0 : i32
    %c0_i32_1 = arith.constant 0 : i32
    return %c0_i32, %c0_i32_0 : i32, i32
  }
  func.func @transform_5(%arg0: i32) -> (i32, i32) {
    %c0_i32 = arith.constant 0 : i32
    %c0_i32_0 = arith.constant 0 : i32
    return %arg0, %c0_i32 : i32, i32
  }
}

</mosaic_0001>

<llo_original>
// kernel: tpu_custom_call.1
$region0: #{tpu_custom_call.1}
  #allocation0 [shape = 'u32[]', space=smem, size = 0x4, offset = 0x4, fixed_abs, tag = 'smem constant byte address 0x4 - core index']
  #allocation1 [shape = 'u32[144,128]{1,0:T(1,128)}', space=vmem, size = 0x12000, scoped, tag = 'internal scratch']
  %s0 = inlined_call_operand.vmem [shape: f32[512,20], index: 0, kind: input, shape index: {}]
  %s1 = inlined_call_operand.vmem [shape: bf16[20,512], index: 1, kind: input, shape index: {}]
  %s2 = inlined_call_operand.vmem [shape: f32[1,512], index: 2, kind: input, shape index: {}]
  %s3 = inlined_call_operand.hbm [shape: bf16[512,896], index: 3, kind: input, shape index: {}]
  %s4 = inlined_call_operand.vmem [shape: f32[1,896], index: 4, kind: input, shape index: {}]
  %s5 = inlined_call_operand.hbm [shape: bf16[512,896], index: 5, kind: output, shape index: {}]
  %s6 = sld [smem:[#allocation0]]
  $region57: #{tpu_custom_call.1} parent=0
    _
  %s8 = ssub.s32 1, %s6
  %s9 = scalar_select 0, %s8, %s6
  $region1: #{tpu_custom_call.1} parent=0
    #allocation2 [shape = 'u8[917504]{0}', space=vmem, size = 0xe0000, scoped, tag = 'input window, operand 3, single buffered']
    #allocation3 [shape = 's32[2]{0}', space=sflag, size = 0x8, scoped, tag = 'scoped memory for tpu_custom_call.1']
    #allocation4 [shape = 's32[2]{0}', space=sflag, size = 0x8, scoped, tag = 'scoped memory for tpu_custom_call.1']
    #allocation5 [shape = 'u8[917504]{0}', space=vmem, size = 0xe0000, scoped, tag = 'output window, operand 0']
    %10 = vsyncpa [#allocation3], 0
    %11 = vsyncpa [#allocation4], 0
    %s12 = scalar_lea.sflag [#allocation4], 1
    %13 = vsyncpa %s12, 0
    loop: start=0, step=1, limit=4
    $region2: #{tpu_custom_call.1} parent=1 // loop_pre_header
      _
    $region3: #{tpu_custom_call.1} parent=1 // loop_header
      %s15 = sphi 0, %s19
      %p16 = scmp.ge.s32.totalorder %s15, 4
      %s25 = sphi 0, %s27
      %s28 = sphi 0, %s25
      %s29 = sphi 0, %s28
      %s45 = sphi 0, %s29
      %s49 = sphi 0, %s49
      %s51 = sphi 0, %s49
      %s52 = sphi 0, %s51
      %s66 = sphi 0, %s52
      %s70 = sphi 0, %s70
      %s72 = sphi 0, %s70
      %s73 = sphi 0, %s72
      %s87 = sphi 0, %s73
      %s91 = sphi 0, %s91
      %s93 = sphi 0, %s91
      %s94 = sphi 0, %s93
      %s108 = sphi 0, %s94
      %s112 = sphi 0, %s112
      %s114 = sphi 0, %s112
      %s115 = sphi 0, %s114
      %s129 = sphi 0, %s115
      %s135 = sphi 0, %s137
      %s138 = sphi 0, %s135
      %s139 = sphi 0, %s138
      %s155 = sphi 0, %s139
    $region4: #{tpu_custom_call.1} parent=1 // loop_header_branch
      %18 = sbr.rel (%p16) target = $region8
    $region5: #{tpu_custom_call.1} parent=1 // loop_body
      %s20 = ssub.s32 %s15, 1
      %s21 = ssub.s32 %s15, 2
      %s22 = sadd.s32 %s15, 1
      %s23 = ssub.s32 %s15, %s22
      %p24 = scmp.eq.s32.totalorder %s23, 0
      %s26 = sadd.s32 %s25, 1
      %s27 = scalar_select %p24, %s25, %s26
      %p30 = pneg %p24
      %p31 = scmp.eq.s32.totalorder %s15, 1
      %p32 = por %p30, %p31
      %p33 = scmp.ne.s32.totalorder %s25, %s28
      %p34 = scmp.eq.s32.totalorder %s15, 0
      %p35 = por %p33, %p34
      %p36 = scmp.ne.s32.totalorder %s25, %s28
      %p37 = scmp.eq.s32.totalorder %s20, 1
      %p38 = por %p36, %p37
      %p39 = scmp.ne.s32.totalorder %s28, %s29
      %p40 = scmp.eq.s32.totalorder %s20, 0
      %p41 = por %p39, %p40
      %p42 = scmp.ne.s32.totalorder %s28, %s29
      %p43 = scmp.eq.s32.totalorder %s21, 1
      %p44 = por %p42, %p43
      %p46 = scmp.ne.s32.totalorder %s29, %s45
      %p47 = scmp.eq.s32.totalorder %s21, 0
      %p48 = por %p46, %p47
      %s50 = sadd.s32 %s49, 1
      %p53 = scmp.eq.s32.totalorder %s15, 1
      %p54 = scmp.ne.s32.totalorder %s49, %s51
      %p55 = scmp.eq.s32.totalorder %s15, 0
      %p56 = por %p54, %p55
      %p57 = scmp.ne.s32.totalorder %s49, %s51
      %p58 = scmp.eq.s32.totalorder %s20, 1
      %p59 = por %p57, %p58
      %p60 = scmp.ne.s32.totalorder %s51, %s52
      %p61 = scmp.eq.s32.totalorder %s20, 0
      %p62 = por %p60, %p61
      %p63 = scmp.ne.s32.totalorder %s51, %s52
      %p64 = scmp.eq.s32.totalorder %s21, 1
      %p65 = por %p63, %p64
      %p67 = scmp.ne.s32.totalorder %s52, %s66
      %p68 = scmp.eq.s32.totalorder %s21, 0
      %p69 = por %p67, %p68
      %s71 = sadd.s32 %s70, 1
      %p74 = scmp.eq.s32.totalorder %s15, 1
      %p75 = scmp.ne.s32.totalorder %s70, %s72
      %p76 = scmp.eq.s32.totalorder %s15, 0
      %p77 = por %p75, %p76
      %p78 = scmp.ne.s32.totalorder %s70, %s72
      %p79 = scmp.eq.s32.totalorder %s20, 1
      %p80 = por %p78, %p79
      %p81 = scmp.ne.s32.totalorder %s72, %s73
      %p82 = scmp.eq.s32.totalorder %s20, 0
      %p83 = por %p81, %p82
      %p84 = scmp.ne.s32.totalorder %s72, %s73
      %p85 = scmp.eq.s32.totalorder %s21, 1
      %p86 = por %p84, %p85
      %p88 = scmp.ne.s32.totalorder %s73, %s87
      %p89 = scmp.eq.s32.totalorder %s21, 0
      %p90 = por %p88, %p89
      %s92 = sadd.s32 %s91, 1
      %p95 = scmp.eq.s32.totalorder %s15, 1
      %p96 = scmp.ne.s32.totalorder %s91, %s93
      %p97 = scmp.eq.s32.totalorder %s15, 0
      %p98 = por %p96, %p97
      %p99 = scmp.ne.s32.totalorder %s91, %s93
      %p100 = scmp.eq.s32.totalorder %s20, 1
      %p101 = por %p99, %p100
      %p102 = scmp.ne.s32.totalorder %s93, %s94
      %p103 = scmp.eq.s32.totalorder %s20, 0
      %p104 = por %p102, %p103
      %p105 = scmp.ne.s32.totalorder %s93, %s94
      %p106 = scmp.eq.s32.totalorder %s21, 1
      %p107 = por %p105, %p106
      %p109 = scmp.ne.s32.totalorder %s94, %s108
      %p110 = scmp.eq.s32.totalorder %s21, 0
      %p111 = por %p109, %p110
      %s113 = sadd.s32 %s112, 1
      %p116 = scmp.eq.s32.totalorder %s15, 1
      %p117 = scmp.ne.s32.totalorder %s112, %s114
      %p118 = scmp.eq.s32.totalorder %s15, 0
      %p119 = por %p117, %p118
      %p120 = scmp.ne.s32.totalorder %s112, %s114
      %p121 = scmp.eq.s32.totalorder %s20, 1
      %p122 = por %p120, %p121
      %p123 = scmp.ne.s32.totalorder %s114, %s115
      %p124 = scmp.eq.s32.totalorder %s20, 0
      %p125 = por %p123, %p124
      %p126 = scmp.ne.s32.totalorder %s114, %s115
      %p127 = scmp.eq.s32.totalorder %s21, 1
      %p128 = por %p126, %p127
      %p130 = scmp.ne.s32.totalorder %s115, %s129
      %p131 = scmp.eq.s32.totalorder %s21, 0
      %p132 = por %p130, %p131
      %s133 = ssub.s32 %s15, %s22
      %p134 = scmp.eq.s32.totalorder %s133, 0
      %s136 = sadd.s32 %s135, 1
      %s137 = scalar_select %p134, %s135, %s136
      %p140 = pneg %p134
      %p141 = scmp.eq.s32.totalorder %s15, 1
      %p142 = por %p140, %p141
      %p143 = scmp.ne.s32.totalorder %s135, %s138
      %p144 = scmp.eq.s32.totalorder %s15, 0
      %p145 = por %p143, %p144
      %p146 = scmp.ne.s32.totalorder %s135, %s138
      %p147 = scmp.eq.s32.totalorder %s20, 1
      %p148 = por %p146, %p147
      %p149 = scmp.ne.s32.totalorder %s138, %s139
      %p150 = scmp.eq.s32.totalorder %s20, 0
      %p151 = por %p149, %p150
      %p152 = scmp.ne.s32.totalorder %s138, %s139
      %p153 = scmp.eq.s32.totalorder %s21, 1
      %p154 = por %p152, %p153
      %p156 = scmp.ne.s32.totalorder %s139, %s155
      %p157 = scmp.eq.s32.totalorder %s21, 0
      %p158 = por %p156, %p157
      %p159 = scmp.le.s32.totalorder 1, %s15
      %p160 = scmp.lt.s32.totalorder %s15, 3
      %p161 = pnand %p159, %p160
      %p162 = pneg %p161
      // Predicated region
      $region9: #{tpu_custom_call.1} parent=5 // pred_check
        _
      $region10: #{tpu_custom_call.1} parent=5 // pred_check_branch
        %164 = sbr.rel (%p161) target = $region12
      $region11: #{tpu_custom_call.1} parent=5 // pred_region
        %s165 = ssub.s32 %s15, 1
        // Predicated region
        $region13: #{tpu_custom_call.1} parent=11 // pred_check
          %p166 = pneg %p62
        $region14: #{tpu_custom_call.1} parent=11 // pred_check_branch
          %168 = sbr.rel (%p166) target = $region16
        $region15: #{tpu_custom_call.1} parent=11 // pred_region
          _
        $region16: #{tpu_custom_call.1} parent=11 // pred_fallthru
          _
        // Predicated region
        $region17: #{tpu_custom_call.1} parent=11 // pred_check
          %p169 = pneg %p83
        $region18: #{tpu_custom_call.1} parent=11 // pred_check_branch
          %171 = sbr.rel (%p169) target = $region20
        $region19: #{tpu_custom_call.1} parent=11 // pred_region
          _
        $region20: #{tpu_custom_call.1} parent=11 // pred_fallthru
          _
        // Predicated region
        $region21: #{tpu_custom_call.1} parent=11 // pred_check
          %p172 = pneg %p104
        $region22: #{tpu_custom_call.1} parent=11 // pred_check_branch
          %174 = sbr.rel (%p172) target = $region24
        $region23: #{tpu_custom_call.1} parent=11 // pred_region
          %s176 = ssub.s32 28672, 28672
          %177 = vsyncadd [#allocation3], %s176
          %s178 = sshll.u32 [#allocation2], 4
          %s179 = int_to_ptr.vmem [resolvable:$true] %s178
          %184 = dma.hbm_to_vmem [thread:$0]  %s3, 28672, %s179, [#allocation3], 448, 448, 28
        $region24: #{tpu_custom_call.1} parent=11 // pred_fallthru
          _
        // Predicated region
        $region25: #{tpu_custom_call.1} parent=11 // pred_check
          %p185 = pneg %p125
        $region26: #{tpu_custom_call.1} parent=11 // pred_check_branch
          %187 = sbr.rel (%p185) target = $region28
        $region27: #{tpu_custom_call.1} parent=11 // pred_region
          _
        $region28: #{tpu_custom_call.1} parent=11 // pred_fallthru
          _
      $region12: #{tpu_custom_call.1} parent=5 // pred_fallthru
        _
      %p188 = scmp.lt.s32.totalorder %s15, 2
      // Predicated region
      $region29: #{tpu_custom_call.1} parent=5 // pred_check
        %p189 = pneg %p188
      $region30: #{tpu_custom_call.1} parent=5 // pred_check_branch
        %191 = sbr.rel (%p189) target = $region32
      $region31: #{tpu_custom_call.1} parent=5 // pred_region
        // Predicated region
        $region33: #{tpu_custom_call.1} parent=31 // pred_check
          %p192 = pneg %p35
        $region34: #{tpu_custom_call.1} parent=31 // pred_check_branch
          %194 = sbr.rel (%p192) target = $region36
        $region35: #{tpu_custom_call.1} parent=31 // pred_region
          %s195 = smul.u32 32, %s15
          %p196 = scmp.lt.s32.totalorder %s195, 63
          %s197 = scalar_select %p196, %s195, 63
          %s198 = smul.addr %s197, 8
          %s199 = scalar_lea.vmem %s0, %s198
          %s200 = smul.u32 32, %s15
        $region36: #{tpu_custom_call.1} parent=31 // pred_fallthru
          _
      $region32: #{tpu_custom_call.1} parent=5 // pred_fallthru
        _
      %p201 = scmp.le.s32.totalorder 1, %s15
      %p202 = scmp.lt.s32.totalorder %s15, 3
      %p203 = pnand %p201, %p202
      %p204 = pneg %p203
      // Predicated region
      $region37: #{tpu_custom_call.1} parent=5 // pred_check
        _
      $region38: #{tpu_custom_call.1} parent=5 // pred_check_branch
        %206 = sbr.rel (%p203) target = $region40
      $region39: #{tpu_custom_call.1} parent=5 // pred_region
        %s207 = ssub.s32 %s15, 1
        // Predicated region
        $region41: #{tpu_custom_call.1} parent=39 // pred_check
          %p208 = pneg %p104
        $region42: #{tpu_custom_call.1} parent=39 // pred_check_branch
          %210 = sbr.rel (%p208) target = $region44
        $region43: #{tpu_custom_call.1} parent=39 // pred_region
          %211 = dma.done [#allocation3], 28672
        $region44: #{tpu_custom_call.1} parent=39 // pred_fallthru
          _
        %s212 = smul.u32 32, %s20
        %p213 = scmp.lt.s32.totalorder %s212, 63
        %s214 = scalar_select %p213, %s212, 63
        %s215 = smul.addr %s214, 8
        %s216 = scalar_lea.vmem %s0, %s215
        %p217 = pneg %p41
        %p218 = pneg %p38
        %p219 = pneg %p62
        %p220 = pneg %p59
        %p221 = pneg %p83
        %p222 = pneg %p80
        %p223 = pneg %p104
        %p224 = pneg %p101
        %p225 = pneg %p125
        %p226 = pneg %p122
        %p227 = pneg %p151
        %p228 = pneg %p148
        %s229 = sand.u32 %s138, 1
        %s230 = scalar_lea.sflag [#allocation4], %s229
        %s231 = sand.u32 %s138, 1
        %s232 = smul.addr %s231, 896
        %s233 = scalar_lea.vmem [#allocation5], %s232
        %s234 = smul.u32 32, %s20
        %p235 = scmp.lt.s32.totalorder %s234, 63
        %s236 = scalar_select %p235, %s234, 63
        %s237 = smul.addr %s236, 8
        %s238 = scalar_lea.vmem %s0, %s237
        %s239 = smul.u32 32, %s20
        %s240 = smul.u32 32, %s20
        %v242 = vld [vmem:[%s238] sm:$0xff]
        %v243 = vld [vmem:[%s238 + $0x8] sm:$0xff]
        %v244 = vld [vmem:[%s238 + $0x10] sm:$0xff]
        %v245 = vld [vmem:[%s238 + $0x18] sm:$0xff]
        %v246 = vld [vmem:[%s238 + $0x20] sm:$0xff]
        %v247 = vld [vmem:[%s238 + $0x28] sm:$0xff]
        %v248 = vld [vmem:[%s238 + $0x30] sm:$0xff]
        %v249 = vld [vmem:[%s238 + $0x38] sm:$0xff]
        %v250 = vld [vmem:[%s238 + $0x40] sm:$0xff]
        %v251 = vld [vmem:[%s238 + $0x48] sm:$0xff]
        %v252 = vld [vmem:[%s238 + $0x50] sm:$0xff]
        %v253 = vld [vmem:[%s238 + $0x58] sm:$0xff]
        %v254 = vld [vmem:[%s238 + $0x60] sm:$0xff]
        %v255 = vld [vmem:[%s238 + $0x68] sm:$0xff]
        %v256 = vld [vmem:[%s238 + $0x70] sm:$0xff]
        %v257 = vld [vmem:[%s238 + $0x78] sm:$0xff]
        %v258 = vld [vmem:[%s238 + $0x80] sm:$0xff]
        %v259 = vld [vmem:[%s238 + $0x88] sm:$0xff]
        %v260 = vld [vmem:[%s238 + $0x90] sm:$0xff]
        %v261 = vld [vmem:[%s238 + $0x98] sm:$0xff]
        %v262 = vld [vmem:[%s238 + $0xa0] sm:$0xff]
        %v263 = vld [vmem:[%s238 + $0xa8] sm:$0xff]
        %v264 = vld [vmem:[%s238 + $0xb0] sm:$0xff]
        %v265 = vld [vmem:[%s238 + $0xb8] sm:$0xff]
        %v266 = vld [vmem:[%s238 + $0xc0] sm:$0xff]
        %v267 = vld [vmem:[%s238 + $0xc8] sm:$0xff]
        %v268 = vld [vmem:[%s238 + $0xd0] sm:$0xff]
        %v269 = vld [vmem:[%s238 + $0xd8] sm:$0xff]
        %v270 = vld [vmem:[%s238 + $0xe0] sm:$0xff]
        %v271 = vld [vmem:[%s238 + $0xe8] sm:$0xff]
        %v272 = vld [vmem:[%s238 + $0xf0] sm:$0xff]
        %v273 = vld [vmem:[%s238 + $0xf8] sm:$0xff]
        %v274 = vpack.c.bf16 %v243, %v242
        %v275 = vpack.c.bf16 %v245, %v244
        %v276 = vpack.c.bf16 %v247, %v246
        %v277 = vpack.c.bf16 %v249, %v248
        %v278 = vpack.c.bf16 %v251, %v250
        %v279 = vpack.c.bf16 %v253, %v252
        %v280 = vpack.c.bf16 %v255, %v254
        %v281 = vpack.c.bf16 %v257, %v256
        %v282 = vpack.c.bf16 %v259, %v258
        %v283 = vpack.c.bf16 %v261, %v260
        %v284 = vpack.c.bf16 %v263, %v262
        %v285 = vpack.c.bf16 %v265, %v264
        %v286 = vpack.c.bf16 %v267, %v266
        %v287 = vpack.c.bf16 %v269, %v268
        %v288 = vpack.c.bf16 %v271, %v270
        %v289 = vpack.c.bf16 %v273, %v272
        %v290 = vld [vmem:[%s1] sm:$0xff]
        %v291 = vld [vmem:[%s1 + $0x8] sm:$0xff]
        %v292 = vld [vmem:[%s1 + $0x10] sm:$0xff]
        %v293 = vld [vmem:[%s1 + $0x18] sm:$0xff]
        %v294 = vld [vmem:[%s1 + $0x20] sm:$0x33]
        %v295 = vld [vmem:[%s1 + $0x28] sm:$0x33]
        %v296 = vld [vmem:[%s2] sm:$0xf]
        %v298 = vlaneseq
        %v299 = vshrl.u32 %v298, 7
        %v300 = vsub.s32 0, %v299
        %v301 = vrot.slane %v296, %v300
        %v302 = vlaneseq
        %v303 = vshrl.u32 %v302, 7
        %v304 = vsub.s32 1, %v303
        %v305 = vrot.slane %v296, %v304
        %v306 = vlaneseq
        %v307 = vshrl.u32 %v306, 7
        %v308 = vsub.s32 2, %v307
        %v309 = vrot.slane %v296, %v308
        %v310 = vlaneseq
        %v311 = vshrl.u32 %v310, 7
        %v312 = vsub.s32 3, %v311
        %v313 = vrot.slane %v296, %v312
        %v324 = vunpack.c.l.b16 %v290
        %v325 = vunpack.c.h.b16 %v290
        %v326 = vunpack.c.l.b16 %v291
        %v327 = vunpack.c.h.b16 %v291
        %v328 = vunpack.c.l.b16 %v292
        %v329 = vunpack.c.h.b16 %v292
        %v330 = vunpack.c.l.b16 %v293
        %v331 = vunpack.c.h.b16 %v293
        %v332 = vunpack.c.l.b16 %v294
        %v333 = vunpack.c.h.b16 %v294
        %v334 = vunpack.c.l.b16 %v295
        %v335 = vunpack.c.h.b16 %v295
        %v336 = vpack.c.b16 %v328, %v324
        %v337 = vpack.c.b16 %v329, %v325
        %v338 = vpack.c.b16 %v330, %v326
        %v339 = vpack.c.b16 %v331, %v327
        %v340 = vpack.c.b16 %v332, %v332
        %v341 = vpack.c.b16 %v333, %v333
        %v342 = vpack.c.b16 %v334, %v334
        %v343 = vpack.c.b16 %v335, %v335
        %vm348 = vcmask 162816
        %v350 = vsel %vm348, %v274, 0
        %v353 = vsel %vm348, %v275, 0
        %v356 = vsel %vm348, %v276, 0
        %v359 = vsel %vm348, %v277, 0
        %v362 = vsel %vm348, %v278, 0
        %v365 = vsel %vm348, %v279, 0
        %v368 = vsel %vm348, %v280, 0
        %v371 = vsel %vm348, %v281, 0
        %v374 = vsel %vm348, %v282, 0
        %v377 = vsel %vm348, %v283, 0
        %v380 = vsel %vm348, %v284, 0
        %v383 = vsel %vm348, %v285, 0
        %v386 = vsel %vm348, %v286, 0
        %v389 = vsel %vm348, %v287, 0
        %v392 = vsel %vm348, %v288, 0
        %v395 = vsel %vm348, %v289, 0
        %vm397 = vcmask 1041408
        %v399 = vsel %vm397, %v340, 0
        %v402 = vsel %vm397, %v341, 0
        %v405 = vsel %vm397, %v342, 0
        %v408 = vsel %vm397, %v343, 0
        %410 = vmatprep.subr.bf16.mxu0 %v337
        %411 = vmatpush1.bf16.msra.mxu0 %v336
        %412 = vmatprep.subr.bf16.mxu0 %v402
        %413 = vmatpush1.bf16.msra.mxu0 %v399
        %414 = vmatprep.subr.bf16.mxu0 0
        %415 = vmatpush1.bf16.msra.mxu0 0
        %416 = vmatprep.subr.bf16.mxu0 0
        %417 = vmatpush1.bf16.msra.mxu0 0
        %418 = vmatprep.subr.bf16.mxu0 0
        %419 = vmatpush1.bf16.msra.mxu0 0
        %420 = vmatprep.subr.bf16.mxu0 0
        %421 = vmatpush1.bf16.msra.mxu0 0
        %422 = vmatprep.subr.bf16.mxu0 0
        %423 = vmatpush1.bf16.msra.mxu0 0
        %424 = vmatprep.subr.bf16.mxu0 0
        %425 = vmatpush1.bf16.msra.mxu0 0
        %426 = vmatprep.subr.bf16.mxu0 0
        %427 = vmatpush1.bf16.msra.mxu0 0
        %428 = vmatprep.subr.bf16.mxu0 0
        %429 = vmatpush1.bf16.msra.mxu0 0
        %430 = vmatprep.subr.bf16.mxu0 0
        %431 = vmatpush1.bf16.msra.mxu0 0
        %432 = vmatprep.subr.bf16.mxu0 0
        %433 = vmatpush1.bf16.msra.mxu0 0
        %434 = vmatprep.subr.bf16.mxu0 0
        %435 = vmatpush1.bf16.msra.mxu0 0
        %436 = vmatprep.subr.bf16.mxu0 0
        %437 = vmatpush1.bf16.msra.mxu0 0
        %438 = vmatprep.subr.bf16.mxu0 0
        %439 = vmatpush1.bf16.msra.mxu0 0
        %440 = vmatprep.subr.bf16.mxu0 0
        %441 = vmatpush1.bf16.msra.mxu0 0
        %442 = vmatprep.mubr.bf16.mxu0 0
        %443 = vmatmul.mubr.bf16.gmra.mrb[0].mxu0 %v350
        %v444 = vpop.f32.mrb[0].mxu0
        %v445 = vadd.f32 %v301, %v444
        %v446 = vpop.f32.mrb[0].mxu0
        %v447 = vadd.f32 %v305, %v446
        %v448 = vpop.f32.mrb[0].mxu0
        %v449 = vadd.f32 %v301, %v448
        %v450 = vpop.f32.mrb[0].mxu0
        %v451 = vadd.f32 %v305, %v450
        %452 = vmatprep.mubr.bf16.mxu0 0
        %453 = vmatmul.mubr.bf16.gmra.mrb[0].mxu0 %v353
        %v454 = vpop.f32.mrb[0].mxu0
        %v455 = vadd.f32 %v301, %v454
        %v456 = vpop.f32.mrb[0].mxu0
        %v457 = vadd.f32 %v305, %v456
        %v458 = vpop.f32.mrb[0].mxu0
        %v459 = vadd.f32 %v301, %v458
        %v460 = vpop.f32.mrb[0].mxu0
        %v461 = vadd.f32 %v305, %v460
        %462 = vmatprep.mubr.bf16.mxu0 0
        %463 = vmatmul.mubr.bf16.gmra.mrb[0].mxu0 %v356
        %v464 = vpop.f32.mrb[0].mxu0
        %v465 = vadd.f32 %v301, %v464
        %v466 = vpop.f32.mrb[0].mxu0
        %v467 = vadd.f32 %v305, %v466
        %v468 = vpop.f32.mrb[0].mxu0
        %v469 = vadd.f32 %v301, %v468
        %v470 = vpop.f32.mrb[0].mxu0
        %v471 = vadd.f32 %v305, %v470
        %472 = vmatprep.mubr.bf16.mxu0 0
        %473 = vmatmul.mubr.bf16.gmra.mrb[0].mxu0 %v359
        %v474 = vpop.f32.mrb[0].mxu0
        %v475 = vadd.f32 %v301, %v474
        %v476 = vpop.f32.mrb[0].mxu0
        %v477 = vadd.f32 %v305, %v476
        %v478 = vpop.f32.mrb[0].mxu0
        %v479 = vadd.f32 %v301, %v478
        %v480 = vpop.f32.mrb[0].mxu0
        %v481 = vadd.f32 %v305, %v480
        %482 = vmatprep.mubr.bf16.mxu0 0
        %483 = vmatmul.mubr.bf16.gmra.mrb[0].mxu0 %v362
        %v484 = vpop.f32.mrb[0].mxu0
        %v485 = vadd.f32 %v301, %v484
        %v486 = vpop.f32.mrb[0].mxu0
        %v487 = vadd.f32 %v305, %v486
        %v488 = vpop.f32.mrb[0].mxu0
        %v489 = vadd.f32 %v301, %v488
        %v490 = vpop.f32.mrb[0].mxu0
        %v491 = vadd.f32 %v305, %v490
        %492 = vmatprep.mubr.bf16.mxu0 0
        %493 = vmatmul.mubr.bf16.gmra.mrb[0].mxu0 %v365
        %v494 = vpop.f32.mrb[0].mxu0
        %v495 = vadd.f32 %v301, %v494
        %v496 = vpop.f32.mrb[0].mxu0
        %v497 = vadd.f32 %v305, %v496
        %v498 = vpop.f32.mrb[0].mxu0
        %v499 = vadd.f32 %v301, %v498
        %v500 = vpop.f32.mrb[0].mxu0
        %v501 = vadd.f32 %v305, %v500
        %502 = vmatprep.mubr.bf16.mxu0 0
        %503 = vmatmul.mubr.bf16.gmra.mrb[0].mxu0 %v368
        %v504 = vpop.f32.mrb[0].mxu0
        %v505 = vadd.f32 %v301, %v504
        %v506 = vpop.f32.mrb[0].mxu0
        %v507 = vadd.f32 %v305, %v506
        %v508 = vpop.f32.mrb[0].mxu0
        %v509 = vadd.f32 %v301, %v508
        %v510 = vpop.f32.mrb[0].mxu0
        %v511 = vadd.f32 %v305, %v510
        %512 = vmatprep.mubr.bf16.mxu0 0
        %513 = vmatmul.mubr.bf16.gmra.mrb[0].mxu0 %v371
        %v514 = vpop.f32.mrb[0].mxu0
        %v515 = vadd.f32 %v301, %v514
        %v516 = vpop.f32.mrb[0].mxu0
        %v517 = vadd.f32 %v305, %v516
        %v518 = vpop.f32.mrb[0].mxu0
        %v519 = vadd.f32 %v301, %v518
        %v520 = vpop.f32.mrb[0].mxu0
        %v521 = vadd.f32 %v305, %v520
        %522 = vmatprep.mubr.bf16.mxu0 0
        %523 = vmatmul.mubr.bf16.gmra.mrb[0].mxu0 %v374
        %v524 = vpop.f32.mrb[0].mxu0
        %v525 = vadd.f32 %v301, %v524
        %v526 = vpop.f32.mrb[0].mxu0
        %v527 = vadd.f32 %v305, %v526
        %v528 = vpop.f32.mrb[0].mxu0
        %v529 = vadd.f32 %v301, %v528
        %v530 = vpop.f32.mrb[0].mxu0
        %v531 = vadd.f32 %v305, %v530
        %532 = vmatprep.mubr.bf16.mxu0 0
        %533 = vmatmul.mubr.bf16.gmra.mrb[0].mxu0 %v377
        %v534 = vpop.f32.mrb[0].mxu0
        %v535 = vadd.f32 %v301, %v534
        %v536 = vpop.f32.mrb[0].mxu0
        %v537 = vadd.f32 %v305, %v536
        %v538 = vpop.f32.mrb[0].mxu0
        %v539 = vadd.f32 %v301, %v538
        %v540 = vpop.f32.mrb[0].mxu0
        %v541 = vadd.f32 %v305, %v540
        %542 = vmatprep.mubr.bf16.mxu0 0
        %543 = vmatmul.mubr.bf16.gmra.mrb[0].mxu0 %v380
        %v544 = vpop.f32.mrb[0].mxu0
        %v545 = vadd.f32 %v301, %v544
        %v546 = vpop.f32.mrb[0].mxu0
        %v547 = vadd.f32 %v305, %v546
        %v548 = vpop.f32.mrb[0].mxu0
        %v549 = vadd.f32 %v301, %v548
        %v550 = vpop.f32.mrb[0].mxu0
        %v551 = vadd.f32 %v305, %v550
        %552 = vmatprep.mubr.bf16.mxu0 0
        %553 = vmatmul.mubr.bf16.gmra.mrb[0].mxu0 %v383
        %v554 = vpop.f32.mrb[0].mxu0
        %v555 = vadd.f32 %v301, %v554
        %v556 = vpop.f32.mrb[0].mxu0
        %v557 = vadd.f32 %v305, %v556
        %v558 = vpop.f32.mrb[0].mxu0
        %v559 = vadd.f32 %v301, %v558
        %v560 = vpop.f32.mrb[0].mxu0
        %v561 = vadd.f32 %v305, %v560
        %562 = vmatprep.mubr.bf16.mxu0 0
        %563 = vmatmul.mubr.bf16.gmra.mrb[0].mxu0 %v386
        %v564 = vpop.f32.mrb[0].mxu0
        %v565 = vadd.f32 %v301, %v564
        %v566 = vpop.f32.mrb[0].mxu0
        %v567 = vadd.f32 %v305, %v566
        %v568 = vpop.f32.mrb[0].mxu0
        %v569 = vadd.f32 %v301, %v568
        %v570 = vpop.f32.mrb[0].mxu0
        %v571 = vadd.f32 %v305, %v570
        %572 = vmatprep.mubr.bf16.mxu0 0
        %573 = vmatmul.mubr.bf16.gmra.mrb[0].mxu0 %v389
        %v574 = vpop.f32.mrb[0].mxu0
        %v575 = vadd.f32 %v301, %v574
        %v576 = vpop.f32.mrb[0].mxu0
        %v577 = vadd.f32 %v305, %v576
        %v578 = vpop.f32.mrb[0].mxu0
        %v579 = vadd.f32 %v301, %v578
        %v580 = vpop.f32.mrb[0].mxu0
        %v581 = vadd.f32 %v305, %v580
        %582 = vmatprep.mubr.bf16.mxu0 0
        %583 = vmatmul.mubr.bf16.gmra.mrb[0].mxu0 %v392
        %v584 = vpop.f32.mrb[0].mxu0
        %v585 = vadd.f32 %v301, %v584
        %v586 = vpop.f32.mrb[0].mxu0
        %v587 = vadd.f32 %v305, %v586
        %v588 = vpop.f32.mrb[0].mxu0
        %v589 = vadd.f32 %v301, %v588
        %v590 = vpop.f32.mrb[0].mxu0
        %v591 = vadd.f32 %v305, %v590
        %592 = vmatprep.mubr.bf16.mxu0 0
        %593 = vmatmul.mubr.bf16.gmra.mrb[0].mxu0 %v395
        %v594 = vpop.f32.mrb[0].mxu0
        %v595 = vadd.f32 %v301, %v594
        %v596 = vpop.f32.mrb[0].mxu0
        %v597 = vadd.f32 %v305, %v596
        %v598 = vpop.f32.mrb[0].mxu0
        %v599 = vadd.f32 %v301, %v598
        %v600 = vpop.f32.mrb[0].mxu0
        %v601 = vadd.f32 %v305, %v600
        %602 = vdwg.mxu0
        %603 = vmatprep.subr.bf16.mxu0 %v339
        %604 = vmatpush1.bf16.msra.mxu0 %v338
        %605 = vmatprep.subr.bf16.mxu0 %v408
        %606 = vmatpush1.bf16.msra.mxu0 %v405
        %607 = vmatprep.subr.bf16.mxu0 0
        %608 = vmatpush1.bf16.msra.mxu0 0
        %609 = vmatprep.subr.bf16.mxu0 0
        %610 = vmatpush1.bf16.msra.mxu0 0
        %611 = vmatprep.subr.bf16.mxu0 0
        %612 = vmatpush1.bf16.msra.mxu0 0
        %613 = vmatprep.subr.bf16.mxu0 0
        %614 = vmatpush1.bf16.msra.mxu0 0
        %615 = vmatprep.subr.bf16.mxu0 0
        %616 = vmatpush1.bf16.msra.mxu0 0
        %617 = vmatprep.subr.bf16.mxu0 0
        %618 = vmatpush1.bf16.msra.mxu0 0
        %619 = vmatprep.subr.bf16.mxu0 0
        %620 = vmatpush1.bf16.msra.mxu0 0
        %621 = vmatprep.subr.bf16.mxu0 0
        %622 = vmatpush1.bf16.msra.mxu0 0
        %623 = vmatprep.subr.bf16.mxu0 0
        %624 = vmatpush1.bf16.msra.mxu0 0
        %625 = vmatprep.subr.bf16.mxu0 0
        %626 = vmatpush1.bf16.msra.mxu0 0
        %627 = vmatprep.subr.bf16.mxu0 0
        %628 = vmatpush1.bf16.msra.mxu0 0
        %629 = vmatprep.subr.bf16.mxu0 0
        %630 = vmatpush1.bf16.msra.mxu0 0
        %631 = vmatprep.subr.bf16.mxu0 0
        %632 = vmatpush1.bf16.msra.mxu0 0
        %633 = vmatprep.subr.bf16.mxu0 0
        %634 = vmatpush1.bf16.msra.mxu0 0
        %635 = vmatprep.mubr.bf16.mxu0 0
        %636 = vmatmul.mubr.bf16.gmra.mrb[0].mxu0 %v350
        %v637 = vpop.f32.mrb[0].mxu0
        %v638 = vadd.f32 %v309, %v637
        %v639 = vpop.f32.mrb[0].mxu0
        %v640 = vadd.f32 %v313, %v639
        %v641 = vpop.f32.mrb[0].mxu0
        %v642 = vadd.f32 %v309, %v641
        %v643 = vpop.f32.mrb[0].mxu0
        %v644 = vadd.f32 %v313, %v643
        %645 = vmatprep.mubr.bf16.mxu0 0
        %646 = vmatmul.mubr.bf16.gmra.mrb[0].mxu0 %v353
        %v647 = vpop.f32.mrb[0].mxu0
        %v648 = vadd.f32 %v309, %v647
        %v649 = vpop.f32.mrb[0].mxu0
        %v650 = vadd.f32 %v313, %v649
        %v651 = vpop.f32.mrb[0].mxu0
        %v652 = vadd.f32 %v309, %v651
        %v653 = vpop.f32.mrb[0].mxu0
        %v654 = vadd.f32 %v313, %v653
        %655 = vmatprep.mubr.bf16.mxu0 0
        %656 = vmatmul.mubr.bf16.gmra.mrb[0].mxu0 %v356
        %v657 = vpop.f32.mrb[0].mxu0
        %v658 = vadd.f32 %v309, %v657
        %v659 = vpop.f32.mrb[0].mxu0
        %v660 = vadd.f32 %v313, %v659
        %v661 = vpop.f32.mrb[0].mxu0
        %v662 = vadd.f32 %v309, %v661
        %v663 = vpop.f32.mrb[0].mxu0
        %v664 = vadd.f32 %v313, %v663
        %665 = vmatprep.mubr.bf16.mxu0 0
        %666 = vmatmul.mubr.bf16.gmra.mrb[0].mxu0 %v359
        %v667 = vpop.f32.mrb[0].mxu0
        %v668 = vadd.f32 %v309, %v667
        %v669 = vpop.f32.mrb[0].mxu0
        %v670 = vadd.f32 %v313, %v669
        %v671 = vpop.f32.mrb[0].mxu0
        %v672 = vadd.f32 %v309, %v671
        %v673 = vpop.f32.mrb[0].mxu0
        %v674 = vadd.f32 %v313, %v673
        %675 = vmatprep.mubr.bf16.mxu0 0
        %676 = vmatmul.mubr.bf16.gmra.mrb[0].mxu0 %v362
        %v677 = vpop.f32.mrb[0].mxu0
        %v678 = vadd.f32 %v309, %v677
        %v679 = vpop.f32.mrb[0].mxu0
        %v680 = vadd.f32 %v313, %v679
        %v681 = vpop.f32.mrb[0].mxu0
        %v682 = vadd.f32 %v309, %v681
        %v683 = vpop.f32.mrb[0].mxu0
        %v684 = vadd.f32 %v313, %v683
        %685 = vmatprep.mubr.bf16.mxu0 0
        %686 = vmatmul.mubr.bf16.gmra.mrb[0].mxu0 %v365
        %v687 = vpop.f32.mrb[0].mxu0
        %v688 = vadd.f32 %v309, %v687
        %v689 = vpop.f32.mrb[0].mxu0
        %v690 = vadd.f32 %v313, %v689
        %v691 = vpop.f32.mrb[0].mxu0
        %v692 = vadd.f32 %v309, %v691
        %v693 = vpop.f32.mrb[0].mxu0
        %v694 = vadd.f32 %v313, %v693
        %695 = vmatprep.mubr.bf16.mxu0 0
        %696 = vmatmul.mubr.bf16.gmra.mrb[0].mxu0 %v368
        %v697 = vpop.f32.mrb[0].mxu0
        %v698 = vadd.f32 %v309, %v697
        %v699 = vpop.f32.mrb[0].mxu0
        %v700 = vadd.f32 %v313, %v699
        %v701 = vpop.f32.mrb[0].mxu0
        %v702 = vadd.f32 %v309, %v701
        %v703 = vpop.f32.mrb[0].mxu0
        %v704 = vadd.f32 %v313, %v703
        %705 = vmatprep.mubr.bf16.mxu0 0
        %706 = vmatmul.mubr.bf16.gmra.mrb[0].mxu0 %v371
        %v707 = vpop.f32.mrb[0].mxu0
        %v708 = vadd.f32 %v309, %v707
        %v709 = vpop.f32.mrb[0].mxu0
        %v710 = vadd.f32 %v313, %v709
        %v711 = vpop.f32.mrb[0].mxu0
        %v712 = vadd.f32 %v309, %v711
        %v713 = vpop.f32.mrb[0].mxu0
        %v714 = vadd.f32 %v313, %v713
        %715 = vmatprep.mubr.bf16.mxu0 0
        %716 = vmatmul.mubr.bf16.gmra.mrb[0].mxu0 %v374
        %v717 = vpop.f32.mrb[0].mxu0
        %v718 = vadd.f32 %v309, %v717
        %v719 = vpop.f32.mrb[0].mxu0
        %v720 = vadd.f32 %v313, %v719
        %v721 = vpop.f32.mrb[0].mxu0
        %v722 = vadd.f32 %v309, %v721
        %v723 = vpop.f32.mrb[0].mxu0
        %v724 = vadd.f32 %v313, %v723
        %725 = vmatprep.mubr.bf16.mxu0 0
        %726 = vmatmul.mubr.bf16.gmra.mrb[0].mxu0 %v377
        %v727 = vpop.f32.mrb[0].mxu0
        %v728 = vadd.f32 %v309, %v727
        %v729 = vpop.f32.mrb[0].mxu0
        %v730 = vadd.f32 %v313, %v729
        %v731 = vpop.f32.mrb[0].mxu0
        %v732 = vadd.f32 %v309, %v731
        %v733 = vpop.f32.mrb[0].mxu0
        %v734 = vadd.f32 %v313, %v733
        %735 = vmatprep.mubr.bf16.mxu0 0
        %736 = vmatmul.mubr.bf16.gmra.mrb[0].mxu0 %v380
        %v737 = vpop.f32.mrb[0].mxu0
        %v738 = vadd.f32 %v309, %v737
        %v739 = vpop.f32.mrb[0].mxu0
        %v740 = vadd.f32 %v313, %v739
        %v741 = vpop.f32.mrb[0].mxu0
        %v742 = vadd.f32 %v309, %v741
        %v743 = vpop.f32.mrb[0].mxu0
        %v744 = vadd.f32 %v313, %v743
        %745 = vmatprep.mubr.bf16.mxu0 0
        %746 = vmatmul.mubr.bf16.gmra.mrb[0].mxu0 %v383
        %v747 = vpop.f32.mrb[0].mxu0
        %v748 = vadd.f32 %v309, %v747
        %v749 = vpop.f32.mrb[0].mxu0
        %v750 = vadd.f32 %v313, %v749
        %v751 = vpop.f32.mrb[0].mxu0
        %v752 = vadd.f32 %v309, %v751
        %v753 = vpop.f32.mrb[0].mxu0
        %v754 = vadd.f32 %v313, %v753
        %755 = vmatprep.mubr.bf16.mxu0 0
        %756 = vmatmul.mubr.bf16.gmra.mrb[0].mxu0 %v386
        %v757 = vpop.f32.mrb[0].mxu0
        %v758 = vadd.f32 %v309, %v757
        %v759 = vpop.f32.mrb[0].mxu0
        %v760 = vadd.f32 %v313, %v759
        %v761 = vpop.f32.mrb[0].mxu0
        %v762 = vadd.f32 %v309, %v761
        %v763 = vpop.f32.mrb[0].mxu0
        %v764 = vadd.f32 %v313, %v763
        %765 = vmatprep.mubr.bf16.mxu0 0
        %766 = vmatmul.mubr.bf16.gmra.mrb[0].mxu0 %v389
        %v767 = vpop.f32.mrb[0].mxu0
        %v768 = vadd.f32 %v309, %v767
        %v769 = vpop.f32.mrb[0].mxu0
        %v770 = vadd.f32 %v313, %v769
        %v771 = vpop.f32.mrb[0].mxu0
        %v772 = vadd.f32 %v309, %v771
        %v773 = vpop.f32.mrb[0].mxu0
        %v774 = vadd.f32 %v313, %v773
        %775 = vmatprep.mubr.bf16.mxu0 0
        %776 = vmatmul.mubr.bf16.gmra.mrb[0].mxu0 %v392
        %v777 = vpop.f32.mrb[0].mxu0
        %v778 = vadd.f32 %v309, %v777
        %v779 = vpop.f32.mrb[0].mxu0
        %v780 = vadd.f32 %v313, %v779
        %v781 = vpop.f32.mrb[0].mxu0
        %v782 = vadd.f32 %v309, %v781
        %v783 = vpop.f32.mrb[0].mxu0
        %v784 = vadd.f32 %v313, %v783
        %785 = vmatprep.mubr.bf16.mxu0 0
        %786 = vmatmul.mubr.bf16.gmra.mrb[0].mxu0 %v395
        %v787 = vpop.f32.mrb[0].mxu0
        %v788 = vadd.f32 %v309, %v787
        %v789 = vpop.f32.mrb[0].mxu0
        %v790 = vadd.f32 %v313, %v789
        %v791 = vpop.f32.mrb[0].mxu0
        %v792 = vadd.f32 %v309, %v791
        %v793 = vpop.f32.mrb[0].mxu0
        %v794 = vadd.f32 %v313, %v793
        %795 = vdwg.mxu0
        %v796 = vmax.f32 %v445, 0.0
        %v797 = vmax.f32 %v447, 0.0
        %v798 = vmax.f32 %v638, 0.0
        %v799 = vmax.f32 %v640, 0.0
        %v800 = vmax.f32 %v449, 0.0
        %v801 = vmax.f32 %v451, 0.0
        %v802 = vmax.f32 %v642, 0.0
        %v803 = vmax.f32 %v644, 0.0
        %v804 = vmax.f32 %v455, 0.0
        %v805 = vmax.f32 %v457, 0.0
        %v806 = vmax.f32 %v648, 0.0
        %v807 = vmax.f32 %v650, 0.0
        %v808 = vmax.f32 %v459, 0.0
        %v809 = vmax.f32 %v461, 0.0
        %v810 = vmax.f32 %v652, 0.0
        %v811 = vmax.f32 %v654, 0.0
        %v812 = vmax.f32 %v465, 0.0
        %v813 = vmax.f32 %v467, 0.0
        %v814 = vmax.f32 %v658, 0.0
        %v815 = vmax.f32 %v660, 0.0
        %v816 = vmax.f32 %v469, 0.0
        %v817 = vmax.f32 %v471, 0.0
        %v818 = vmax.f32 %v662, 0.0
        %v819 = vmax.f32 %v664, 0.0
        %v820 = vmax.f32 %v475, 0.0
        %v821 = vmax.f32 %v477, 0.0
        %v822 = vmax.f32 %v668, 0.0
        %v823 = vmax.f32 %v670, 0.0
        %v824 = vmax.f32 %v479, 0.0
        %v825 = vmax.f32 %v481, 0.0
        %v826 = vmax.f32 %v672, 0.0
        %v827 = vmax.f32 %v674, 0.0
        %v828 = vmax.f32 %v485, 0.0
        %v829 = vmax.f32 %v487, 0.0
        %v830 = vmax.f32 %v678, 0.0
        %v831 = vmax.f32 %v680, 0.0
        %v832 = vmax.f32 %v489, 0.0
        %v833 = vmax.f32 %v491, 0.0
        %v834 = vmax.f32 %v682, 0.0
        %v835 = vmax.f32 %v684, 0.0
        %v836 = vmax.f32 %v495, 0.0
        %v837 = vmax.f32 %v497, 0.0
        %v838 = vmax.f32 %v688, 0.0
        %v839 = vmax.f32 %v690, 0.0
        %v840 = vmax.f32 %v499, 0.0
        %v841 = vmax.f32 %v501, 0.0
        %v842 = vmax.f32 %v692, 0.0
        %v843 = vmax.f32 %v694, 0.0
        %v844 = vmax.f32 %v505, 0.0
        %v845 = vmax.f32 %v507, 0.0
        %v846 = vmax.f32 %v698, 0.0
        %v847 = vmax.f32 %v700, 0.0
        %v848 = vmax.f32 %v509, 0.0
        %v849 = vmax.f32 %v511, 0.0
        %v850 = vmax.f32 %v702, 0.0
        %v851 = vmax.f32 %v704, 0.0
        %v852 = vmax.f32 %v515, 0.0
        %v853 = vmax.f32 %v517, 0.0
        %v854 = vmax.f32 %v708, 0.0
        %v855 = vmax.f32 %v710, 0.0
        %v856 = vmax.f32 %v519, 0.0
        %v857 = vmax.f32 %v521, 0.0
        %v858 = vmax.f32 %v712, 0.0
        %v859 = vmax.f32 %v714, 0.0
        %v860 = vmax.f32 %v525, 0.0
        %v861 = vmax.f32 %v527, 0.0
        %v862 = vmax.f32 %v718, 0.0
        %v863 = vmax.f32 %v720, 0.0
        %v864 = vmax.f32 %v529, 0.0
        %v865 = vmax.f32 %v531, 0.0
        %v866 = vmax.f32 %v722, 0.0
        %v867 = vmax.f32 %v724, 0.0
        %v868 = vmax.f32 %v535, 0.0
        %v869 = vmax.f32 %v537, 0.0
        %v870 = vmax.f32 %v728, 0.0
        %v871 = vmax.f32 %v730, 0.0
        %v872 = vmax.f32 %v539, 0.0
        %v873 = vmax.f32 %v541, 0.0
        %v874 = vmax.f32 %v732, 0.0
        %v875 = vmax.f32 %v734, 0.0
        %v876 = vmax.f32 %v545, 0.0
        %v877 = vmax.f32 %v547, 0.0
        %v878 = vmax.f32 %v738, 0.0
        %v879 = vmax.f32 %v740, 0.0
        %v880 = vmax.f32 %v549, 0.0
        %v881 = vmax.f32 %v551, 0.0
        %v882 = vmax.f32 %v742, 0.0
        %v883 = vmax.f32 %v744, 0.0
        %v884 = vmax.f32 %v555, 0.0
        %v885 = vmax.f32 %v557, 0.0
        %v886 = vmax.f32 %v748, 0.0
        %v887 = vmax.f32 %v750, 0.0
        %v888 = vmax.f32 %v559, 0.0
        %v889 = vmax.f32 %v561, 0.0
        %v890 = vmax.f32 %v752, 0.0
        %v891 = vmax.f32 %v754, 0.0
        %v892 = vmax.f32 %v565, 0.0
        %v893 = vmax.f32 %v567, 0.0
        %v894 = vmax.f32 %v758, 0.0
        %v895 = vmax.f32 %v760, 0.0
        %v896 = vmax.f32 %v569, 0.0
        %v897 = vmax.f32 %v571, 0.0
        %v898 = vmax.f32 %v762, 0.0
        %v899 = vmax.f32 %v764, 0.0
        %v900 = vmax.f32 %v575, 0.0
        %v901 = vmax.f32 %v577, 0.0
        %v902 = vmax.f32 %v768, 0.0
        %v903 = vmax.f32 %v770, 0.0
        %v904 = vmax.f32 %v579, 0.0
        %v905 = vmax.f32 %v581, 0.0
        %v906 = vmax.f32 %v772, 0.0
        %v907 = vmax.f32 %v774, 0.0
        %v908 = vmax.f32 %v585, 0.0
        %v909 = vmax.f32 %v587, 0.0
        %v910 = vmax.f32 %v778, 0.0
        %v911 = vmax.f32 %v780, 0.0
        %v912 = vmax.f32 %v589, 0.0
        %v913 = vmax.f32 %v591, 0.0
        %v914 = vmax.f32 %v782, 0.0
        %v915 = vmax.f32 %v784, 0.0
        %v916 = vmax.f32 %v595, 0.0
        %v917 = vmax.f32 %v597, 0.0
        %v918 = vmax.f32 %v788, 0.0
        %v919 = vmax.f32 %v790, 0.0
        %v920 = vmax.f32 %v599, 0.0
        %v921 = vmax.f32 %v601, 0.0
        %v922 = vmax.f32 %v792, 0.0
        %v923 = vmax.f32 %v794, 0.0
        %v924 = vpack.c.bf16 %v800, %v796
        %v925 = vpack.c.bf16 %v801, %v797
        %v926 = vpack.c.bf16 %v802, %v798
        %v927 = vpack.c.bf16 %v803, %v799
        %v928 = vpack.c.bf16 %v808, %v804
        %v929 = vpack.c.bf16 %v809, %v805
        %v930 = vpack.c.bf16 %v810, %v806
        %v931 = vpack.c.bf16 %v811, %v807
        %v932 = vpack.c.bf16 %v816, %v812
        %v933 = vpack.c.bf16 %v817, %v813
        %v934 = vpack.c.bf16 %v818, %v814
        %v935 = vpack.c.bf16 %v819, %v815
        %v936 = vpack.c.bf16 %v824, %v820
        %v937 = vpack.c.bf16 %v825, %v821
        %v938 = vpack.c.bf16 %v826, %v822
        %v939 = vpack.c.bf16 %v827, %v823
        %v940 = vpack.c.bf16 %v832, %v828
        %v941 = vpack.c.bf16 %v833, %v829
        %v942 = vpack.c.bf16 %v834, %v830
        %v943 = vpack.c.bf16 %v835, %v831
        %v944 = vpack.c.bf16 %v840, %v836
        %v945 = vpack.c.bf16 %v841, %v837
        %v946 = vpack.c.bf16 %v842, %v838
        %v947 = vpack.c.bf16 %v843, %v839
        %v948 = vpack.c.bf16 %v848, %v844
        %v949 = vpack.c.bf16 %v849, %v845
        %v950 = vpack.c.bf16 %v850, %v846
        %v951 = vpack.c.bf16 %v851, %v847
        %v952 = vpack.c.bf16 %v856, %v852
        %v953 = vpack.c.bf16 %v857, %v853
        %v954 = vpack.c.bf16 %v858, %v854
        %v955 = vpack.c.bf16 %v859, %v855
        %v956 = vpack.c.bf16 %v864, %v860
        %v957 = vpack.c.bf16 %v865, %v861
        %v958 = vpack.c.bf16 %v866, %v862
        %v959 = vpack.c.bf16 %v867, %v863
        %v960 = vpack.c.bf16 %v872, %v868
        %v961 = vpack.c.bf16 %v873, %v869
        %v962 = vpack.c.bf16 %v874, %v870
        %v963 = vpack.c.bf16 %v875, %v871
        %v964 = vpack.c.bf16 %v880, %v876
        %v965 = vpack.c.bf16 %v881, %v877
        %v966 = vpack.c.bf16 %v882, %v878
        %v967 = vpack.c.bf16 %v883, %v879
        %v968 = vpack.c.bf16 %v888, %v884
        %v969 = vpack.c.bf16 %v889, %v885
        %v970 = vpack.c.bf16 %v890, %v886
        %v971 = vpack.c.bf16 %v891, %v887
        %v972 = vpack.c.bf16 %v896, %v892
        %v973 = vpack.c.bf16 %v897, %v893
        %v974 = vpack.c.bf16 %v898, %v894
        %v975 = vpack.c.bf16 %v899, %v895
        %v976 = vpack.c.bf16 %v904, %v900
        %v977 = vpack.c.bf16 %v905, %v901
        %v978 = vpack.c.bf16 %v906, %v902
        %v979 = vpack.c.bf16 %v907, %v903
        %v980 = vpack.c.bf16 %v912, %v908
        %v981 = vpack.c.bf16 %v913, %v909
        %v982 = vpack.c.bf16 %v914, %v910
        %v983 = vpack.c.bf16 %v915, %v911
        %v984 = vpack.c.bf16 %v920, %v916
        %v985 = vpack.c.bf16 %v921, %v917
        %v986 = vpack.c.bf16 %v922, %v918
        %v987 = vpack.c.bf16 %v923, %v919
        %v988 = vld [vmem:[#allocation2] sm:$0xff]
        %v989 = vld [vmem:[#allocation2 + $0x8] sm:$0xff]
        %v990 = vld [vmem:[#allocation2 + $0x10] sm:$0xff]
        %v991 = vld [vmem:[#allocation2 + $0x18] sm:$0xf]
        %v992 = vld [vmem:[#allocation2 + $0x1c] sm:$0xff]
        %v993 = vld [vmem:[#allocation2 + $0x24] sm:$0xff]
        %v994 = vld [vmem:[#allocation2 + $0x2c] sm:$0xff]
        %v995 = vld [vmem:[#allocation2 + $0x34] sm:$0xf]
        %v996 = vld [vmem:[#allocation2 + $0x38] sm:$0xff]
        %v997 = vld [vmem:[#allocation2 + $0x40] sm:$0xff]
        %v998 = vld [vmem:[#allocation2 + $0x48] sm:$0xff]
        %v999 = vld [vmem:[#allocation2 + $0x50] sm:$0xf]
        %v1000 = vld [vmem:[#allocation2 + $0x54] sm:$0xff]
        %v1001 = vld [vmem:[#allocation2 + $0x5c] sm:$0xff]
        %v1002 = vld [vmem:[#allocation2 + $0x64] sm:$0xff]
        %v1003 = vld [vmem:[#allocation2 + $0x6c] sm:$0xf]
        %v1004 = vld [vmem:[#allocation2 + $0x70] sm:$0xff]
        %v1005 = vld [vmem:[#allocation2 + $0x78] sm:$0xff]
        %v1006 = vld [vmem:[#allocation2 + $0x80] sm:$0xff]
        %v1007 = vld [vmem:[#allocation2 + $0x88] sm:$0xf]
        %v1008 = vld [vmem:[#allocation2 + $0x8c] sm:$0xff]
        %v1009 = vld [vmem:[#allocation2 + $0x94] sm:$0xff]
        %v1010 = vld [vmem:[#allocation2 + $0x9c] sm:$0xff]
        %v1011 = vld [vmem:[#allocation2 + $0xa4] sm:$0xf]
        %v1012 = vld [vmem:[#allocation2 + $0xa8] sm:$0xff]
        %v1013 = vld [vmem:[#allocation2 + $0xb0] sm:$0xff]
        %v1014 = vld [vmem:[#allocation2 + $0xb8] sm:$0xff]
        %v1015 = vld [vmem:[#allocation2 + $0xc0] sm:$0xf]
        %v1016 = vld [vmem:[#allocation2 + $0xc4] sm:$0xff]
        %v1017 = vld [vmem:[#allocation2 + $0xcc] sm:$0xff]
        %v1018 = vld [vmem:[#allocation2 + $0xd4] sm:$0xff]
        %v1019 = vld [vmem:[#allocation2 + $0xdc] sm:$0xf]
        %v1020 = vld [vmem:[#allocation2 + $0xe0] sm:$0xff]
        %v1021 = vld [vmem:[#allocation2 + $0xe8] sm:$0xff]
        %v1022 = vld [vmem:[#allocation2 + $0xf0] sm:$0xff]
        %v1023 = vld [vmem:[#allocation2 + $0xf8] sm:$0xf]
        %v1024 = vld [vmem:[#allocation2 + $0xfc] sm:$0xff]
        %v1025 = vld [vmem:[#allocation2 + $0x104] sm:$0xff]
        %v1026 = vld [vmem:[#allocation2 + $0x10c] sm:$0xff]
        %v1027 = vld [vmem:[#allocation2 + $0x114] sm:$0xf]
        %v1028 = vld [vmem:[#allocation2 + $0x118] sm:$0xff]
        %v1029 = vld [vmem:[#allocation2 + $0x120] sm:$0xff]
        %v1030 = vld [vmem:[#allocation2 + $0x128] sm:$0xff]
        %v1031 = vld [vmem:[#allocation2 + $0x130] sm:$0xf]
        %v1032 = vld [vmem:[#allocation2 + $0x134] sm:$0xff]
        %v1033 = vld [vmem:[#allocation2 + $0x13c] sm:$0xff]
        %v1034 = vld [vmem:[#allocation2 + $0x144] sm:$0xff]
        %v1035 = vld [vmem:[#allocation2 + $0x14c] sm:$0xf]
        %v1036 = vld [vmem:[#allocation2 + $0x150] sm:$0xff]
        %v1037 = vld [vmem:[#allocation2 + $0x158] sm:$0xff]
        %v1038 = vld [vmem:[#allocation2 + $0x160] sm:$0xff]
        %v1039 = vld [vmem:[#allocation2 + $0x168] sm:$0xf]
        %v1040 = vld [vmem:[#allocation2 + $0x16c] sm:$0xff]
        %v1041 = vld [vmem:[#allocation2 + $0x174] sm:$0xff]
        %v1042 = vld [vmem:[#allocation2 + $0x17c] sm:$0xff]
        %v1043 = vld [vmem:[#allocation2 + $0x184] sm:$0xf]
        %v1044 = vld [vmem:[#allocation2 + $0x188] sm:$0xff]
        %v1045 = vld [vmem:[#allocation2 + $0x190] sm:$0xff]
        %v1046 = vld [vmem:[#allocation2 + $0x198] sm:$0xff]
        %v1047 = vld [vmem:[#allocation2 + $0x1a0] sm:$0xf]
        %v1048 = vld [vmem:[#allocation2 + $0x1a4] sm:$0xff]
        %v1049 = vld [vmem:[#allocation2 + $0x1ac] sm:$0xff]
        %v1050 = vld [vmem:[#allocation2 + $0x1b4] sm:$0xff]
        %v1051 = vld [vmem:[#allocation2 + $0x1bc] sm:$0xf]
        %v1052 = vld [vmem:[#allocation2 + $0x1c0] sm:$0xff]
        %v1053 = vld [vmem:[#allocation2 + $0x1c8] sm:$0xff]
        %v1054 = vld [vmem:[#allocation2 + $0x1d0] sm:$0xff]
        %v1055 = vld [vmem:[#allocation2 + $0x1d8] sm:$0xf]
        %v1056 = vld [vmem:[#allocation2 + $0x1dc] sm:$0xff]
        %v1057 = vld [vmem:[#allocation2 + $0x1e4] sm:$0xff]
        %v1058 = vld [vmem:[#allocation2 + $0x1ec] sm:$0xff]
        %v1059 = vld [vmem:[#allocation2 + $0x1f4] sm:$0xf]
        %v1060 = vld [vmem:[#allocation2 + $0x1f8] sm:$0xff]
        %v1061 = vld [vmem:[#allocation2 + $0x200] sm:$0xff]
        %v1062 = vld [vmem:[#allocation2 + $0x208] sm:$0xff]
        %v1063 = vld [vmem:[#allocation2 + $0x210] sm:$0xf]
        %v1064 = vld [vmem:[#allocation2 + $0x214] sm:$0xff]
        %v1065 = vld [vmem:[#allocation2 + $0x21c] sm:$0xff]
        %v1066 = vld [vmem:[#allocation2 + $0x224] sm:$0xff]
        %v1067 = vld [vmem:[#allocation2 + $0x22c] sm:$0xf]
        %v1068 = vld [vmem:[#allocation2 + $0x230] sm:$0xff]
        %v1069 = vld [vmem:[#allocation2 + $0x238] sm:$0xff]
        %v1070 = vld [vmem:[#allocation2 + $0x240] sm:$0xff]
        %v1071 = vld [vmem:[#allocation2 + $0x248] sm:$0xf]
        %v1072 = vld [vmem:[#allocation2 + $0x24c] sm:$0xff]
        %v1073 = vld [vmem:[#allocation2 + $0x254] sm:$0xff]
        %v1074 = vld [vmem:[#allocation2 + $0x25c] sm:$0xff]
        %v1075 = vld [vmem:[#allocation2 + $0x264] sm:$0xf]
        %v1076 = vld [vmem:[#allocation2 + $0x268] sm:$0xff]
        %v1077 = vld [vmem:[#allocation2 + $0x270] sm:$0xff]
        %v1078 = vld [vmem:[#allocation2 + $0x278] sm:$0xff]
        %v1079 = vld [vmem:[#allocation2 + $0x280] sm:$0xf]
        %v1080 = vld [vmem:[#allocation2 + $0x284] sm:$0xff]
        %v1081 = vld [vmem:[#allocation2 + $0x28c] sm:$0xff]
        %v1082 = vld [vmem:[#allocation2 + $0x294] sm:$0xff]
        %v1083 = vld [vmem:[#allocation2 + $0x29c] sm:$0xf]
        %v1084 = vld [vmem:[#allocation2 + $0x2a0] sm:$0xff]
        %v1085 = vld [vmem:[#allocation2 + $0x2a8] sm:$0xff]
        %v1086 = vld [vmem:[#allocation2 + $0x2b0] sm:$0xff]
        %v1087 = vld [vmem:[#allocation2 + $0x2b8] sm:$0xf]
        %v1088 = vld [vmem:[#allocation2 + $0x2bc] sm:$0xff]
        %v1089 = vld [vmem:[#allocation2 + $0x2c4] sm:$0xff]
        %v1090 = vld [vmem:[#allocation2 + $0x2cc] sm:$0xff]
        %v1091 = vld [vmem:[#allocation2 + $0x2d4] sm:$0xf]
        %v1092 = vld [vmem:[#allocation2 + $0x2d8] sm:$0xff]
        %v1093 = vld [vmem:[#allocation2 + $0x2e0] sm:$0xff]
        %v1094 = vld [vmem:[#allocation2 + $0x2e8] sm:$0xff]
        %v1095 = vld [vmem:[#allocation2 + $0x2f0] sm:$0xf]
        %v1096 = vld [vmem:[#allocation2 + $0x2f4] sm:$0xff]
        %v1097 = vld [vmem:[#allocation2 + $0x2fc] sm:$0xff]
        %v1098 = vld [vmem:[#allocation2 + $0x304] sm:$0xff]
        %v1099 = vld [vmem:[#allocation2 + $0x30c] sm:$0xf]
        %v1100 = vld [vmem:[#allocation2 + $0x310] sm:$0xff]
        %v1101 = vld [vmem:[#allocation2 + $0x318] sm:$0xff]
        %v1102 = vld [vmem:[#allocation2 + $0x320] sm:$0xff]
        %v1103 = vld [vmem:[#allocation2 + $0x328] sm:$0xf]
        %v1104 = vld [vmem:[#allocation2 + $0x32c] sm:$0xff]
        %v1105 = vld [vmem:[#allocation2 + $0x334] sm:$0xff]
        %v1106 = vld [vmem:[#allocation2 + $0x33c] sm:$0xff]
        %v1107 = vld [vmem:[#allocation2 + $0x344] sm:$0xf]
        %v1108 = vld [vmem:[#allocation2 + $0x348] sm:$0xff]
        %v1109 = vld [vmem:[#allocation2 + $0x350] sm:$0xff]
        %v1110 = vld [vmem:[#allocation2 + $0x358] sm:$0xff]
        %v1111 = vld [vmem:[#allocation2 + $0x360] sm:$0xf]
        %v1112 = vld [vmem:[#allocation2 + $0x364] sm:$0xff]
        %v1113 = vld [vmem:[#allocation2 + $0x36c] sm:$0xff]
        %v1114 = vld [vmem:[#allocation2 + $0x374] sm:$0xff]
        %v1115 = vld [vmem:[#allocation2 + $0x37c] sm:$0xf]
        %v1116 = vld [vmem:[#allocation2 + $0x380] sm:$0xff]
        %v1117 = vld [vmem:[#allocation2 + $0x388] sm:$0xff]
        %v1118 = vld [vmem:[#allocation2 + $0x390] sm:$0xff]
        %v1119 = vld [vmem:[#allocation2 + $0x398] sm:$0xf]
        %v1120 = vld [vmem:[#allocation2 + $0x39c] sm:$0xff]
        %v1121 = vld [vmem:[#allocation2 + $0x3a4] sm:$0xff]
        %v1122 = vld [vmem:[#allocation2 + $0x3ac] sm:$0xff]
        %v1123 = vld [vmem:[#allocation2 + $0x3b4] sm:$0xf]
        %v1124 = vld [vmem:[#allocation2 + $0x3b8] sm:$0xff]
        %v1125 = vld [vmem:[#allocation2 + $0x3c0] sm:$0xff]
        %v1126 = vld [vmem:[#allocation2 + $0x3c8] sm:$0xff]
        %v1127 = vld [vmem:[#allocation2 + $0x3d0] sm:$0xf]
        %v1128 = vld [vmem:[#allocation2 + $0x3d4] sm:$0xff]
        %v1129 = vld [vmem:[#allocation2 + $0x3dc] sm:$0xff]
        %v1130 = vld [vmem:[#allocation2 + $0x3e4] sm:$0xff]
        %v1131 = vld [vmem:[#allocation2 + $0x3ec] sm:$0xf]
        %v1132 = vld [vmem:[#allocation2 + $0x3f0] sm:$0xff]
        %v1133 = vld [vmem:[#allocation2 + $0x3f8] sm:$0xff]
        %v1134 = vld [vmem:[#allocation2 + $0x400] sm:$0xff]
        %v1135 = vld [vmem:[#allocation2 + $0x408] sm:$0xf]
        %v1136 = vld [vmem:[#allocation2 + $0x40c] sm:$0xff]
        %v1137 = vld [vmem:[#allocation2 + $0x414] sm:$0xff]
        %v1138 = vld [vmem:[#allocation2 + $0x41c] sm:$0xff]
        %v1139 = vld [vmem:[#allocation2 + $0x424] sm:$0xf]
        %v1140 = vld [vmem:[#allocation2 + $0x428] sm:$0xff]
        %v1141 = vld [vmem:[#allocation2 + $0x430] sm:$0xff]
        %v1142 = vld [vmem:[#allocation2 + $0x438] sm:$0xff]
        %v1143 = vld [vmem:[#allocation2 + $0x440] sm:$0xf]
        %v1144 = vld [vmem:[#allocation2 + $0x444] sm:$0xff]
        %v1145 = vld [vmem:[#allocation2 + $0x44c] sm:$0xff]
        %v1146 = vld [vmem:[#allocation2 + $0x454] sm:$0xff]
        %v1147 = vld [vmem:[#allocation2 + $0x45c] sm:$0xf]
        %v1148 = vld [vmem:[#allocation2 + $0x460] sm:$0xff]
        %v1149 = vld [vmem:[#allocation2 + $0x468] sm:$0xff]
        %v1150 = vld [vmem:[#allocation2 + $0x470] sm:$0xff]
        %v1151 = vld [vmem:[#allocation2 + $0x478] sm:$0xf]
        %v1152 = vld [vmem:[#allocation2 + $0x47c] sm:$0xff]
        %v1153 = vld [vmem:[#allocation2 + $0x484] sm:$0xff]
        %v1154 = vld [vmem:[#allocation2 + $0x48c] sm:$0xff]
        %v1155 = vld [vmem:[#allocation2 + $0x494] sm:$0xf]
        %v1156 = vld [vmem:[#allocation2 + $0x498] sm:$0xff]
        %v1157 = vld [vmem:[#allocation2 + $0x4a0] sm:$0xff]
        %v1158 = vld [vmem:[#allocation2 + $0x4a8] sm:$0xff]
        %v1159 = vld [vmem:[#allocation2 + $0x4b0] sm:$0xf]
        %v1160 = vld [vmem:[#allocation2 + $0x4b4] sm:$0xff]
        %v1161 = vld [vmem:[#allocation2 + $0x4bc] sm:$0xff]
        %v1162 = vld [vmem:[#allocation2 + $0x4c4] sm:$0xff]
        %v1163 = vld [vmem:[#allocation2 + $0x4cc] sm:$0xf]
        %v1164 = vld [vmem:[#allocation2 + $0x4d0] sm:$0xff]
        %v1165 = vld [vmem:[#allocation2 + $0x4d8] sm:$0xff]
        %v1166 = vld [vmem:[#allocation2 + $0x4e0] sm:$0xff]
        %v1167 = vld [vmem:[#allocation2 + $0x4e8] sm:$0xf]
        %v1168 = vld [vmem:[#allocation2 + $0x4ec] sm:$0xff]
        %v1169 = vld [vmem:[#allocation2 + $0x4f4] sm:$0xff]
        %v1170 = vld [vmem:[#allocation2 + $0x4fc] sm:$0xff]
        %v1171 = vld [vmem:[#allocation2 + $0x504] sm:$0xf]
        %v1172 = vld [vmem:[#allocation2 + $0x508] sm:$0xff]
        %v1173 = vld [vmem:[#allocation2 + $0x510] sm:$0xff]
        %v1174 = vld [vmem:[#allocation2 + $0x518] sm:$0xff]
        %v1175 = vld [vmem:[#allocation2 + $0x520] sm:$0xf]
        %v1176 = vld [vmem:[#allocation2 + $0x524] sm:$0xff]
        %v1177 = vld [vmem:[#allocation2 + $0x52c] sm:$0xff]
        %v1178 = vld [vmem:[#allocation2 + $0x534] sm:$0xff]
        %v1179 = vld [vmem:[#allocation2 + $0x53c] sm:$0xf]
        %v1180 = vld [vmem:[#allocation2 + $0x540] sm:$0xff]
        %v1181 = vld [vmem:[#allocation2 + $0x548] sm:$0xff]
        %v1182 = vld [vmem:[#allocation2 + $0x550] sm:$0xff]
        %v1183 = vld [vmem:[#allocation2 + $0x558] sm:$0xf]
        %v1184 = vld [vmem:[#allocation2 + $0x55c] sm:$0xff]
        %v1185 = vld [vmem:[#allocation2 + $0x564] sm:$0xff]
        %v1186 = vld [vmem:[#allocation2 + $0x56c] sm:$0xff]
        %v1187 = vld [vmem:[#allocation2 + $0x574] sm:$0xf]
        %v1188 = vld [vmem:[#allocation2 + $0x578] sm:$0xff]
        %v1189 = vld [vmem:[#allocation2 + $0x580] sm:$0xff]
        %v1190 = vld [vmem:[#allocation2 + $0x588] sm:$0xff]
        %v1191 = vld [vmem:[#allocation2 + $0x590] sm:$0xf]
        %v1192 = vld [vmem:[#allocation2 + $0x594] sm:$0xff]
        %v1193 = vld [vmem:[#allocation2 + $0x59c] sm:$0xff]
        %v1194 = vld [vmem:[#allocation2 + $0x5a4] sm:$0xff]
        %v1195 = vld [vmem:[#allocation2 + $0x5ac] sm:$0xf]
        %v1196 = vld [vmem:[#allocation2 + $0x5b0] sm:$0xff]
        %v1197 = vld [vmem:[#allocation2 + $0x5b8] sm:$0xff]
        %v1198 = vld [vmem:[#allocation2 + $0x5c0] sm:$0xff]
        %v1199 = vld [vmem:[#allocation2 + $0x5c8] sm:$0xf]
        %v1200 = vld [vmem:[#allocation2 + $0x5cc] sm:$0xff]
        %v1201 = vld [vmem:[#allocation2 + $0x5d4] sm:$0xff]
        %v1202 = vld [vmem:[#allocation2 + $0x5dc] sm:$0xff]
        %v1203 = vld [vmem:[#allocation2 + $0x5e4] sm:$0xf]
        %v1204 = vld [vmem:[#allocation2 + $0x5e8] sm:$0xff]
        %v1205 = vld [vmem:[#allocation2 + $0x5f0] sm:$0xff]
        %v1206 = vld [vmem:[#allocation2 + $0x5f8] sm:$0xff]
        %v1207 = vld [vmem:[#allocation2 + $0x600] sm:$0xf]
        %v1208 = vld [vmem:[#allocation2 + $0x604] sm:$0xff]
        %v1209 = vld [vmem:[#allocation2 + $0x60c] sm:$0xff]
        %v1210 = vld [vmem:[#allocation2 + $0x614] sm:$0xff]
        %v1211 = vld [vmem:[#allocation2 + $0x61c] sm:$0xf]
        %v1212 = vld [vmem:[#allocation2 + $0x620] sm:$0xff]
        %v1213 = vld [vmem:[#allocation2 + $0x628] sm:$0xff]
        %v1214 = vld [vmem:[#allocation2 + $0x630] sm:$0xff]
        %v1215 = vld [vmem:[#allocation2 + $0x638] sm:$0xf]
        %v1216 = vld [vmem:[#allocation2 + $0x63c] sm:$0xff]
        %v1217 = vld [vmem:[#allocation2 + $0x644] sm:$0xff]
        %v1218 = vld [vmem:[#allocation2 + $0x64c] sm:$0xff]
        %v1219 = vld [vmem:[#allocation2 + $0x654] sm:$0xf]
        %v1220 = vld [vmem:[#allocation2 + $0x658] sm:$0xff]
        %v1221 = vld [vmem:[#allocation2 + $0x660] sm:$0xff]
        %v1222 = vld [vmem:[#allocation2 + $0x668] sm:$0xff]
        %v1223 = vld [vmem:[#allocation2 + $0x670] sm:$0xf]
        %v1224 = vld [vmem:[#allocation2 + $0x674] sm:$0xff]
        %v1225 = vld [vmem:[#allocation2 + $0x67c] sm:$0xff]
        %v1226 = vld [vmem:[#allocation2 + $0x684] sm:$0xff]
        %v1227 = vld [vmem:[#allocation2 + $0x68c] sm:$0xf]
        %v1228 = vld [vmem:[#allocation2 + $0x690] sm:$0xff]
        %v1229 = vld [vmem:[#allocation2 + $0x698] sm:$0xff]
        %v1230 = vld [vmem:[#allocation2 + $0x6a0] sm:$0xff]
        %v1231 = vld [vmem:[#allocation2 + $0x6a8] sm:$0xf]
        %v1232 = vld [vmem:[#allocation2 + $0x6ac] sm:$0xff]
        %v1233 = vld [vmem:[#allocation2 + $0x6b4] sm:$0xff]
        %v1234 = vld [vmem:[#allocation2 + $0x6bc] sm:$0xff]
        %v1235 = vld [vmem:[#allocation2 + $0x6c4] sm:$0xf]
        %v1236 = vld [vmem:[#allocation2 + $0x6c8] sm:$0xff]
        %v1237 = vld [vmem:[#allocation2 + $0x6d0] sm:$0xff]
        %v1238 = vld [vmem:[#allocation2 + $0x6d8] sm:$0xff]
        %v1239 = vld [vmem:[#allocation2 + $0x6e0] sm:$0xf]
        %v1240 = vld [vmem:[#allocation2 + $0x6e4] sm:$0xff]
        %v1241 = vld [vmem:[#allocation2 + $0x6ec] sm:$0xff]
        %v1242 = vld [vmem:[#allocation2 + $0x6f4] sm:$0xff]
        %v1243 = vld [vmem:[#allocation2 + $0x6fc] sm:$0xf]
        %v1244 = vld [vmem:[%s4] sm:$0xff]
        %v1246 = vlaneseq
        %v1247 = vshrl.u32 %v1246, 7
        %v1248 = vsub.s32 0, %v1247
        %v1249 = vrot.slane %v1244, %v1248
        %v1250 = vlaneseq
        %v1251 = vshrl.u32 %v1250, 7
        %v1252 = vsub.s32 1, %v1251
        %v1253 = vrot.slane %v1244, %v1252
        %v1254 = vlaneseq
        %v1255 = vshrl.u32 %v1254, 7
        %v1256 = vsub.s32 2, %v1255
        %v1257 = vrot.slane %v1244, %v1256
        %v1258 = vlaneseq
        %v1259 = vshrl.u32 %v1258, 7
        %v1260 = vsub.s32 3, %v1259
        %v1261 = vrot.slane %v1244, %v1260
        %v1262 = vlaneseq
        %v1263 = vshrl.u32 %v1262, 7
        %v1264 = vsub.s32 4, %v1263
        %v1265 = vrot.slane %v1244, %v1264
        %v1266 = vlaneseq
        %v1267 = vshrl.u32 %v1266, 7
        %v1268 = vsub.s32 5, %v1267
        %v1269 = vrot.slane %v1244, %v1268
        %v1270 = vlaneseq
        %v1271 = vshrl.u32 %v1270, 7
        %v1272 = vsub.s32 6, %v1271
        %v1273 = vrot.slane %v1244, %v1272
        %v1537 = vunpack.c.l.b16 %v988
        %v1538 = vunpack.c.h.b16 %v988
        %v1539 = vunpack.c.l.b16 %v989
        %v1540 = vunpack.c.h.b16 %v989
        %v1541 = vunpack.c.l.b16 %v990
        %v1542 = vunpack.c.h.b16 %v990
        %v1543 = vunpack.c.l.b16 %v991
        %v1544 = vunpack.c.l.b16 %v992
        %v1545 = vunpack.c.h.b16 %v992
        %v1546 = vunpack.c.l.b16 %v993
        %v1547 = vunpack.c.h.b16 %v993
        %v1548 = vunpack.c.l.b16 %v994
        %v1549 = vunpack.c.h.b16 %v994
        %v1550 = vunpack.c.l.b16 %v995
        %v1551 = vunpack.c.l.b16 %v996
        %v1552 = vunpack.c.h.b16 %v996
        %v1553 = vunpack.c.l.b16 %v997
        %v1554 = vunpack.c.h.b16 %v997
        %v1555 = vunpack.c.l.b16 %v998
        %v1556 = vunpack.c.h.b16 %v998
        %v1557 = vunpack.c.l.b16 %v999
        %v1558 = vunpack.c.l.b16 %v1000
        %v1559 = vunpack.c.h.b16 %v1000
        %v1560 = vunpack.c.l.b16 %v1001
        %v1561 = vunpack.c.h.b16 %v1001
        %v1562 = vunpack.c.l.b16 %v1002
        %v1563 = vunpack.c.h.b16 %v1002
        %v1564 = vunpack.c.l.b16 %v1003
        %v1565 = vunpack.c.l.b16 %v1004
        %v1566 = vunpack.c.h.b16 %v1004
        %v1567 = vunpack.c.l.b16 %v1005
        %v1568 = vunpack.c.h.b16 %v1005
        %v1569 = vunpack.c.l.b16 %v1006
        %v1570 = vunpack.c.h.b16 %v1006
        %v1571 = vunpack.c.l.b16 %v1007
        %v1572 = vunpack.c.l.b16 %v1008
        %v1573 = vunpack.c.h.b16 %v1008
        %v1574 = vunpack.c.l.b16 %v1009
        %v1575 = vunpack.c.h.b16 %v1009
        %v1576 = vunpack.c.l.b16 %v1010
        %v1577 = vunpack.c.h.b16 %v1010
        %v1578 = vunpack.c.l.b16 %v1011
        %v1579 = vunpack.c.l.b16 %v1012
        %v1580 = vunpack.c.h.b16 %v1012
        %v1581 = vunpack.c.l.b16 %v1013
        %v1582 = vunpack.c.h.b16 %v1013
        %v1583 = vunpack.c.l.b16 %v1014
        %v1584 = vunpack.c.h.b16 %v1014
        %v1585 = vunpack.c.l.b16 %v1015
        %v1586 = vunpack.c.l.b16 %v1016
        %v1587 = vunpack.c.h.b16 %v1016
        %v1588 = vunpack.c.l.b16 %v1017
        %v1589 = vunpack.c.h.b16 %v1017
        %v1590 = vunpack.c.l.b16 %v1018
        %v1591 = vunpack.c.h.b16 %v1018
        %v1592 = vunpack.c.l.b16 %v1019
        %v1593 = vunpack.c.l.b16 %v1020
        %v1594 = vunpack.c.h.b16 %v1020
        %v1595 = vunpack.c.l.b16 %v1021
        %v1596 = vunpack.c.h.b16 %v1021
        %v1597 = vunpack.c.l.b16 %v1022
        %v1598 = vunpack.c.h.b16 %v1022
        %v1599 = vunpack.c.l.b16 %v1023
        %v1600 = vunpack.c.l.b16 %v1024
        %v1601 = vunpack.c.h.b16 %v1024
        %v1602 = vunpack.c.l.b16 %v1025
        %v1603 = vunpack.c.h.b16 %v1025
        %v1604 = vunpack.c.l.b16 %v1026
        %v1605 = vunpack.c.h.b16 %v1026
        %v1606 = vunpack.c.l.b16 %v1027
        %v1607 = vunpack.c.l.b16 %v1028
        %v1608 = vunpack.c.h.b16 %v1028
        %v1609 = vunpack.c.l.b16 %v1029
        %v1610 = vunpack.c.h.b16 %v1029
        %v1611 = vunpack.c.l.b16 %v1030
        %v1612 = vunpack.c.h.b16 %v1030
        %v1613 = vunpack.c.l.b16 %v1031
        %v1614 = vunpack.c.l.b16 %v1032
        %v1615 = vunpack.c.h.b16 %v1032
        %v1616 = vunpack.c.l.b16 %v1033
        %v1617 = vunpack.c.h.b16 %v1033
        %v1618 = vunpack.c.l.b16 %v1034
        %v1619 = vunpack.c.h.b16 %v1034
        %v1620 = vunpack.c.l.b16 %v1035
        %v1621 = vunpack.c.l.b16 %v1036
        %v1622 = vunpack.c.h.b16 %v1036
        %v1623 = vunpack.c.l.b16 %v1037
        %v1624 = vunpack.c.h.b16 %v1037
        %v1625 = vunpack.c.l.b16 %v1038
        %v1626 = vunpack.c.h.b16 %v1038
        %v1627 = vunpack.c.l.b16 %v1039
        %v1628 = vunpack.c.l.b16 %v1040
        %v1629 = vunpack.c.h.b16 %v1040
        %v1630 = vunpack.c.l.b16 %v1041
        %v1631 = vunpack.c.h.b16 %v1041
        %v1632 = vunpack.c.l.b16 %v1042
        %v1633 = vunpack.c.h.b16 %v1042
        %v1634 = vunpack.c.l.b16 %v1043
        %v1635 = vunpack.c.l.b16 %v1044
        %v1636 = vunpack.c.h.b16 %v1044
        %v1637 = vunpack.c.l.b16 %v1045
        %v1638 = vunpack.c.h.b16 %v1045
        %v1639 = vunpack.c.l.b16 %v1046
        %v1640 = vunpack.c.h.b16 %v1046
        %v1641 = vunpack.c.l.b16 %v1047
        %v1642 = vunpack.c.l.b16 %v1048
        %v1643 = vunpack.c.h.b16 %v1048
        %v1644 = vunpack.c.l.b16 %v1049
        %v1645 = vunpack.c.h.b16 %v1049
        %v1646 = vunpack.c.l.b16 %v1050
        %v1647 = vunpack.c.h.b16 %v1050
        %v1648 = vunpack.c.l.b16 %v1051
        %v1649 = vunpack.c.l.b16 %v1052
        %v1650 = vunpack.c.h.b16 %v1052
        %v1651 = vunpack.c.l.b16 %v1053
        %v1652 = vunpack.c.h.b16 %v1053
        %v1653 = vunpack.c.l.b16 %v1054
        %v1654 = vunpack.c.h.b16 %v1054
        %v1655 = vunpack.c.l.b16 %v1055
        %v1656 = vunpack.c.l.b16 %v1056
        %v1657 = vunpack.c.h.b16 %v1056
        %v1658 = vunpack.c.l.b16 %v1057
        %v1659 = vunpack.c.h.b16 %v1057
        %v1660 = vunpack.c.l.b16 %v1058
        %v1661 = vunpack.c.h.b16 %v1058
        %v1662 = vunpack.c.l.b16 %v1059
        %v1663 = vunpack.c.l.b16 %v1060
        %v1664 = vunpack.c.h.b16 %v1060
        %v1665 = vunpack.c.l.b16 %v1061
        %v1666 = vunpack.c.h.b16 %v1061
        %v1667 = vunpack.c.l.b16 %v1062
        %v1668 = vunpack.c.h.b16 %v1062
        %v1669 = vunpack.c.l.b16 %v1063
        %v1670 = vunpack.c.l.b16 %v1064
        %v1671 = vunpack.c.h.b16 %v1064
        %v1672 = vunpack.c.l.b16 %v1065
        %v1673 = vunpack.c.h.b16 %v1065
        %v1674 = vunpack.c.l.b16 %v1066
        %v1675 = vunpack.c.h.b16 %v1066
        %v1676 = vunpack.c.l.b16 %v1067
        %v1677 = vunpack.c.l.b16 %v1068
        %v1678 = vunpack.c.h.b16 %v1068
        %v1679 = vunpack.c.l.b16 %v1069
        %v1680 = vunpack.c.h.b16 %v1069
        %v1681 = vunpack.c.l.b16 %v1070
        %v1682 = vunpack.c.h.b16 %v1070
        %v1683 = vunpack.c.l.b16 %v1071
        %v1684 = vunpack.c.l.b16 %v1072
        %v1685 = vunpack.c.h.b16 %v1072
        %v1686 = vunpack.c.l.b16 %v1073
        %v1687 = vunpack.c.h.b16 %v1073
        %v1688 = vunpack.c.l.b16 %v1074
        %v1689 = vunpack.c.h.b16 %v1074
        %v1690 = vunpack.c.l.b16 %v1075
        %v1691 = vunpack.c.l.b16 %v1076
        %v1692 = vunpack.c.h.b16 %v1076
        %v1693 = vunpack.c.l.b16 %v1077
        %v1694 = vunpack.c.h.b16 %v1077
        %v1695 = vunpack.c.l.b16 %v1078
        %v1696 = vunpack.c.h.b16 %v1078
        %v1697 = vunpack.c.l.b16 %v1079
        %v1698 = vunpack.c.l.b16 %v1080
        %v1699 = vunpack.c.h.b16 %v1080
        %v1700 = vunpack.c.l.b16 %v1081
        %v1701 = vunpack.c.h.b16 %v1081
        %v1702 = vunpack.c.l.b16 %v1082
        %v1703 = vunpack.c.h.b16 %v1082
        %v1704 = vunpack.c.l.b16 %v1083
        %v1705 = vunpack.c.l.b16 %v1084
        %v1706 = vunpack.c.h.b16 %v1084
        %v1707 = vunpack.c.l.b16 %v1085
        %v1708 = vunpack.c.h.b16 %v1085
        %v1709 = vunpack.c.l.b16 %v1086
        %v1710 = vunpack.c.h.b16 %v1086
        %v1711 = vunpack.c.l.b16 %v1087
        %v1712 = vunpack.c.l.b16 %v1088
        %v1713 = vunpack.c.h.b16 %v1088
        %v1714 = vunpack.c.l.b16 %v1089
        %v1715 = vunpack.c.h.b16 %v1089
        %v1716 = vunpack.c.l.b16 %v1090
        %v1717 = vunpack.c.h.b16 %v1090
        %v1718 = vunpack.c.l.b16 %v1091
        %v1719 = vunpack.c.l.b16 %v1092
        %v1720 = vunpack.c.h.b16 %v1092
        %v1721 = vunpack.c.l.b16 %v1093
        %v1722 = vunpack.c.h.b16 %v1093
        %v1723 = vunpack.c.l.b16 %v1094
        %v1724 = vunpack.c.h.b16 %v1094
        %v1725 = vunpack.c.l.b16 %v1095
        %v1726 = vunpack.c.l.b16 %v1096
        %v1727 = vunpack.c.h.b16 %v1096
        %v1728 = vunpack.c.l.b16 %v1097
        %v1729 = vunpack.c.h.b16 %v1097
        %v1730 = vunpack.c.l.b16 %v1098
        %v1731 = vunpack.c.h.b16 %v1098
        %v1732 = vunpack.c.l.b16 %v1099
        %v1733 = vunpack.c.l.b16 %v1100
        %v1734 = vunpack.c.h.b16 %v1100
        %v1735 = vunpack.c.l.b16 %v1101
        %v1736 = vunpack.c.h.b16 %v1101
        %v1737 = vunpack.c.l.b16 %v1102
        %v1738 = vunpack.c.h.b16 %v1102
        %v1739 = vunpack.c.l.b16 %v1103
        %v1740 = vunpack.c.l.b16 %v1104
        %v1741 = vunpack.c.h.b16 %v1104
        %v1742 = vunpack.c.l.b16 %v1105
        %v1743 = vunpack.c.h.b16 %v1105
        %v1744 = vunpack.c.l.b16 %v1106
        %v1745 = vunpack.c.h.b16 %v1106
        %v1746 = vunpack.c.l.b16 %v1107
        %v1747 = vunpack.c.l.b16 %v1108
        %v1748 = vunpack.c.h.b16 %v1108
        %v1749 = vunpack.c.l.b16 %v1109
        %v1750 = vunpack.c.h.b16 %v1109
        %v1751 = vunpack.c.l.b16 %v1110
        %v1752 = vunpack.c.h.b16 %v1110
        %v1753 = vunpack.c.l.b16 %v1111
        %v1754 = vunpack.c.l.b16 %v1112
        %v1755 = vunpack.c.h.b16 %v1112
        %v1756 = vunpack.c.l.b16 %v1113
        %v1757 = vunpack.c.h.b16 %v1113
        %v1758 = vunpack.c.l.b16 %v1114
        %v1759 = vunpack.c.h.b16 %v1114
        %v1760 = vunpack.c.l.b16 %v1115
        %v1761 = vunpack.c.l.b16 %v1116
        %v1762 = vunpack.c.h.b16 %v1116
        %v1763 = vunpack.c.l.b16 %v1117
        %v1764 = vunpack.c.h.b16 %v1117
        %v1765 = vunpack.c.l.b16 %v1118
        %v1766 = vunpack.c.h.b16 %v1118
        %v1767 = vunpack.c.l.b16 %v1119
        %v1768 = vunpack.c.l.b16 %v1120
        %v1769 = vunpack.c.h.b16 %v1120
        %v1770 = vunpack.c.l.b16 %v1121
        %v1771 = vunpack.c.h.b16 %v1121
        %v1772 = vunpack.c.l.b16 %v1122
        %v1773 = vunpack.c.h.b16 %v1122
        %v1774 = vunpack.c.l.b16 %v1123
        %v1775 = vunpack.c.l.b16 %v1124
        %v1776 = vunpack.c.h.b16 %v1124
        %v1777 = vunpack.c.l.b16 %v1125
        %v1778 = vunpack.c.h.b16 %v1125
        %v1779 = vunpack.c.l.b16 %v1126
        %v1780 = vunpack.c.h.b16 %v1126
        %v1781 = vunpack.c.l.b16 %v1127
        %v1782 = vunpack.c.l.b16 %v1128
        %v1783 = vunpack.c.h.b16 %v1128
        %v1784 = vunpack.c.l.b16 %v1129
        %v1785 = vunpack.c.h.b16 %v1129
        %v1786 = vunpack.c.l.b16 %v1130
        %v1787 = vunpack.c.h.b16 %v1130
        %v1788 = vunpack.c.l.b16 %v1131
        %v1789 = vunpack.c.l.b16 %v1132
        %v1790 = vunpack.c.h.b16 %v1132
        %v1791 = vunpack.c.l.b16 %v1133
        %v1792 = vunpack.c.h.b16 %v1133
        %v1793 = vunpack.c.l.b16 %v1134
        %v1794 = vunpack.c.h.b16 %v1134
        %v1795 = vunpack.c.l.b16 %v1135
        %v1796 = vunpack.c.l.b16 %v1136
        %v1797 = vunpack.c.h.b16 %v1136
        %v1798 = vunpack.c.l.b16 %v1137
        %v1799 = vunpack.c.h.b16 %v1137
        %v1800 = vunpack.c.l.b16 %v1138
        %v1801 = vunpack.c.h.b16 %v1138
        %v1802 = vunpack.c.l.b16 %v1139
        %v1803 = vunpack.c.l.b16 %v1140
        %v1804 = vunpack.c.h.b16 %v1140
        %v1805 = vunpack.c.l.b16 %v1141
        %v1806 = vunpack.c.h.b16 %v1141
        %v1807 = vunpack.c.l.b16 %v1142
        %v1808 = vunpack.c.h.b16 %v1142
        %v1809 = vunpack.c.l.b16 %v1143
        %v1810 = vunpack.c.l.b16 %v1144
        %v1811 = vunpack.c.h.b16 %v1144
        %v1812 = vunpack.c.l.b16 %v1145
        %v1813 = vunpack.c.h.b16 %v1145
        %v1814 = vunpack.c.l.b16 %v1146
        %v1815 = vunpack.c.h.b16 %v1146
        %v1816 = vunpack.c.l.b16 %v1147
        %v1817 = vunpack.c.l.b16 %v1148
        %v1818 = vunpack.c.h.b16 %v1148
        %v1819 = vunpack.c.l.b16 %v1149
        %v1820 = vunpack.c.h.b16 %v1149
        %v1821 = vunpack.c.l.b16 %v1150
        %v1822 = vunpack.c.h.b16 %v1150
        %v1823 = vunpack.c.l.b16 %v1151
        %v1824 = vunpack.c.l.b16 %v1152
        %v1825 = vunpack.c.h.b16 %v1152
        %v1826 = vunpack.c.l.b16 %v1153
        %v1827 = vunpack.c.h.b16 %v1153
        %v1828 = vunpack.c.l.b16 %v1154
        %v1829 = vunpack.c.h.b16 %v1154
        %v1830 = vunpack.c.l.b16 %v1155
        %v1831 = vunpack.c.l.b16 %v1156
        %v1832 = vunpack.c.h.b16 %v1156
        %v1833 = vunpack.c.l.b16 %v1157
        %v1834 = vunpack.c.h.b16 %v1157
        %v1835 = vunpack.c.l.b16 %v1158
        %v1836 = vunpack.c.h.b16 %v1158
        %v1837 = vunpack.c.l.b16 %v1159
        %v1838 = vunpack.c.l.b16 %v1160
        %v1839 = vunpack.c.h.b16 %v1160
        %v1840 = vunpack.c.l.b16 %v1161
        %v1841 = vunpack.c.h.b16 %v1161
        %v1842 = vunpack.c.l.b16 %v1162
        %v1843 = vunpack.c.h.b16 %v1162
        %v1844 = vunpack.c.l.b16 %v1163
        %v1845 = vunpack.c.l.b16 %v1164
        %v1846 = vunpack.c.h.b16 %v1164
        %v1847 = vunpack.c.l.b16 %v1165
        %v1848 = vunpack.c.h.b16 %v1165
        %v1849 = vunpack.c.l.b16 %v1166
        %v1850 = vunpack.c.h.b16 %v1166
        %v1851 = vunpack.c.l.b16 %v1167
        %v1852 = vunpack.c.l.b16 %v1168
        %v1853 = vunpack.c.h.b16 %v1168
        %v1854 = vunpack.c.l.b16 %v1169
        %v1855 = vunpack.c.h.b16 %v1169
        %v1856 = vunpack.c.l.b16 %v1170
        %v1857 = vunpack.c.h.b16 %v1170
        %v1858 = vunpack.c.l.b16 %v1171
        %v1859 = vunpack.c.l.b16 %v1172
        %v1860 = vunpack.c.h.b16 %v1172
        %v1861 = vunpack.c.l.b16 %v1173
        %v1862 = vunpack.c.h.b16 %v1173
        %v1863 = vunpack.c.l.b16 %v1174
        %v1864 = vunpack.c.h.b16 %v1174
        %v1865 = vunpack.c.l.b16 %v1175
        %v1866 = vunpack.c.l.b16 %v1176
        %v1867 = vunpack.c.h.b16 %v1176
        %v1868 = vunpack.c.l.b16 %v1177
        %v1869 = vunpack.c.h.b16 %v1177
        %v1870 = vunpack.c.l.b16 %v1178
        %v1871 = vunpack.c.h.b16 %v1178
        %v1872 = vunpack.c.l.b16 %v1179
        %v1873 = vunpack.c.l.b16 %v1180
        %v1874 = vunpack.c.h.b16 %v1180
        %v1875 = vunpack.c.l.b16 %v1181
        %v1876 = vunpack.c.h.b16 %v1181
        %v1877 = vunpack.c.l.b16 %v1182
        %v1878 = vunpack.c.h.b16 %v1182
        %v1879 = vunpack.c.l.b16 %v1183
        %v1880 = vunpack.c.l.b16 %v1184
        %v1881 = vunpack.c.h.b16 %v1184
        %v1882 = vunpack.c.l.b16 %v1185
        %v1883 = vunpack.c.h.b16 %v1185
        %v1884 = vunpack.c.l.b16 %v1186
        %v1885 = vunpack.c.h.b16 %v1186
        %v1886 = vunpack.c.l.b16 %v1187
        %v1887 = vunpack.c.l.b16 %v1188
        %v1888 = vunpack.c.h.b16 %v1188
        %v1889 = vunpack.c.l.b16 %v1189
        %v1890 = vunpack.c.h.b16 %v1189
        %v1891 = vunpack.c.l.b16 %v1190
        %v1892 = vunpack.c.h.b16 %v1190
        %v1893 = vunpack.c.l.b16 %v1191
        %v1894 = vunpack.c.l.b16 %v1192
        %v1895 = vunpack.c.h.b16 %v1192
        %v1896 = vunpack.c.l.b16 %v1193
        %v1897 = vunpack.c.h.b16 %v1193
        %v1898 = vunpack.c.l.b16 %v1194
        %v1899 = vunpack.c.h.b16 %v1194
        %v1900 = vunpack.c.l.b16 %v1195
        %v1901 = vunpack.c.l.b16 %v1196
        %v1902 = vunpack.c.h.b16 %v1196
        %v1903 = vunpack.c.l.b16 %v1197
        %v1904 = vunpack.c.h.b16 %v1197
        %v1905 = vunpack.c.l.b16 %v1198
        %v1906 = vunpack.c.h.b16 %v1198
        %v1907 = vunpack.c.l.b16 %v1199
        %v1908 = vunpack.c.l.b16 %v1200
        %v1909 = vunpack.c.h.b16 %v1200
        %v1910 = vunpack.c.l.b16 %v1201
        %v1911 = vunpack.c.h.b16 %v1201
        %v1912 = vunpack.c.l.b16 %v1202
        %v1913 = vunpack.c.h.b16 %v1202
        %v1914 = vunpack.c.l.b16 %v1203
        %v1915 = vunpack.c.l.b16 %v1204
        %v1916 = vunpack.c.h.b16 %v1204
        %v1917 = vunpack.c.l.b16 %v1205
        %v1918 = vunpack.c.h.b16 %v1205
        %v1919 = vunpack.c.l.b16 %v1206
        %v1920 = vunpack.c.h.b16 %v1206
        %v1921 = vunpack.c.l.b16 %v1207
        %v1922 = vunpack.c.l.b16 %v1208
        %v1923 = vunpack.c.h.b16 %v1208
        %v1924 = vunpack.c.l.b16 %v1209
        %v1925 = vunpack.c.h.b16 %v1209
        %v1926 = vunpack.c.l.b16 %v1210
        %v1927 = vunpack.c.h.b16 %v1210
        %v1928 = vunpack.c.l.b16 %v1211
        %v1929 = vunpack.c.l.b16 %v1212
        %v1930 = vunpack.c.h.b16 %v1212
        %v1931 = vunpack.c.l.b16 %v1213
        %v1932 = vunpack.c.h.b16 %v1213
        %v1933 = vunpack.c.l.b16 %v1214
        %v1934 = vunpack.c.h.b16 %v1214
        %v1935 = vunpack.c.l.b16 %v1215
        %v1936 = vunpack.c.l.b16 %v1216
        %v1937 = vunpack.c.h.b16 %v1216
        %v1938 = vunpack.c.l.b16 %v1217
        %v1939 = vunpack.c.h.b16 %v1217
        %v1940 = vunpack.c.l.b16 %v1218
        %v1941 = vunpack.c.h.b16 %v1218
        %v1942 = vunpack.c.l.b16 %v1219
        %v1943 = vunpack.c.l.b16 %v1220
        %v1944 = vunpack.c.h.b16 %v1220
        %v1945 = vunpack.c.l.b16 %v1221
        %v1946 = vunpack.c.h.b16 %v1221
        %v1947 = vunpack.c.l.b16 %v1222
        %v1948 = vunpack.c.h.b16 %v1222
        %v1949 = vunpack.c.l.b16 %v1223
        %v1950 = vunpack.c.l.b16 %v1224
        %v1951 = vunpack.c.h.b16 %v1224
        %v1952 = vunpack.c.l.b16 %v1225
        %v1953 = vunpack.c.h.b16 %v1225
        %v1954 = vunpack.c.l.b16 %v1226
        %v1955 = vunpack.c.h.b16 %v1226
        %v1956 = vunpack.c.l.b16 %v1227
        %v1957 = vunpack.c.l.b16 %v1228
        %v1958 = vunpack.c.h.b16 %v1228
        %v1959 = vunpack.c.l.b16 %v1229
        %v1960 = vunpack.c.h.b16 %v1229
        %v1961 = vunpack.c.l.b16 %v1230
        %v1962 = vunpack.c.h.b16 %v1230
        %v1963 = vunpack.c.l.b16 %v1231
        %v1964 = vunpack.c.l.b16 %v1232
        %v1965 = vunpack.c.h.b16 %v1232
        %v1966 = vunpack.c.l.b16 %v1233
        %v1967 = vunpack.c.h.b16 %v1233
        %v1968 = vunpack.c.l.b16 %v1234
        %v1969 = vunpack.c.h.b16 %v1234
        %v1970 = vunpack.c.l.b16 %v1235
        %v1971 = vunpack.c.l.b16 %v1236
        %v1972 = vunpack.c.h.b16 %v1236
        %v1973 = vunpack.c.l.b16 %v1237
        %v1974 = vunpack.c.h.b16 %v1237
        %v1975 = vunpack.c.l.b16 %v1238
        %v1976 = vunpack.c.h.b16 %v1238
        %v1977 = vunpack.c.l.b16 %v1239
        %v1978 = vunpack.c.l.b16 %v1240
        %v1979 = vunpack.c.h.b16 %v1240
        %v1980 = vunpack.c.l.b16 %v1241
        %v1981 = vunpack.c.h.b16 %v1241
        %v1982 = vunpack.c.l.b16 %v1242
        %v1983 = vunpack.c.h.b16 %v1242
        %v1984 = vunpack.c.l.b16 %v1243
        %v1985 = vpack.c.b16 %v1544, %v1537
        %v1986 = vpack.c.b16 %v1545, %v1538
        %v1987 = vpack.c.b16 %v1546, %v1539
        %v1988 = vpack.c.b16 %v1547, %v1540
        %v1989 = vpack.c.b16 %v1548, %v1541
        %v1990 = vpack.c.b16 %v1549, %v1542
        %v1991 = vpack.c.b16 %v1550, %v1543
        %v1992 = vpack.c.b16 %v1558, %v1551
        %v1993 = vpack.c.b16 %v1559, %v1552
        %v1994 = vpack.c.b16 %v1560, %v1553
        %v1995 = vpack.c.b16 %v1561, %v1554
        %v1996 = vpack.c.b16 %v1562, %v1555
        %v1997 = vpack.c.b16 %v1563, %v1556
        %v1998 = vpack.c.b16 %v1564, %v1557
        %v1999 = vpack.c.b16 %v1572, %v1565
        %v2000 = vpack.c.b16 %v1573, %v1566
        %v2001 = vpack.c.b16 %v1574, %v1567
        %v2002 = vpack.c.b16 %v1575, %v1568
        %v2003 = vpack.c.b16 %v1576, %v1569
        %v2004 = vpack.c.b16 %v1577, %v1570
        %v2005 = vpack.c.b16 %v1578, %v1571
        %v2006 = vpack.c.b16 %v1586, %v1579
        %v2007 = vpack.c.b16 %v1587, %v1580
        %v2008 = vpack.c.b16 %v1588, %v1581
        %v2009 = vpack.c.b16 %v1589, %v1582
        %v2010 = vpack.c.b16 %v1590, %v1583
        %v2011 = vpack.c.b16 %v1591, %v1584
        %v2012 = vpack.c.b16 %v1592, %v1585
        %v2013 = vpack.c.b16 %v1600, %v1593
        %v2014 = vpack.c.b16 %v1601, %v1594
        %v2015 = vpack.c.b16 %v1602, %v1595
        %v2016 = vpack.c.b16 %v1603, %v1596
        %v2017 = vpack.c.b16 %v1604, %v1597
        %v2018 = vpack.c.b16 %v1605, %v1598
        %v2019 = vpack.c.b16 %v1606, %v1599
        %v2020 = vpack.c.b16 %v1614, %v1607
        %v2021 = vpack.c.b16 %v1615, %v1608
        %v2022 = vpack.c.b16 %v1616, %v1609
        %v2023 = vpack.c.b16 %v1617, %v1610
        %v2024 = vpack.c.b16 %v1618, %v1611
        %v2025 = vpack.c.b16 %v1619, %v1612
        %v2026 = vpack.c.b16 %v1620, %v1613
        %v2027 = vpack.c.b16 %v1628, %v1621
        %v2028 = vpack.c.b16 %v1629, %v1622
        %v2029 = vpack.c.b16 %v1630, %v1623
        %v2030 = vpack.c.b16 %v1631, %v1624
        %v2031 = vpack.c.b16 %v1632, %v1625
        %v2032 = vpack.c.b16 %v1633, %v1626
        %v2033 = vpack.c.b16 %v1634, %v1627
        %v2034 = vpack.c.b16 %v1642, %v1635
        %v2035 = vpack.c.b16 %v1643, %v1636
        %v2036 = vpack.c.b16 %v1644, %v1637
        %v2037 = vpack.c.b16 %v1645, %v1638
        %v2038 = vpack.c.b16 %v1646, %v1639
        %v2039 = vpack.c.b16 %v1647, %v1640
        %v2040 = vpack.c.b16 %v1648, %v1641
        %v2041 = vpack.c.b16 %v1656, %v1649
        %v2042 = vpack.c.b16 %v1657, %v1650
        %v2043 = vpack.c.b16 %v1658, %v1651
        %v2044 = vpack.c.b16 %v1659, %v1652
        %v2045 = vpack.c.b16 %v1660, %v1653
        %v2046 = vpack.c.b16 %v1661, %v1654
        %v2047 = vpack.c.b16 %v1662, %v1655
        %v2048 = vpack.c.b16 %v1670, %v1663
        %v2049 = vpack.c.b16 %v1671, %v1664
        %v2050 = vpack.c.b16 %v1672, %v1665
        %v2051 = vpack.c.b16 %v1673, %v1666
        %v2052 = vpack.c.b16 %v1674, %v1667
        %v2053 = vpack.c.b16 %v1675, %v1668
        %v2054 = vpack.c.b16 %v1676, %v1669
        %v2055 = vpack.c.b16 %v1684, %v1677
        %v2056 = vpack.c.b16 %v1685, %v1678
        %v2057 = vpack.c.b16 %v1686, %v1679
        %v2058 = vpack.c.b16 %v1687, %v1680
        %v2059 = vpack.c.b16 %v1688, %v1681
        %v2060 = vpack.c.b16 %v1689, %v1682
        %v2061 = vpack.c.b16 %v1690, %v1683
        %v2062 = vpack.c.b16 %v1698, %v1691
        %v2063 = vpack.c.b16 %v1699, %v1692
        %v2064 = vpack.c.b16 %v1700, %v1693
        %v2065 = vpack.c.b16 %v1701, %v1694
        %v2066 = vpack.c.b16 %v1702, %v1695
        %v2067 = vpack.c.b16 %v1703, %v1696
        %v2068 = vpack.c.b16 %v1704, %v1697
        %v2069 = vpack.c.b16 %v1712, %v1705
        %v2070 = vpack.c.b16 %v1713, %v1706
        %v2071 = vpack.c.b16 %v1714, %v1707
        %v2072 = vpack.c.b16 %v1715, %v1708
        %v2073 = vpack.c.b16 %v1716, %v1709
        %v2074 = vpack.c.b16 %v1717, %v1710
        %v2075 = vpack.c.b16 %v1718, %v1711
        %v2076 = vpack.c.b16 %v1726, %v1719
        %v2077 = vpack.c.b16 %v1727, %v1720
        %v2078 = vpack.c.b16 %v1728, %v1721
        %v2079 = vpack.c.b16 %v1729, %v1722
        %v2080 = vpack.c.b16 %v1730, %v1723
        %v2081 = vpack.c.b16 %v1731, %v1724
        %v2082 = vpack.c.b16 %v1732, %v1725
        %v2083 = vpack.c.b16 %v1740, %v1733
        %v2084 = vpack.c.b16 %v1741, %v1734
        %v2085 = vpack.c.b16 %v1742, %v1735
        %v2086 = vpack.c.b16 %v1743, %v1736
        %v2087 = vpack.c.b16 %v1744, %v1737
        %v2088 = vpack.c.b16 %v1745, %v1738
        %v2089 = vpack.c.b16 %v1746, %v1739
        %v2090 = vpack.c.b16 %v1754, %v1747
        %v2091 = vpack.c.b16 %v1755, %v1748
        %v2092 = vpack.c.b16 %v1756, %v1749
        %v2093 = vpack.c.b16 %v1757, %v1750
        %v2094 = vpack.c.b16 %v1758, %v1751
        %v2095 = vpack.c.b16 %v1759, %v1752
        %v2096 = vpack.c.b16 %v1760, %v1753
        %v2097 = vpack.c.b16 %v1768, %v1761
        %v2098 = vpack.c.b16 %v1769, %v1762
        %v2099 = vpack.c.b16 %v1770, %v1763
        %v2100 = vpack.c.b16 %v1771, %v1764
        %v2101 = vpack.c.b16 %v1772, %v1765
        %v2102 = vpack.c.b16 %v1773, %v1766
        %v2103 = vpack.c.b16 %v1774, %v1767
        %v2104 = vpack.c.b16 %v1782, %v1775
        %v2105 = vpack.c.b16 %v1783, %v1776
        %v2106 = vpack.c.b16 %v1784, %v1777
        %v2107 = vpack.c.b16 %v1785, %v1778
        %v2108 = vpack.c.b16 %v1786, %v1779
        %v2109 = vpack.c.b16 %v1787, %v1780
        %v2110 = vpack.c.b16 %v1788, %v1781
        %v2111 = vpack.c.b16 %v1796, %v1789
        %v2112 = vpack.c.b16 %v1797, %v1790
        %v2113 = vpack.c.b16 %v1798, %v1791
        %v2114 = vpack.c.b16 %v1799, %v1792
        %v2115 = vpack.c.b16 %v1800, %v1793
        %v2116 = vpack.c.b16 %v1801, %v1794
        %v2117 = vpack.c.b16 %v1802, %v1795
        %v2118 = vpack.c.b16 %v1810, %v1803
        %v2119 = vpack.c.b16 %v1811, %v1804
        %v2120 = vpack.c.b16 %v1812, %v1805
        %v2121 = vpack.c.b16 %v1813, %v1806
        %v2122 = vpack.c.b16 %v1814, %v1807
        %v2123 = vpack.c.b16 %v1815, %v1808
        %v2124 = vpack.c.b16 %v1816, %v1809
        %v2125 = vpack.c.b16 %v1824, %v1817
        %v2126 = vpack.c.b16 %v1825, %v1818
        %v2127 = vpack.c.b16 %v1826, %v1819
        %v2128 = vpack.c.b16 %v1827, %v1820
        %v2129 = vpack.c.b16 %v1828, %v1821
        %v2130 = vpack.c.b16 %v1829, %v1822
        %v2131 = vpack.c.b16 %v1830, %v1823
        %v2132 = vpack.c.b16 %v1838, %v1831
        %v2133 = vpack.c.b16 %v1839, %v1832
        %v2134 = vpack.c.b16 %v1840, %v1833
        %v2135 = vpack.c.b16 %v1841, %v1834
        %v2136 = vpack.c.b16 %v1842, %v1835
        %v2137 = vpack.c.b16 %v1843, %v1836
        %v2138 = vpack.c.b16 %v1844, %v1837
        %v2139 = vpack.c.b16 %v1852, %v1845
        %v2140 = vpack.c.b16 %v1853, %v1846
        %v2141 = vpack.c.b16 %v1854, %v1847
        %v2142 = vpack.c.b16 %v1855, %v1848
        %v2143 = vpack.c.b16 %v1856, %v1849
        %v2144 = vpack.c.b16 %v1857, %v1850
        %v2145 = vpack.c.b16 %v1858, %v1851
        %v2146 = vpack.c.b16 %v1866, %v1859
        %v2147 = vpack.c.b16 %v1867, %v1860
        %v2148 = vpack.c.b16 %v1868, %v1861
        %v2149 = vpack.c.b16 %v1869, %v1862
        %v2150 = vpack.c.b16 %v1870, %v1863
        %v2151 = vpack.c.b16 %v1871, %v1864
        %v2152 = vpack.c.b16 %v1872, %v1865
        %v2153 = vpack.c.b16 %v1880, %v1873
        %v2154 = vpack.c.b16 %v1881, %v1874
        %v2155 = vpack.c.b16 %v1882, %v1875
        %v2156 = vpack.c.b16 %v1883, %v1876
        %v2157 = vpack.c.b16 %v1884, %v1877
        %v2158 = vpack.c.b16 %v1885, %v1878
        %v2159 = vpack.c.b16 %v1886, %v1879
        %v2160 = vpack.c.b16 %v1894, %v1887
        %v2161 = vpack.c.b16 %v1895, %v1888
        %v2162 = vpack.c.b16 %v1896, %v1889
        %v2163 = vpack.c.b16 %v1897, %v1890
        %v2164 = vpack.c.b16 %v1898, %v1891
        %v2165 = vpack.c.b16 %v1899, %v1892
        %v2166 = vpack.c.b16 %v1900, %v1893
        %v2167 = vpack.c.b16 %v1908, %v1901
        %v2168 = vpack.c.b16 %v1909, %v1902
        %v2169 = vpack.c.b16 %v1910, %v1903
        %v2170 = vpack.c.b16 %v1911, %v1904
        %v2171 = vpack.c.b16 %v1912, %v1905
        %v2172 = vpack.c.b16 %v1913, %v1906
        %v2173 = vpack.c.b16 %v1914, %v1907
        %v2174 = vpack.c.b16 %v1922, %v1915
        %v2175 = vpack.c.b16 %v1923, %v1916
        %v2176 = vpack.c.b16 %v1924, %v1917
        %v2177 = vpack.c.b16 %v1925, %v1918
        %v2178 = vpack.c.b16 %v1926, %v1919
        %v2179 = vpack.c.b16 %v1927, %v1920
        %v2180 = vpack.c.b16 %v1928, %v1921
        %v2181 = vpack.c.b16 %v1936, %v1929
        %v2182 = vpack.c.b16 %v1937, %v1930
        %v2183 = vpack.c.b16 %v1938, %v1931
        %v2184 = vpack.c.b16 %v1939, %v1932
        %v2185 = vpack.c.b16 %v1940, %v1933
        %v2186 = vpack.c.b16 %v1941, %v1934
        %v2187 = vpack.c.b16 %v1942, %v1935
        %v2188 = vpack.c.b16 %v1950, %v1943
        %v2189 = vpack.c.b16 %v1951, %v1944
        %v2190 = vpack.c.b16 %v1952, %v1945
        %v2191 = vpack.c.b16 %v1953, %v1946
        %v2192 = vpack.c.b16 %v1954, %v1947
        %v2193 = vpack.c.b16 %v1955, %v1948
        %v2194 = vpack.c.b16 %v1956, %v1949
        %v2195 = vpack.c.b16 %v1964, %v1957
        %v2196 = vpack.c.b16 %v1965, %v1958
        %v2197 = vpack.c.b16 %v1966, %v1959
        %v2198 = vpack.c.b16 %v1967, %v1960
        %v2199 = vpack.c.b16 %v1968, %v1961
        %v2200 = vpack.c.b16 %v1969, %v1962
        %v2201 = vpack.c.b16 %v1970, %v1963
        %v2202 = vpack.c.b16 %v1978, %v1971
        %v2203 = vpack.c.b16 %v1979, %v1972
        %v2204 = vpack.c.b16 %v1980, %v1973
        %v2205 = vpack.c.b16 %v1981, %v1974
        %v2206 = vpack.c.b16 %v1982, %v1975
        %v2207 = vpack.c.b16 %v1983, %v1976
        %v2208 = vpack.c.b16 %v1984, %v1977
        %2433 = vmatprep.subr.bf16.mxu0 %v1986
        %2434 = vmatpush1.bf16.msra.mxu0 %v1985
        %2435 = vmatprep.subr.bf16.mxu0 %v1993
        %2436 = vmatpush1.bf16.msra.mxu0 %v1992
        %2437 = vmatprep.subr.bf16.mxu0 %v2000
        %2438 = vmatpush1.bf16.msra.mxu0 %v1999
        %2439 = vmatprep.subr.bf16.mxu0 %v2007
        %2440 = vmatpush1.bf16.msra.mxu0 %v2006
        %2441 = vmatprep.subr.bf16.mxu0 %v2014
        %2442 = vmatpush1.bf16.msra.mxu0 %v2013
        %2443 = vmatprep.subr.bf16.mxu0 %v2021
        %2444 = vmatpush1.bf16.msra.mxu0 %v2020
        %2445 = vmatprep.subr.bf16.mxu0 %v2028
        %2446 = vmatpush1.bf16.msra.mxu0 %v2027
        %2447 = vmatprep.subr.bf16.mxu0 %v2035
        %2448 = vmatpush1.bf16.msra.mxu0 %v2034
        %2449 = vmatprep.subr.bf16.mxu0 %v2042
        %2450 = vmatpush1.bf16.msra.mxu0 %v2041
        %2451 = vmatprep.subr.bf16.mxu0 %v2049
        %2452 = vmatpush1.bf16.msra.mxu0 %v2048
        %2453 = vmatprep.subr.bf16.mxu0 %v2056
        %2454 = vmatpush1.bf16.msra.mxu0 %v2055
        %2455 = vmatprep.subr.bf16.mxu0 %v2063
        %2456 = vmatpush1.bf16.msra.mxu0 %v2062
        %2457 = vmatprep.subr.bf16.mxu0 %v2070
        %2458 = vmatpush1.bf16.msra.mxu0 %v2069
        %2459 = vmatprep.subr.bf16.mxu0 %v2077
        %2460 = vmatpush1.bf16.msra.mxu0 %v2076
        %2461 = vmatprep.subr.bf16.mxu0 %v2084
        %2462 = vmatpush1.bf16.msra.mxu0 %v2083
        %2463 = vmatprep.subr.bf16.mxu0 %v2091
        %2464 = vmatpush1.bf16.msra.mxu0 %v2090
        %2465 = vmatprep.mubr.bf16.mxu0 %v925
        %2466 = vmatmul.mubr.bf16.gmra.mrb[0].mxu0 %v924
        %v2467 = vpop.f32.mrb[0].mxu0
        %v2468 = vadd.f32 %v1249, %v2467
        %v2469 = vpop.f32.mrb[0].mxu0
        %v2470 = vadd.f32 %v1253, %v2469
        %v2471 = vpop.f32.mrb[0].mxu0
        %v2472 = vadd.f32 %v1249, %v2471
        %v2473 = vpop.f32.mrb[0].mxu0
        %v2474 = vadd.f32 %v1253, %v2473
        %2475 = vmatprep.mubr.bf16.mxu0 %v929
        %2476 = vmatmul.mubr.bf16.gmra.mrb[0].mxu0 %v928
        %v2477 = vpop.f32.mrb[0].mxu0
        %v2478 = vadd.f32 %v1249, %v2477
        %v2479 = vpop.f32.mrb[0].mxu0
        %v2480 = vadd.f32 %v1253, %v2479
        %v2481 = vpop.f32.mrb[0].mxu0
        %v2482 = vadd.f32 %v1249, %v2481
        %v2483 = vpop.f32.mrb[0].mxu0
        %v2484 = vadd.f32 %v1253, %v2483
        %2485 = vmatprep.mubr.bf16.mxu0 %v933
        %2486 = vmatmul.mubr.bf16.gmra.mrb[0].mxu0 %v932
        %v2487 = vpop.f32.mrb[0].mxu0
        %v2488 = vadd.f32 %v1249, %v2487
        %v2489 = vpop.f32.mrb[0].mxu0
        %v2490 = vadd.f32 %v1253, %v2489
        %v2491 = vpop.f32.mrb[0].mxu0
        %v2492 = vadd.f32 %v1249, %v2491
        %v2493 = vpop.f32.mrb[0].mxu0
        %v2494 = vadd.f32 %v1253, %v2493
        %2495 = vmatprep.mubr.bf16.mxu0 %v937
        %2496 = vmatmul.mubr.bf16.gmra.mrb[0].mxu0 %v936
        %v2497 = vpop.f32.mrb[0].mxu0
        %v2498 = vadd.f32 %v1249, %v2497
        %v2499 = vpop.f32.mrb[0].mxu0
        %v2500 = vadd.f32 %v1253, %v2499
        %v2501 = vpop.f32.mrb[0].mxu0
        %v2502 = vadd.f32 %v1249, %v2501
        %v2503 = vpop.f32.mrb[0].mxu0
        %v2504 = vadd.f32 %v1253, %v2503
        %2505 = vmatprep.mubr.bf16.mxu0 %v941
        %2506 = vmatmul.mubr.bf16.gmra.mrb[0].mxu0 %v940
        %v2507 = vpop.f32.mrb[0].mxu0
        %v2508 = vadd.f32 %v1249, %v2507
        %v2509 = vpop.f32.mrb[0].mxu0
        %v2510 = vadd.f32 %v1253, %v2509
        %v2511 = vpop.f32.mrb[0].mxu0
        %v2512 = vadd.f32 %v1249, %v2511
        %v2513 = vpop.f32.mrb[0].mxu0
        %v2514 = vadd.f32 %v1253, %v2513
        %2515 = vmatprep.mubr.bf16.mxu0 %v945
        %2516 = vmatmul.mubr.bf16.gmra.mrb[0].mxu0 %v944
        %v2517 = vpop.f32.mrb[0].mxu0
        %v2518 = vadd.f32 %v1249, %v2517
        %v2519 = vpop.f32.mrb[0].mxu0
        %v2520 = vadd.f32 %v1253, %v2519
        %v2521 = vpop.f32.mrb[0].mxu0
        %v2522 = vadd.f32 %v1249, %v2521
        %v2523 = vpop.f32.mrb[0].mxu0
        %v2524 = vadd.f32 %v1253, %v2523
        %2525 = vmatprep.mubr.bf16.mxu0 %v949
        %2526 = vmatmul.mubr.bf16.gmra.mrb[0].mxu0 %v948
        %v2527 = vpop.f32.mrb[0].mxu0
        %v2528 = vadd.f32 %v1249, %v2527
        %v2529 = vpop.f32.mrb[0].mxu0
        %v2530 = vadd.f32 %v1253, %v2529
        %v2531 = vpop.f32.mrb[0].mxu0
        %v2532 = vadd.f32 %v1249, %v2531
        %v2533 = vpop.f32.mrb[0].mxu0
        %v2534 = vadd.f32 %v1253, %v2533
        %2535 = vmatprep.mubr.bf16.mxu0 %v953
        %2536 = vmatmul.mubr.bf16.gmra.mrb[0].mxu0 %v952
        %v2537 = vpop.f32.mrb[0].mxu0
        %v2538 = vadd.f32 %v1249, %v2537
        %v2539 = vpop.f32.mrb[0].mxu0
        %v2540 = vadd.f32 %v1253, %v2539
        %v2541 = vpop.f32.mrb[0].mxu0
        %v2542 = vadd.f32 %v1249, %v2541
        %v2543 = vpop.f32.mrb[0].mxu0
        %v2544 = vadd.f32 %v1253, %v2543
        %2545 = vmatprep.mubr.bf16.mxu0 %v957
        %2546 = vmatmul.mubr.bf16.gmra.mrb[0].mxu0 %v956
        %v2547 = vpop.f32.mrb[0].mxu0
        %v2548 = vadd.f32 %v1249, %v2547
        %v2549 = vpop.f32.mrb[0].mxu0
        %v2550 = vadd.f32 %v1253, %v2549
        %v2551 = vpop.f32.mrb[0].mxu0
        %v2552 = vadd.f32 %v1249, %v2551
        %v2553 = vpop.f32.mrb[0].mxu0
        %v2554 = vadd.f32 %v1253, %v2553
        %2555 = vmatprep.mubr.bf16.mxu0 %v961
        %2556 = vmatmul.mubr.bf16.gmra.mrb[0].mxu0 %v960
        %v2557 = vpop.f32.mrb[0].mxu0
        %v2558 = vadd.f32 %v1249, %v2557
        %v2559 = vpop.f32.mrb[0].mxu0
        %v2560 = vadd.f32 %v1253, %v2559
        %v2561 = vpop.f32.mrb[0].mxu0
        %v2562 = vadd.f32 %v1249, %v2561
        %v2563 = vpop.f32.mrb[0].mxu0
        %v2564 = vadd.f32 %v1253, %v2563
        %2565 = vmatprep.mubr.bf16.mxu0 %v965
        %2566 = vmatmul.mubr.bf16.gmra.mrb[0].mxu0 %v964
        %v2567 = vpop.f32.mrb[0].mxu0
        %v2568 = vadd.f32 %v1249, %v2567
        %v2569 = vpop.f32.mrb[0].mxu0
        %v2570 = vadd.f32 %v1253, %v2569
        %v2571 = vpop.f32.mrb[0].mxu0
        %v2572 = vadd.f32 %v1249, %v2571
        %v2573 = vpop.f32.mrb[0].mxu0
        %v2574 = vadd.f32 %v1253, %v2573
        %2575 = vmatprep.mubr.bf16.mxu0 %v969
        %2576 = vmatmul.mubr.bf16.gmra.mrb[0].mxu0 %v968
        %v2577 = vpop.f32.mrb[0].mxu0
        %v2578 = vadd.f32 %v1249, %v2577
        %v2579 = vpop.f32.mrb[0].mxu0
        %v2580 = vadd.f32 %v1253, %v2579
        %v2581 = vpop.f32.mrb[0].mxu0
        %v2582 = vadd.f32 %v1249, %v2581
        %v2583 = vpop.f32.mrb[0].mxu0
        %v2584 = vadd.f32 %v1253, %v2583
        %2585 = vmatprep.mubr.bf16.mxu0 %v973
        %2586 = vmatmul.mubr.bf16.gmra.mrb[0].mxu0 %v972
        %v2587 = vpop.f32.mrb[0].mxu0
        %v2588 = vadd.f32 %v1249, %v2587
        %v2589 = vpop.f32.mrb[0].mxu0
        %v2590 = vadd.f32 %v1253, %v2589
        %v2591 = vpop.f32.mrb[0].mxu0
        %v2592 = vadd.f32 %v1249, %v2591
        %v2593 = vpop.f32.mrb[0].mxu0
        %v2594 = vadd.f32 %v1253, %v2593
        %2595 = vmatprep.mubr.bf16.mxu0 %v977
        %2596 = vmatmul.mubr.bf16.gmra.mrb[0].mxu0 %v976
        %v2597 = vpop.f32.mrb[0].mxu0
        %v2598 = vadd.f32 %v1249, %v2597
        %v2599 = vpop.f32.mrb[0].mxu0
        %v2600 = vadd.f32 %v1253, %v2599
        %v2601 = vpop.f32.mrb[0].mxu0
        %v2602 = vadd.f32 %v1249, %v2601
        %v2603 = vpop.f32.mrb[0].mxu0
        %v2604 = vadd.f32 %v1253, %v2603
        %2605 = vmatprep.mubr.bf16.mxu0 %v981
        %2606 = vmatmul.mubr.bf16.gmra.mrb[0].mxu0 %v980
        %v2607 = vpop.f32.mrb[0].mxu0
        %v2608 = vadd.f32 %v1249, %v2607
        %v2609 = vpop.f32.mrb[0].mxu0
        %v2610 = vadd.f32 %v1253, %v2609
        %v2611 = vpop.f32.mrb[0].mxu0
        %v2612 = vadd.f32 %v1249, %v2611
        %v2613 = vpop.f32.mrb[0].mxu0
        %v2614 = vadd.f32 %v1253, %v2613
        %2615 = vmatprep.mubr.bf16.mxu0 %v985
        %2616 = vmatmul.mubr.bf16.gmra.mrb[0].mxu0 %v984
        %v2617 = vpop.f32.mrb[0].mxu0
        %v2618 = vadd.f32 %v1249, %v2617
        %v2619 = vpop.f32.mrb[0].mxu0
        %v2620 = vadd.f32 %v1253, %v2619
        %v2621 = vpop.f32.mrb[0].mxu0
        %v2622 = vadd.f32 %v1249, %v2621
        %v2623 = vpop.f32.mrb[0].mxu0
        %v2624 = vadd.f32 %v1253, %v2623
        %2625 = vdwg.mxu0
        %2626 = vmatprep.subr.bf16.mxu0 %v2098
        %2627 = vmatpush1.bf16.msra.mxu0 %v2097
        %2628 = vmatprep.subr.bf16.mxu0 %v2105
        %2629 = vmatpush1.bf16.msra.mxu0 %v2104
        %2630 = vmatprep.subr.bf16.mxu0 %v2112
        %2631 = vmatpush1.bf16.msra.mxu0 %v2111
        %2632 = vmatprep.subr.bf16.mxu0 %v2119
        %2633 = vmatpush1.bf16.msra.mxu0 %v2118
        %2634 = vmatprep.subr.bf16.mxu0 %v2126
        %2635 = vmatpush1.bf16.msra.mxu0 %v2125
        %2636 = vmatprep.subr.bf16.mxu0 %v2133
        %2637 = vmatpush1.bf16.msra.mxu0 %v2132
        %2638 = vmatprep.subr.bf16.mxu0 %v2140
        %2639 = vmatpush1.bf16.msra.mxu0 %v2139
        %2640 = vmatprep.subr.bf16.mxu0 %v2147
        %2641 = vmatpush1.bf16.msra.mxu0 %v2146
        %2642 = vmatprep.subr.bf16.mxu0 %v2154
        %2643 = vmatpush1.bf16.msra.mxu0 %v2153
        %2644 = vmatprep.subr.bf16.mxu0 %v2161
        %2645 = vmatpush1.bf16.msra.mxu0 %v2160
        %2646 = vmatprep.subr.bf16.mxu0 %v2168
        %2647 = vmatpush1.bf16.msra.mxu0 %v2167
        %2648 = vmatprep.subr.bf16.mxu0 %v2175
        %2649 = vmatpush1.bf16.msra.mxu0 %v2174
        %2650 = vmatprep.subr.bf16.mxu0 %v2182
        %2651 = vmatpush1.bf16.msra.mxu0 %v2181
        %2652 = vmatprep.subr.bf16.mxu0 %v2189
        %2653 = vmatpush1.bf16.msra.mxu0 %v2188
        %2654 = vmatprep.subr.bf16.mxu0 %v2196
        %2655 = vmatpush1.bf16.msra.mxu0 %v2195
        %2656 = vmatprep.subr.bf16.mxu0 %v2203
        %2657 = vmatpush1.bf16.msra.mxu0 %v2202
        %2658 = vmatprep.mubr.bf16.mxu0 %v927
        %2659 = vmatmul.mubr.bf16.gmra.mrb[0].mxu0 %v926
        %v2660 = vpop.f32.mrb[0].mxu0
        %v2661 = vadd.f32 %v2468, %v2660
        %v2662 = vpop.f32.mrb[0].mxu0
        %v2663 = vadd.f32 %v2470, %v2662
        %v2664 = vpop.f32.mrb[0].mxu0
        %v2665 = vadd.f32 %v2472, %v2664
        %v2666 = vpop.f32.mrb[0].mxu0
        %v2667 = vadd.f32 %v2474, %v2666
        %2668 = vmatprep.mubr.bf16.mxu0 %v931
        %2669 = vmatmul.mubr.bf16.gmra.mrb[0].mxu0 %v930
        %v2670 = vpop.f32.mrb[0].mxu0
        %v2671 = vadd.f32 %v2478, %v2670
        %v2672 = vpop.f32.mrb[0].mxu0
        %v2673 = vadd.f32 %v2480, %v2672
        %v2674 = vpop.f32.mrb[0].mxu0
        %v2675 = vadd.f32 %v2482, %v2674
        %v2676 = vpop.f32.mrb[0].mxu0
        %v2677 = vadd.f32 %v2484, %v2676
        %2678 = vmatprep.mubr.bf16.mxu0 %v935
        %2679 = vmatmul.mubr.bf16.gmra.mrb[0].mxu0 %v934
        %v2680 = vpop.f32.mrb[0].mxu0
        %v2681 = vadd.f32 %v2488, %v2680
        %v2682 = vpop.f32.mrb[0].mxu0
        %v2683 = vadd.f32 %v2490, %v2682
        %v2684 = vpop.f32.mrb[0].mxu0
        %v2685 = vadd.f32 %v2492, %v2684
        %v2686 = vpop.f32.mrb[0].mxu0
        %v2687 = vadd.f32 %v2494, %v2686
        %2688 = vmatprep.mubr.bf16.mxu0 %v939
        %2689 = vmatmul.mubr.bf16.gmra.mrb[0].mxu0 %v938
        %v2690 = vpop.f32.mrb[0].mxu0
        %v2691 = vadd.f32 %v2498, %v2690
        %v2692 = vpop.f32.mrb[0].mxu0
        %v2693 = vadd.f32 %v2500, %v2692
        %v2694 = vpop.f32.mrb[0].mxu0
        %v2695 = vadd.f32 %v2502, %v2694
        %v2696 = vpop.f32.mrb[0].mxu0
        %v2697 = vadd.f32 %v2504, %v2696
        %2698 = vmatprep.mubr.bf16.mxu0 %v943
        %2699 = vmatmul.mubr.bf16.gmra.mrb[0].mxu0 %v942
        %v2700 = vpop.f32.mrb[0].mxu0
        %v2701 = vadd.f32 %v2508, %v2700
        %v2702 = vpop.f32.mrb[0].mxu0
        %v2703 = vadd.f32 %v2510, %v2702
        %v2704 = vpop.f32.mrb[0].mxu0
        %v2705 = vadd.f32 %v2512, %v2704
        %v2706 = vpop.f32.mrb[0].mxu0
        %v2707 = vadd.f32 %v2514, %v2706
        %2708 = vmatprep.mubr.bf16.mxu0 %v947
        %2709 = vmatmul.mubr.bf16.gmra.mrb[0].mxu0 %v946
        %v2710 = vpop.f32.mrb[0].mxu0
        %v2711 = vadd.f32 %v2518, %v2710
        %v2712 = vpop.f32.mrb[0].mxu0
        %v2713 = vadd.f32 %v2520, %v2712
        %v2714 = vpop.f32.mrb[0].mxu0
        %v2715 = vadd.f32 %v2522, %v2714
        %v2716 = vpop.f32.mrb[0].mxu0
        %v2717 = vadd.f32 %v2524, %v2716
        %2718 = vmatprep.mubr.bf16.mxu0 %v951
        %2719 = vmatmul.mubr.bf16.gmra.mrb[0].mxu0 %v950
        %v2720 = vpop.f32.mrb[0].mxu0
        %v2721 = vadd.f32 %v2528, %v2720
        %v2722 = vpop.f32.mrb[0].mxu0
        %v2723 = vadd.f32 %v2530, %v2722
        %v2724 = vpop.f32.mrb[0].mxu0
        %v2725 = vadd.f32 %v2532, %v2724
        %v2726 = vpop.f32.mrb[0].mxu0
        %v2727 = vadd.f32 %v2534, %v2726
        %2728 = vmatprep.mubr.bf16.mxu0 %v955
        %2729 = vmatmul.mubr.bf16.gmra.mrb[0].mxu0 %v954
        %v2730 = vpop.f32.mrb[0].mxu0
        %v2731 = vadd.f32 %v2538, %v2730
        %v2732 = vpop.f32.mrb[0].mxu0
        %v2733 = vadd.f32 %v2540, %v2732
        %v2734 = vpop.f32.mrb[0].mxu0
        %v2735 = vadd.f32 %v2542, %v2734
        %v2736 = vpop.f32.mrb[0].mxu0
        %v2737 = vadd.f32 %v2544, %v2736
        %2738 = vmatprep.mubr.bf16.mxu0 %v959
        %2739 = vmatmul.mubr.bf16.gmra.mrb[0].mxu0 %v958
        %v2740 = vpop.f32.mrb[0].mxu0
        %v2741 = vadd.f32 %v2548, %v2740
        %v2742 = vpop.f32.mrb[0].mxu0
        %v2743 = vadd.f32 %v2550, %v2742
        %v2744 = vpop.f32.mrb[0].mxu0
        %v2745 = vadd.f32 %v2552, %v2744
        %v2746 = vpop.f32.mrb[0].mxu0
        %v2747 = vadd.f32 %v2554, %v2746
        %2748 = vmatprep.mubr.bf16.mxu0 %v963
        %2749 = vmatmul.mubr.bf16.gmra.mrb[0].mxu0 %v962
        %v2750 = vpop.f32.mrb[0].mxu0
        %v2751 = vadd.f32 %v2558, %v2750
        %v2752 = vpop.f32.mrb[0].mxu0
        %v2753 = vadd.f32 %v2560, %v2752
        %v2754 = vpop.f32.mrb[0].mxu0
        %v2755 = vadd.f32 %v2562, %v2754
        %v2756 = vpop.f32.mrb[0].mxu0
        %v2757 = vadd.f32 %v2564, %v2756
        %2758 = vmatprep.mubr.bf16.mxu0 %v967
        %2759 = vmatmul.mubr.bf16.gmra.mrb[0].mxu0 %v966
        %v2760 = vpop.f32.mrb[0].mxu0
        %v2761 = vadd.f32 %v2568, %v2760
        %v2762 = vpop.f32.mrb[0].mxu0
        %v2763 = vadd.f32 %v2570, %v2762
        %v2764 = vpop.f32.mrb[0].mxu0
        %v2765 = vadd.f32 %v2572, %v2764
        %v2766 = vpop.f32.mrb[0].mxu0
        %v2767 = vadd.f32 %v2574, %v2766
        %2768 = vmatprep.mubr.bf16.mxu0 %v971
        %2769 = vmatmul.mubr.bf16.gmra.mrb[0].mxu0 %v970
        %v2770 = vpop.f32.mrb[0].mxu0
        %v2771 = vadd.f32 %v2578, %v2770
        %v2772 = vpop.f32.mrb[0].mxu0
        %v2773 = vadd.f32 %v2580, %v2772
        %v2774 = vpop.f32.mrb[0].mxu0
        %v2775 = vadd.f32 %v2582, %v2774
        %v2776 = vpop.f32.mrb[0].mxu0
        %v2777 = vadd.f32 %v2584, %v2776
        %2778 = vmatprep.mubr.bf16.mxu0 %v975
        %2779 = vmatmul.mubr.bf16.gmra.mrb[0].mxu0 %v974
        %v2780 = vpop.f32.mrb[0].mxu0
        %v2781 = vadd.f32 %v2588, %v2780
        %v2782 = vpop.f32.mrb[0].mxu0
        %v2783 = vadd.f32 %v2590, %v2782
        %v2784 = vpop.f32.mrb[0].mxu0
        %v2785 = vadd.f32 %v2592, %v2784
        %v2786 = vpop.f32.mrb[0].mxu0
        %v2787 = vadd.f32 %v2594, %v2786
        %2788 = vmatprep.mubr.bf16.mxu0 %v979
        %2789 = vmatmul.mubr.bf16.gmra.mrb[0].mxu0 %v978
        %v2790 = vpop.f32.mrb[0].mxu0
        %v2791 = vadd.f32 %v2598, %v2790
        %v2792 = vpop.f32.mrb[0].mxu0
        %v2793 = vadd.f32 %v2600, %v2792
        %v2794 = vpop.f32.mrb[0].mxu0
        %v2795 = vadd.f32 %v2602, %v2794
        %v2796 = vpop.f32.mrb[0].mxu0
        %v2797 = vadd.f32 %v2604, %v2796
        %2798 = vmatprep.mubr.bf16.mxu0 %v983
        %2799 = vmatmul.mubr.bf16.gmra.mrb[0].mxu0 %v982
        %v2800 = vpop.f32.mrb[0].mxu0
        %v2801 = vadd.f32 %v2608, %v2800
        %v2802 = vpop.f32.mrb[0].mxu0
        %v2803 = vadd.f32 %v2610, %v2802
        %v2804 = vpop.f32.mrb[0].mxu0
        %v2805 = vadd.f32 %v2612, %v2804
        %v2806 = vpop.f32.mrb[0].mxu0
        %v2807 = vadd.f32 %v2614, %v2806
        %2808 = vmatprep.mubr.bf16.mxu0 %v987
        %2809 = vmatmul.mubr.bf16.gmra.mrb[0].mxu0 %v986
        %v2810 = vpop.f32.mrb[0].mxu0
        %v2811 = vadd.f32 %v2618, %v2810
        %v2812 = vpop.f32.mrb[0].mxu0
        %v2813 = vadd.f32 %v2620, %v2812
        %v2814 = vpop.f32.mrb[0].mxu0
        %v2815 = vadd.f32 %v2622, %v2814
        %v2816 = vpop.f32.mrb[0].mxu0
        %v2817 = vadd.f32 %v2624, %v2816
        %2818 = vdwg.mxu0
        %2819 = vmatprep.subr.bf16.mxu0 %v1988
        %2820 = vmatpush1.bf16.msra.mxu0 %v1987
        %2821 = vmatprep.subr.bf16.mxu0 %v1995
        %2822 = vmatpush1.bf16.msra.mxu0 %v1994
        %2823 = vmatprep.subr.bf16.mxu0 %v2002
        %2824 = vmatpush1.bf16.msra.mxu0 %v2001
        %2825 = vmatprep.subr.bf16.mxu0 %v2009
        %2826 = vmatpush1.bf16.msra.mxu0 %v2008
        %2827 = vmatprep.subr.bf16.mxu0 %v2016
        %2828 = vmatpush1.bf16.msra.mxu0 %v2015
        %2829 = vmatprep.subr.bf16.mxu0 %v2023
        %2830 = vmatpush1.bf16.msra.mxu0 %v2022
        %2831 = vmatprep.subr.bf16.mxu0 %v2030
        %2832 = vmatpush1.bf16.msra.mxu0 %v2029
        %2833 = vmatprep.subr.bf16.mxu0 %v2037
        %2834 = vmatpush1.bf16.msra.mxu0 %v2036
        %2835 = vmatprep.subr.bf16.mxu0 %v2044
        %2836 = vmatpush1.bf16.msra.mxu0 %v2043
        %2837 = vmatprep.subr.bf16.mxu0 %v2051
        %2838 = vmatpush1.bf16.msra.mxu0 %v2050
        %2839 = vmatprep.subr.bf16.mxu0 %v2058
        %2840 = vmatpush1.bf16.msra.mxu0 %v2057
        %2841 = vmatprep.subr.bf16.mxu0 %v2065
        %2842 = vmatpush1.bf16.msra.mxu0 %v2064
        %2843 = vmatprep.subr.bf16.mxu0 %v2072
        %2844 = vmatpush1.bf16.msra.mxu0 %v2071
        %2845 = vmatprep.subr.bf16.mxu0 %v2079
        %2846 = vmatpush1.bf16.msra.mxu0 %v2078
        %2847 = vmatprep.subr.bf16.mxu0 %v2086
        %2848 = vmatpush1.bf16.msra.mxu0 %v2085
        %2849 = vmatprep.subr.bf16.mxu0 %v2093
        %2850 = vmatpush1.bf16.msra.mxu0 %v2092
        %2851 = vmatprep.mubr.bf16.mxu0 %v925
        %2852 = vmatmul.mubr.bf16.gmra.mrb[0].mxu0 %v924
        %v2853 = vpop.f32.mrb[0].mxu0
        %v2854 = vadd.f32 %v1257, %v2853
        %v2855 = vpop.f32.mrb[0].mxu0
        %v2856 = vadd.f32 %v1261, %v2855
        %v2857 = vpop.f32.mrb[0].mxu0
        %v2858 = vadd.f32 %v1257, %v2857
        %v2859 = vpop.f32.mrb[0].mxu0
        %v2860 = vadd.f32 %v1261, %v2859
        %2861 = vmatprep.mubr.bf16.mxu0 %v929
        %2862 = vmatmul.mubr.bf16.gmra.mrb[0].mxu0 %v928
        %v2863 = vpop.f32.mrb[0].mxu0
        %v2864 = vadd.f32 %v1257, %v2863
        %v2865 = vpop.f32.mrb[0].mxu0
        %v2866 = vadd.f32 %v1261, %v2865
        %v2867 = vpop.f32.mrb[0].mxu0
        %v2868 = vadd.f32 %v1257, %v2867
        %v2869 = vpop.f32.mrb[0].mxu0
        %v2870 = vadd.f32 %v1261, %v2869
        %2871 = vmatprep.mubr.bf16.mxu0 %v933
        %2872 = vmatmul.mubr.bf16.gmra.mrb[0].mxu0 %v932
        %v2873 = vpop.f32.mrb[0].mxu0
        %v2874 = vadd.f32 %v1257, %v2873
        %v2875 = vpop.f32.mrb[0].mxu0
        %v2876 = vadd.f32 %v1261, %v2875
        %v2877 = vpop.f32.mrb[0].mxu0
        %v2878 = vadd.f32 %v1257, %v2877
        %v2879 = vpop.f32.mrb[0].mxu0
        %v2880 = vadd.f32 %v1261, %v2879
        %2881 = vmatprep.mubr.bf16.mxu0 %v937
        %2882 = vmatmul.mubr.bf16.gmra.mrb[0].mxu0 %v936
        %v2883 = vpop.f32.mrb[0].mxu0
        %v2884 = vadd.f32 %v1257, %v2883
        %v2885 = vpop.f32.mrb[0].mxu0
        %v2886 = vadd.f32 %v1261, %v2885
        %v2887 = vpop.f32.mrb[0].mxu0
        %v2888 = vadd.f32 %v1257, %v2887
        %v2889 = vpop.f32.mrb[0].mxu0
        %v2890 = vadd.f32 %v1261, %v2889
        %2891 = vmatprep.mubr.bf16.mxu0 %v941
        %2892 = vmatmul.mubr.bf16.gmra.mrb[0].mxu0 %v940
        %v2893 = vpop.f32.mrb[0].mxu0
        %v2894 = vadd.f32 %v1257, %v2893
        %v2895 = vpop.f32.mrb[0].mxu0
        %v2896 = vadd.f32 %v1261, %v2895
        %v2897 = vpop.f32.mrb[0].mxu0
        %v2898 = vadd.f32 %v1257, %v2897
        %v2899 = vpop.f32.mrb[0].mxu0
        %v2900 = vadd.f32 %v1261, %v2899
        %2901 = vmatprep.mubr.bf16.mxu0 %v945
        %2902 = vmatmul.mubr.bf16.gmra.mrb[0].mxu0 %v944
        %v2903 = vpop.f32.mrb[0].mxu0
        %v2904 = vadd.f32 %v1257, %v2903
        %v2905 = vpop.f32.mrb[0].mxu0
        %v2906 = vadd.f32 %v1261, %v2905
        %v2907 = vpop.f32.mrb[0].mxu0
        %v2908 = vadd.f32 %v1257, %v2907
        %v2909 = vpop.f32.mrb[0].mxu0
        %v2910 = vadd.f32 %v1261, %v2909
        %2911 = vmatprep.mubr.bf16.mxu0 %v949
        %2912 = vmatmul.mubr.bf16.gmra.mrb[0].mxu0 %v948
        %v2913 = vpop.f32.mrb[0].mxu0
        %v2914 = vadd.f32 %v1257, %v2913
        %v2915 = vpop.f32.mrb[0].mxu0
        %v2916 = vadd.f32 %v1261, %v2915
        %v2917 = vpop.f32.mrb[0].mxu0
        %v2918 = vadd.f32 %v1257, %v2917
        %v2919 = vpop.f32.mrb[0].mxu0
        %v2920 = vadd.f32 %v1261, %v2919
        %2921 = vmatprep.mubr.bf16.mxu0 %v953
        %2922 = vmatmul.mubr.bf16.gmra.mrb[0].mxu0 %v952
        %v2923 = vpop.f32.mrb[0].mxu0
        %v2924 = vadd.f32 %v1257, %v2923
        %v2925 = vpop.f32.mrb[0].mxu0
        %v2926 = vadd.f32 %v1261, %v2925
        %v2927 = vpop.f32.mrb[0].mxu0
        %v2928 = vadd.f32 %v1257, %v2927
        %v2929 = vpop.f32.mrb[0].mxu0
        %v2930 = vadd.f32 %v1261, %v2929
        %2931 = vmatprep.mubr.bf16.mxu0 %v957
        %2932 = vmatmul.mubr.bf16.gmra.mrb[0].mxu0 %v956
        %v2933 = vpop.f32.mrb[0].mxu0
        %v2934 = vadd.f32 %v1257, %v2933
        %v2935 = vpop.f32.mrb[0].mxu0
        %v2936 = vadd.f32 %v1261, %v2935
        %v2937 = vpop.f32.mrb[0].mxu0
        %v2938 = vadd.f32 %v1257, %v2937
        %v2939 = vpop.f32.mrb[0].mxu0
        %v2940 = vadd.f32 %v1261, %v2939
        %2941 = vmatprep.mubr.bf16.mxu0 %v961
        %2942 = vmatmul.mubr.bf16.gmra.mrb[0].mxu0 %v960
        %v2943 = vpop.f32.mrb[0].mxu0
        %v2944 = vadd.f32 %v1257, %v2943
        %v2945 = vpop.f32.mrb[0].mxu0
        %v2946 = vadd.f32 %v1261, %v2945
        %v2947 = vpop.f32.mrb[0].mxu0
        %v2948 = vadd.f32 %v1257, %v2947
        %v2949 = vpop.f32.mrb[0].mxu0
        %v2950 = vadd.f32 %v1261, %v2949
        %2951 = vmatprep.mubr.bf16.mxu0 %v965
        %2952 = vmatmul.mubr.bf16.gmra.mrb[0].mxu0 %v964
        %v2953 = vpop.f32.mrb[0].mxu0
        %v2954 = vadd.f32 %v1257, %v2953
        %v2955 = vpop.f32.mrb[0].mxu0
        %v2956 = vadd.f32 %v1261, %v2955
        %v2957 = vpop.f32.mrb[0].mxu0
        %v2958 = vadd.f32 %v1257, %v2957
        %v2959 = vpop.f32.mrb[0].mxu0
        %v2960 = vadd.f32 %v1261, %v2959
        %2961 = vmatprep.mubr.bf16.mxu0 %v969
        %2962 = vmatmul.mubr.bf16.gmra.mrb[0].mxu0 %v968
        %v2963 = vpop.f32.mrb[0].mxu0
        %v2964 = vadd.f32 %v1257, %v2963
        %v2965 = vpop.f32.mrb[0].mxu0
        %v2966 = vadd.f32 %v1261, %v2965
        %v2967 = vpop.f32.mrb[0].mxu0
        %v2968 = vadd.f32 %v1257, %v2967
        %v2969 = vpop.f32.mrb[0].mxu0
        %v2970 = vadd.f32 %v1261, %v2969
        %2971 = vmatprep.mubr.bf16.mxu0 %v973
        %2972 = vmatmul.mubr.bf16.gmra.mrb[0].mxu0 %v972
        %v2973 = vpop.f32.mrb[0].mxu0
        %v2974 = vadd.f32 %v1257, %v2973
        %v2975 = vpop.f32.mrb[0].mxu0
        %v2976 = vadd.f32 %v1261, %v2975
        %v2977 = vpop.f32.mrb[0].mxu0
        %v2978 = vadd.f32 %v1257, %v2977
        %v2979 = vpop.f32.mrb[0].mxu0
        %v2980 = vadd.f32 %v1261, %v2979
        %2981 = vmatprep.mubr.bf16.mxu0 %v977
        %2982 = vmatmul.mubr.bf16.gmra.mrb[0].mxu0 %v976
        %v2983 = vpop.f32.mrb[0].mxu0
        %v2984 = vadd.f32 %v1257, %v2983
        %v2985 = vpop.f32.mrb[0].mxu0
        %v2986 = vadd.f32 %v1261, %v2985
        %v2987 = vpop.f32.mrb[0].mxu0
        %v2988 = vadd.f32 %v1257, %v2987
        %v2989 = vpop.f32.mrb[0].mxu0
        %v2990 = vadd.f32 %v1261, %v2989
        %2991 = vmatprep.mubr.bf16.mxu0 %v981
        %2992 = vmatmul.mubr.bf16.gmra.mrb[0].mxu0 %v980
        %v2993 = vpop.f32.mrb[0].mxu0
        %v2994 = vadd.f32 %v1257, %v2993
        %v2995 = vpop.f32.mrb[0].mxu0
        %v2996 = vadd.f32 %v1261, %v2995
        %v2997 = vpop.f32.mrb[0].mxu0
        %v2998 = vadd.f32 %v1257, %v2997
        %v2999 = vpop.f32.mrb[0].mxu0
        %v3000 = vadd.f32 %v1261, %v2999
        %3001 = vmatprep.mubr.bf16.mxu0 %v985
        %3002 = vmatmul.mubr.bf16.gmra.mrb[0].mxu0 %v984
        %v3003 = vpop.f32.mrb[0].mxu0
        %v3004 = vadd.f32 %v1257, %v3003
        %v3005 = vpop.f32.mrb[0].mxu0
        %v3006 = vadd.f32 %v1261, %v3005
        %v3007 = vpop.f32.mrb[0].mxu0
        %v3008 = vadd.f32 %v1257, %v3007
        %v3009 = vpop.f32.mrb[0].mxu0
        %v3010 = vadd.f32 %v1261, %v3009
        %3011 = vdwg.mxu0
        %3012 = vmatprep.subr.bf16.mxu0 %v2100
        %3013 = vmatpush1.bf16.msra.mxu0 %v2099
        %3014 = vmatprep.subr.bf16.mxu0 %v2107
        %3015 = vmatpush1.bf16.msra.mxu0 %v2106
        %3016 = vmatprep.subr.bf16.mxu0 %v2114
        %3017 = vmatpush1.bf16.msra.mxu0 %v2113
        %3018 = vmatprep.subr.bf16.mxu0 %v2121
        %3019 = vmatpush1.bf16.msra.mxu0 %v2120
        %3020 = vmatprep.subr.bf16.mxu0 %v2128
        %3021 = vmatpush1.bf16.msra.mxu0 %v2127
        %3022 = vmatprep.subr.bf16.mxu0 %v2135
        %3023 = vmatpush1.bf16.msra.mxu0 %v2134
        %3024 = vmatprep.subr.bf16.mxu0 %v2142
        %3025 = vmatpush1.bf16.msra.mxu0 %v2141
        %3026 = vmatprep.subr.bf16.mxu0 %v2149
        %3027 = vmatpush1.bf16.msra.mxu0 %v2148
        %3028 = vmatprep.subr.bf16.mxu0 %v2156
        %3029 = vmatpush1.bf16.msra.mxu0 %v2155
        %3030 = vmatprep.subr.bf16.mxu0 %v2163
        %3031 = vmatpush1.bf16.msra.mxu0 %v2162
        %3032 = vmatprep.subr.bf16.mxu0 %v2170
        %3033 = vmatpush1.bf16.msra.mxu0 %v2169
        %3034 = vmatprep.subr.bf16.mxu0 %v2177
        %3035 = vmatpush1.bf16.msra.mxu0 %v2176
        %3036 = vmatprep.subr.bf16.mxu0 %v2184
        %3037 = vmatpush1.bf16.msra.mxu0 %v2183
        %3038 = vmatprep.subr.bf16.mxu0 %v2191
        %3039 = vmatpush1.bf16.msra.mxu0 %v2190
        %3040 = vmatprep.subr.bf16.mxu0 %v2198
        %3041 = vmatpush1.bf16.msra.mxu0 %v2197
        %3042 = vmatprep.subr.bf16.mxu0 %v2205
        %3043 = vmatpush1.bf16.msra.mxu0 %v2204
        %3044 = vmatprep.mubr.bf16.mxu0 %v927
        %3045 = vmatmul.mubr.bf16.gmra.mrb[0].mxu0 %v926
        %v3046 = vpop.f32.mrb[0].mxu0
        %v3047 = vadd.f32 %v2854, %v3046
        %v3048 = vpop.f32.mrb[0].mxu0
        %v3049 = vadd.f32 %v2856, %v3048
        %v3050 = vpop.f32.mrb[0].mxu0
        %v3051 = vadd.f32 %v2858, %v3050
        %v3052 = vpop.f32.mrb[0].mxu0
        %v3053 = vadd.f32 %v2860, %v3052
        %3054 = vmatprep.mubr.bf16.mxu0 %v931
        %3055 = vmatmul.mubr.bf16.gmra.mrb[0].mxu0 %v930
        %v3056 = vpop.f32.mrb[0].mxu0
        %v3057 = vadd.f32 %v2864, %v3056
        %v3058 = vpop.f32.mrb[0].mxu0
        %v3059 = vadd.f32 %v2866, %v3058
        %v3060 = vpop.f32.mrb[0].mxu0
        %v3061 = vadd.f32 %v2868, %v3060
        %v3062 = vpop.f32.mrb[0].mxu0
        %v3063 = vadd.f32 %v2870, %v3062
        %3064 = vmatprep.mubr.bf16.mxu0 %v935
        %3065 = vmatmul.mubr.bf16.gmra.mrb[0].mxu0 %v934
        %v3066 = vpop.f32.mrb[0].mxu0
        %v3067 = vadd.f32 %v2874, %v3066
        %v3068 = vpop.f32.mrb[0].mxu0
        %v3069 = vadd.f32 %v2876, %v3068
        %v3070 = vpop.f32.mrb[0].mxu0
        %v3071 = vadd.f32 %v2878, %v3070
        %v3072 = vpop.f32.mrb[0].mxu0
        %v3073 = vadd.f32 %v2880, %v3072
        %3074 = vmatprep.mubr.bf16.mxu0 %v939
        %3075 = vmatmul.mubr.bf16.gmra.mrb[0].mxu0 %v938
        %v3076 = vpop.f32.mrb[0].mxu0
        %v3077 = vadd.f32 %v2884, %v3076
        %v3078 = vpop.f32.mrb[0].mxu0
        %v3079 = vadd.f32 %v2886, %v3078
        %v3080 = vpop.f32.mrb[0].mxu0
        %v3081 = vadd.f32 %v2888, %v3080
        %v3082 = vpop.f32.mrb[0].mxu0
        %v3083 = vadd.f32 %v2890, %v3082
        %3084 = vmatprep.mubr.bf16.mxu0 %v943
        %3085 = vmatmul.mubr.bf16.gmra.mrb[0].mxu0 %v942
        %v3086 = vpop.f32.mrb[0].mxu0
        %v3087 = vadd.f32 %v2894, %v3086
        %v3088 = vpop.f32.mrb[0].mxu0
        %v3089 = vadd.f32 %v2896, %v3088
        %v3090 = vpop.f32.mrb[0].mxu0
        %v3091 = vadd.f32 %v2898, %v3090
        %v3092 = vpop.f32.mrb[0].mxu0
        %v3093 = vadd.f32 %v2900, %v3092
        %3094 = vmatprep.mubr.bf16.mxu0 %v947
        %3095 = vmatmul.mubr.bf16.gmra.mrb[0].mxu0 %v946
        %v3096 = vpop.f32.mrb[0].mxu0
        %v3097 = vadd.f32 %v2904, %v3096
        %v3098 = vpop.f32.mrb[0].mxu0
        %v3099 = vadd.f32 %v2906, %v3098
        %v3100 = vpop.f32.mrb[0].mxu0
        %v3101 = vadd.f32 %v2908, %v3100
        %v3102 = vpop.f32.mrb[0].mxu0
        %v3103 = vadd.f32 %v2910, %v3102
        %3104 = vmatprep.mubr.bf16.mxu0 %v951
        %3105 = vmatmul.mubr.bf16.gmra.mrb[0].mxu0 %v950
        %v3106 = vpop.f32.mrb[0].mxu0
        %v3107 = vadd.f32 %v2914, %v3106
        %v3108 = vpop.f32.mrb[0].mxu0
        %v3109 = vadd.f32 %v2916, %v3108
        %v3110 = vpop.f32.mrb[0].mxu0
        %v3111 = vadd.f32 %v2918, %v3110
        %v3112 = vpop.f32.mrb[0].mxu0
        %v3113 = vadd.f32 %v2920, %v3112
        %3114 = vmatprep.mubr.bf16.mxu0 %v955
        %3115 = vmatmul.mubr.bf16.gmra.mrb[0].mxu0 %v954
        %v3116 = vpop.f32.mrb[0].mxu0
        %v3117 = vadd.f32 %v2924, %v3116
        %v3118 = vpop.f32.mrb[0].mxu0
        %v3119 = vadd.f32 %v2926, %v3118
        %v3120 = vpop.f32.mrb[0].mxu0
        %v3121 = vadd.f32 %v2928, %v3120
        %v3122 = vpop.f32.mrb[0].mxu0
        %v3123 = vadd.f32 %v2930, %v3122
        %3124 = vmatprep.mubr.bf16.mxu0 %v959
        %3125 = vmatmul.mubr.bf16.gmra.mrb[0].mxu0 %v958
        %v3126 = vpop.f32.mrb[0].mxu0
        %v3127 = vadd.f32 %v2934, %v3126
        %v3128 = vpop.f32.mrb[0].mxu0
        %v3129 = vadd.f32 %v2936, %v3128
        %v3130 = vpop.f32.mrb[0].mxu0
        %v3131 = vadd.f32 %v2938, %v3130
        %v3132 = vpop.f32.mrb[0].mxu0
        %v3133 = vadd.f32 %v2940, %v3132
        %3134 = vmatprep.mubr.bf16.mxu0 %v963
        %3135 = vmatmul.mubr.bf16.gmra.mrb[0].mxu0 %v962
        %v3136 = vpop.f32.mrb[0].mxu0
        %v3137 = vadd.f32 %v2944, %v3136
        %v3138 = vpop.f32.mrb[0].mxu0
        %v3139 = vadd.f32 %v2946, %v3138
        %v3140 = vpop.f32.mrb[0].mxu0
        %v3141 = vadd.f32 %v2948, %v3140
        %v3142 = vpop.f32.mrb[0].mxu0
        %v3143 = vadd.f32 %v2950, %v3142
        %3144 = vmatprep.mubr.bf16.mxu0 %v967
        %3145 = vmatmul.mubr.bf16.gmra.mrb[0].mxu0 %v966
        %v3146 = vpop.f32.mrb[0].mxu0
        %v3147 = vadd.f32 %v2954, %v3146
        %v3148 = vpop.f32.mrb[0].mxu0
        %v3149 = vadd.f32 %v2956, %v3148
        %v3150 = vpop.f32.mrb[0].mxu0
        %v3151 = vadd.f32 %v2958, %v3150
        %v3152 = vpop.f32.mrb[0].mxu0
        %v3153 = vadd.f32 %v2960, %v3152
        %3154 = vmatprep.mubr.bf16.mxu0 %v971
        %3155 = vmatmul.mubr.bf16.gmra.mrb[0].mxu0 %v970
        %v3156 = vpop.f32.mrb[0].mxu0
        %v3157 = vadd.f32 %v2964, %v3156
        %v3158 = vpop.f32.mrb[0].mxu0
        %v3159 = vadd.f32 %v2966, %v3158
        %v3160 = vpop.f32.mrb[0].mxu0
        %v3161 = vadd.f32 %v2968, %v3160
        %v3162 = vpop.f32.mrb[0].mxu0
        %v3163 = vadd.f32 %v2970, %v3162
        %3164 = vmatprep.mubr.bf16.mxu0 %v975
        %3165 = vmatmul.mubr.bf16.gmra.mrb[0].mxu0 %v974
        %v3166 = vpop.f32.mrb[0].mxu0
        %v3167 = vadd.f32 %v2974, %v3166
        %v3168 = vpop.f32.mrb[0].mxu0
        %v3169 = vadd.f32 %v2976, %v3168
        %v3170 = vpop.f32.mrb[0].mxu0
        %v3171 = vadd.f32 %v2978, %v3170
        %v3172 = vpop.f32.mrb[0].mxu0
        %v3173 = vadd.f32 %v2980, %v3172
        %3174 = vmatprep.mubr.bf16.mxu0 %v979
        %3175 = vmatmul.mubr.bf16.gmra.mrb[0].mxu0 %v978
        %v3176 = vpop.f32.mrb[0].mxu0
        %v3177 = vadd.f32 %v2984, %v3176
        %v3178 = vpop.f32.mrb[0].mxu0
        %v3179 = vadd.f32 %v2986, %v3178
        %v3180 = vpop.f32.mrb[0].mxu0
        %v3181 = vadd.f32 %v2988, %v3180
        %v3182 = vpop.f32.mrb[0].mxu0
        %v3183 = vadd.f32 %v2990, %v3182
        %3184 = vmatprep.mubr.bf16.mxu0 %v983
        %3185 = vmatmul.mubr.bf16.gmra.mrb[0].mxu0 %v982
        %v3186 = vpop.f32.mrb[0].mxu0
        %v3187 = vadd.f32 %v2994, %v3186
        %v3188 = vpop.f32.mrb[0].mxu0
        %v3189 = vadd.f32 %v2996, %v3188
        %v3190 = vpop.f32.mrb[0].mxu0
        %v3191 = vadd.f32 %v2998, %v3190
        %v3192 = vpop.f32.mrb[0].mxu0
        %v3193 = vadd.f32 %v3000, %v3192
        %3194 = vmatprep.mubr.bf16.mxu0 %v987
        %3195 = vmatmul.mubr.bf16.gmra.mrb[0].mxu0 %v986
        %v3196 = vpop.f32.mrb[0].mxu0
        %v3197 = vadd.f32 %v3004, %v3196
        %v3198 = vpop.f32.mrb[0].mxu0
        %v3199 = vadd.f32 %v3006, %v3198
        %v3200 = vpop.f32.mrb[0].mxu0
        %v3201 = vadd.f32 %v3008, %v3200
        %v3202 = vpop.f32.mrb[0].mxu0
        %v3203 = vadd.f32 %v3010, %v3202
        %3204 = vdwg.mxu0
        %3205 = vmatprep.subr.bf16.mxu0 %v1990
        %3206 = vmatpush1.bf16.msra.mxu0 %v1989
        %3207 = vmatprep.subr.bf16.mxu0 %v1997
        %3208 = vmatpush1.bf16.msra.mxu0 %v1996
        %3209 = vmatprep.subr.bf16.mxu0 %v2004
        %3210 = vmatpush1.bf16.msra.mxu0 %v2003
        %3211 = vmatprep.subr.bf16.mxu0 %v2011
        %3212 = vmatpush1.bf16.msra.mxu0 %v2010
        %3213 = vmatprep.subr.bf16.mxu0 %v2018
        %3214 = vmatpush1.bf16.msra.mxu0 %v2017
        %3215 = vmatprep.subr.bf16.mxu0 %v2025
        %3216 = vmatpush1.bf16.msra.mxu0 %v2024
        %3217 = vmatprep.subr.bf16.mxu0 %v2032
        %3218 = vmatpush1.bf16.msra.mxu0 %v2031
        %3219 = vmatprep.subr.bf16.mxu0 %v2039
        %3220 = vmatpush1.bf16.msra.mxu0 %v2038
        %3221 = vmatprep.subr.bf16.mxu0 %v2046
        %3222 = vmatpush1.bf16.msra.mxu0 %v2045
        %3223 = vmatprep.subr.bf16.mxu0 %v2053
        %3224 = vmatpush1.bf16.msra.mxu0 %v2052
        %3225 = vmatprep.subr.bf16.mxu0 %v2060
        %3226 = vmatpush1.bf16.msra.mxu0 %v2059
        %3227 = vmatprep.subr.bf16.mxu0 %v2067
        %3228 = vmatpush1.bf16.msra.mxu0 %v2066
        %3229 = vmatprep.subr.bf16.mxu0 %v2074
        %3230 = vmatpush1.bf16.msra.mxu0 %v2073
        %3231 = vmatprep.subr.bf16.mxu0 %v2081
        %3232 = vmatpush1.bf16.msra.mxu0 %v2080
        %3233 = vmatprep.subr.bf16.mxu0 %v2088
        %3234 = vmatpush1.bf16.msra.mxu0 %v2087
        %3235 = vmatprep.subr.bf16.mxu0 %v2095
        %3236 = vmatpush1.bf16.msra.mxu0 %v2094
        %3237 = vmatprep.mubr.bf16.mxu0 %v925
        %3238 = vmatmul.mubr.bf16.gmra.mrb[0].mxu0 %v924
        %v3239 = vpop.f32.mrb[0].mxu0
        %v3240 = vadd.f32 %v1265, %v3239
        %v3241 = vpop.f32.mrb[0].mxu0
        %v3242 = vadd.f32 %v1269, %v3241
        %v3243 = vpop.f32.mrb[0].mxu0
        %v3244 = vadd.f32 %v1265, %v3243
        %v3245 = vpop.f32.mrb[0].mxu0
        %v3246 = vadd.f32 %v1269, %v3245
        %3247 = vmatprep.mubr.bf16.mxu0 %v929
        %3248 = vmatmul.mubr.bf16.gmra.mrb[0].mxu0 %v928
        %v3249 = vpop.f32.mrb[0].mxu0
        %v3250 = vadd.f32 %v1265, %v3249
        %v3251 = vpop.f32.mrb[0].mxu0
        %v3252 = vadd.f32 %v1269, %v3251
        %v3253 = vpop.f32.mrb[0].mxu0
        %v3254 = vadd.f32 %v1265, %v3253
        %v3255 = vpop.f32.mrb[0].mxu0
        %v3256 = vadd.f32 %v1269, %v3255
        %3257 = vmatprep.mubr.bf16.mxu0 %v933
        %3258 = vmatmul.mubr.bf16.gmra.mrb[0].mxu0 %v932
        %v3259 = vpop.f32.mrb[0].mxu0
        %v3260 = vadd.f32 %v1265, %v3259
        %v3261 = vpop.f32.mrb[0].mxu0
        %v3262 = vadd.f32 %v1269, %v3261
        %v3263 = vpop.f32.mrb[0].mxu0
        %v3264 = vadd.f32 %v1265, %v3263
        %v3265 = vpop.f32.mrb[0].mxu0
        %v3266 = vadd.f32 %v1269, %v3265
        %3267 = vmatprep.mubr.bf16.mxu0 %v937
        %3268 = vmatmul.mubr.bf16.gmra.mrb[0].mxu0 %v936
        %v3269 = vpop.f32.mrb[0].mxu0
        %v3270 = vadd.f32 %v1265, %v3269
        %v3271 = vpop.f32.mrb[0].mxu0
        %v3272 = vadd.f32 %v1269, %v3271
        %v3273 = vpop.f32.mrb[0].mxu0
        %v3274 = vadd.f32 %v1265, %v3273
        %v3275 = vpop.f32.mrb[0].mxu0
        %v3276 = vadd.f32 %v1269, %v3275
        %3277 = vmatprep.mubr.bf16.mxu0 %v941
        %3278 = vmatmul.mubr.bf16.gmra.mrb[0].mxu0 %v940
        %v3279 = vpop.f32.mrb[0].mxu0
        %v3280 = vadd.f32 %v1265, %v3279
        %v3281 = vpop.f32.mrb[0].mxu0
        %v3282 = vadd.f32 %v1269, %v3281
        %v3283 = vpop.f32.mrb[0].mxu0
        %v3284 = vadd.f32 %v1265, %v3283
        %v3285 = vpop.f32.mrb[0].mxu0
        %v3286 = vadd.f32 %v1269, %v3285
        %3287 = vmatprep.mubr.bf16.mxu0 %v945
        %3288 = vmatmul.mubr.bf16.gmra.mrb[0].mxu0 %v944
        %v3289 = vpop.f32.mrb[0].mxu0
        %v3290 = vadd.f32 %v1265, %v3289
        %v3291 = vpop.f32.mrb[0].mxu0
        %v3292 = vadd.f32 %v1269, %v3291
        %v3293 = vpop.f32.mrb[0].mxu0
        %v3294 = vadd.f32 %v1265, %v3293
        %v3295 = vpop.f32.mrb[0].mxu0
        %v3296 = vadd.f32 %v1269, %v3295
        %3297 = vmatprep.mubr.bf16.mxu0 %v949
        %3298 = vmatmul.mubr.bf16.gmra.mrb[0].mxu0 %v948
        %v3299 = vpop.f32.mrb[0].mxu0
        %v3300 = vadd.f32 %v1265, %v3299
        %v3301 = vpop.f32.mrb[0].mxu0
        %v3302 = vadd.f32 %v1269, %v3301
        %v3303 = vpop.f32.mrb[0].mxu0
        %v3304 = vadd.f32 %v1265, %v3303
        %v3305 = vpop.f32.mrb[0].mxu0
        %v3306 = vadd.f32 %v1269, %v3305
        %3307 = vmatprep.mubr.bf16.mxu0 %v953
        %3308 = vmatmul.mubr.bf16.gmra.mrb[0].mxu0 %v952
        %v3309 = vpop.f32.mrb[0].mxu0
        %v3310 = vadd.f32 %v1265, %v3309
        %v3311 = vpop.f32.mrb[0].mxu0
        %v3312 = vadd.f32 %v1269, %v3311
        %v3313 = vpop.f32.mrb[0].mxu0
        %v3314 = vadd.f32 %v1265, %v3313
        %v3315 = vpop.f32.mrb[0].mxu0
        %v3316 = vadd.f32 %v1269, %v3315
        %3317 = vmatprep.mubr.bf16.mxu0 %v957
        %3318 = vmatmul.mubr.bf16.gmra.mrb[0].mxu0 %v956
        %v3319 = vpop.f32.mrb[0].mxu0
        %v3320 = vadd.f32 %v1265, %v3319
        %v3321 = vpop.f32.mrb[0].mxu0
        %v3322 = vadd.f32 %v1269, %v3321
        %v3323 = vpop.f32.mrb[0].mxu0
        %v3324 = vadd.f32 %v1265, %v3323
        %v3325 = vpop.f32.mrb[0].mxu0
        %v3326 = vadd.f32 %v1269, %v3325
        %3327 = vmatprep.mubr.bf16.mxu0 %v961
        %3328 = vmatmul.mubr.bf16.gmra.mrb[0].mxu0 %v960
        %v3329 = vpop.f32.mrb[0].mxu0
        %v3330 = vadd.f32 %v1265, %v3329
        %v3331 = vpop.f32.mrb[0].mxu0
        %v3332 = vadd.f32 %v1269, %v3331
        %v3333 = vpop.f32.mrb[0].mxu0
        %v3334 = vadd.f32 %v1265, %v3333
        %v3335 = vpop.f32.mrb[0].mxu0
        %v3336 = vadd.f32 %v1269, %v3335
        %3337 = vmatprep.mubr.bf16.mxu0 %v965
        %3338 = vmatmul.mubr.bf16.gmra.mrb[0].mxu0 %v964
        %v3339 = vpop.f32.mrb[0].mxu0
        %v3340 = vadd.f32 %v1265, %v3339
        %v3341 = vpop.f32.mrb[0].mxu0
        %v3342 = vadd.f32 %v1269, %v3341
        %v3343 = vpop.f32.mrb[0].mxu0
        %v3344 = vadd.f32 %v1265, %v3343
        %v3345 = vpop.f32.mrb[0].mxu0
        %v3346 = vadd.f32 %v1269, %v3345
        %3347 = vmatprep.mubr.bf16.mxu0 %v969
        %3348 = vmatmul.mubr.bf16.gmra.mrb[0].mxu0 %v968
        %v3349 = vpop.f32.mrb[0].mxu0
        %v3350 = vadd.f32 %v1265, %v3349
        %v3351 = vpop.f32.mrb[0].mxu0
        %v3352 = vadd.f32 %v1269, %v3351
        %v3353 = vpop.f32.mrb[0].mxu0
        %v3354 = vadd.f32 %v1265, %v3353
        %v3355 = vpop.f32.mrb[0].mxu0
        %v3356 = vadd.f32 %v1269, %v3355
        %3357 = vmatprep.mubr.bf16.mxu0 %v973
        %3358 = vmatmul.mubr.bf16.gmra.mrb[0].mxu0 %v972
        %v3359 = vpop.f32.mrb[0].mxu0
        %v3360 = vadd.f32 %v1265, %v3359
        %v3361 = vpop.f32.mrb[0].mxu0
        %v3362 = vadd.f32 %v1269, %v3361
        %v3363 = vpop.f32.mrb[0].mxu0
        %v3364 = vadd.f32 %v1265, %v3363
        %v3365 = vpop.f32.mrb[0].mxu0
        %v3366 = vadd.f32 %v1269, %v3365
        %3367 = vmatprep.mubr.bf16.mxu0 %v977
        %3368 = vmatmul.mubr.bf16.gmra.mrb[0].mxu0 %v976
        %v3369 = vpop.f32.mrb[0].mxu0
        %v3370 = vadd.f32 %v1265, %v3369
        %v3371 = vpop.f32.mrb[0].mxu0
        %v3372 = vadd.f32 %v1269, %v3371
        %v3373 = vpop.f32.mrb[0].mxu0
        %v3374 = vadd.f32 %v1265, %v3373
        %v3375 = vpop.f32.mrb[0].mxu0
        %v3376 = vadd.f32 %v1269, %v3375
        %3377 = vmatprep.mubr.bf16.mxu0 %v981
        %3378 = vmatmul.mubr.bf16.gmra.mrb[0].mxu0 %v980
        %v3379 = vpop.f32.mrb[0].mxu0
        %v3380 = vadd.f32 %v1265, %v3379
        %v3381 = vpop.f32.mrb[0].mxu0
        %v3382 = vadd.f32 %v1269, %v3381
        %v3383 = vpop.f32.mrb[0].mxu0
        %v3384 = vadd.f32 %v1265, %v3383
        %v3385 = vpop.f32.mrb[0].mxu0
        %v3386 = vadd.f32 %v1269, %v3385
        %3387 = vmatprep.mubr.bf16.mxu0 %v985
        %3388 = vmatmul.mubr.bf16.gmra.mrb[0].mxu0 %v984
        %v3389 = vpop.f32.mrb[0].mxu0
        %v3390 = vadd.f32 %v1265, %v3389
        %v3391 = vpop.f32.mrb[0].mxu0
        %v3392 = vadd.f32 %v1269, %v3391
        %v3393 = vpop.f32.mrb[0].mxu0
        %v3394 = vadd.f32 %v1265, %v3393
        %v3395 = vpop.f32.mrb[0].mxu0
        %v3396 = vadd.f32 %v1269, %v3395
        %3397 = vdwg.mxu0
        %3398 = vmatprep.subr.bf16.mxu0 %v2102
        %3399 = vmatpush1.bf16.msra.mxu0 %v2101
        %3400 = vmatprep.subr.bf16.mxu0 %v2109
        %3401 = vmatpush1.bf16.msra.mxu0 %v2108
        %3402 = vmatprep.subr.bf16.mxu0 %v2116
        %3403 = vmatpush1.bf16.msra.mxu0 %v2115
        %3404 = vmatprep.subr.bf16.mxu0 %v2123
        %3405 = vmatpush1.bf16.msra.mxu0 %v2122
        %3406 = vmatprep.subr.bf16.mxu0 %v2130
        %3407 = vmatpush1.bf16.msra.mxu0 %v2129
        %3408 = vmatprep.subr.bf16.mxu0 %v2137
        %3409 = vmatpush1.bf16.msra.mxu0 %v2136
        %3410 = vmatprep.subr.bf16.mxu0 %v2144
        %3411 = vmatpush1.bf16.msra.mxu0 %v2143
        %3412 = vmatprep.subr.bf16.mxu0 %v2151
        %3413 = vmatpush1.bf16.msra.mxu0 %v2150
        %3414 = vmatprep.subr.bf16.mxu0 %v2158
        %3415 = vmatpush1.bf16.msra.mxu0 %v2157
        %3416 = vmatprep.subr.bf16.mxu0 %v2165
        %3417 = vmatpush1.bf16.msra.mxu0 %v2164
        %3418 = vmatprep.subr.bf16.mxu0 %v2172
        %3419 = vmatpush1.bf16.msra.mxu0 %v2171
        %3420 = vmatprep.subr.bf16.mxu0 %v2179
        %3421 = vmatpush1.bf16.msra.mxu0 %v2178
        %3422 = vmatprep.subr.bf16.mxu0 %v2186
        %3423 = vmatpush1.bf16.msra.mxu0 %v2185
        %3424 = vmatprep.subr.bf16.mxu0 %v2193
        %3425 = vmatpush1.bf16.msra.mxu0 %v2192
        %3426 = vmatprep.subr.bf16.mxu0 %v2200
        %3427 = vmatpush1.bf16.msra.mxu0 %v2199
        %3428 = vmatprep.subr.bf16.mxu0 %v2207
        %3429 = vmatpush1.bf16.msra.mxu0 %v2206
        %3430 = vmatprep.mubr.bf16.mxu0 %v927
        %3431 = vmatmul.mubr.bf16.gmra.mrb[0].mxu0 %v926
        %v3432 = vpop.f32.mrb[0].mxu0
        %v3433 = vadd.f32 %v3240, %v3432
        %v3434 = vpop.f32.mrb[0].mxu0
        %v3435 = vadd.f32 %v3242, %v3434
        %v3436 = vpop.f32.mrb[0].mxu0
        %v3437 = vadd.f32 %v3244, %v3436
        %v3438 = vpop.f32.mrb[0].mxu0
        %v3439 = vadd.f32 %v3246, %v3438
        %3440 = vmatprep.mubr.bf16.mxu0 %v931
        %3441 = vmatmul.mubr.bf16.gmra.mrb[0].mxu0 %v930
        %v3442 = vpop.f32.mrb[0].mxu0
        %v3443 = vadd.f32 %v3250, %v3442
        %v3444 = vpop.f32.mrb[0].mxu0
        %v3445 = vadd.f32 %v3252, %v3444
        %v3446 = vpop.f32.mrb[0].mxu0
        %v3447 = vadd.f32 %v3254, %v3446
        %v3448 = vpop.f32.mrb[0].mxu0
        %v3449 = vadd.f32 %v3256, %v3448
        %3450 = vmatprep.mubr.bf16.mxu0 %v935
        %3451 = vmatmul.mubr.bf16.gmra.mrb[0].mxu0 %v934
        %v3452 = vpop.f32.mrb[0].mxu0
        %v3453 = vadd.f32 %v3260, %v3452
        %v3454 = vpop.f32.mrb[0].mxu0
        %v3455 = vadd.f32 %v3262, %v3454
        %v3456 = vpop.f32.mrb[0].mxu0
        %v3457 = vadd.f32 %v3264, %v3456
        %v3458 = vpop.f32.mrb[0].mxu0
        %v3459 = vadd.f32 %v3266, %v3458
        %3460 = vmatprep.mubr.bf16.mxu0 %v939
        %3461 = vmatmul.mubr.bf16.gmra.mrb[0].mxu0 %v938
        %v3462 = vpop.f32.mrb[0].mxu0
        %v3463 = vadd.f32 %v3270, %v3462
        %v3464 = vpop.f32.mrb[0].mxu0
        %v3465 = vadd.f32 %v3272, %v3464
        %v3466 = vpop.f32.mrb[0].mxu0
        %v3467 = vadd.f32 %v3274, %v3466
        %v3468 = vpop.f32.mrb[0].mxu0
        %v3469 = vadd.f32 %v3276, %v3468
        %3470 = vmatprep.mubr.bf16.mxu0 %v943
        %3471 = vmatmul.mubr.bf16.gmra.mrb[0].mxu0 %v942
        %v3472 = vpop.f32.mrb[0].mxu0
        %v3473 = vadd.f32 %v3280, %v3472
        %v3474 = vpop.f32.mrb[0].mxu0
        %v3475 = vadd.f32 %v3282, %v3474
        %v3476 = vpop.f32.mrb[0].mxu0
        %v3477 = vadd.f32 %v3284, %v3476
        %v3478 = vpop.f32.mrb[0].mxu0
        %v3479 = vadd.f32 %v3286, %v3478
        %3480 = vmatprep.mubr.bf16.mxu0 %v947
        %3481 = vmatmul.mubr.bf16.gmra.mrb[0].mxu0 %v946
        %v3482 = vpop.f32.mrb[0].mxu0
        %v3483 = vadd.f32 %v3290, %v3482
        %v3484 = vpop.f32.mrb[0].mxu0
        %v3485 = vadd.f32 %v3292, %v3484
        %v3486 = vpop.f32.mrb[0].mxu0
        %v3487 = vadd.f32 %v3294, %v3486
        %v3488 = vpop.f32.mrb[0].mxu0
        %v3489 = vadd.f32 %v3296, %v3488
        %3490 = vmatprep.mubr.bf16.mxu0 %v951
        %3491 = vmatmul.mubr.bf16.gmra.mrb[0].mxu0 %v950
        %v3492 = vpop.f32.mrb[0].mxu0
        %v3493 = vadd.f32 %v3300, %v3492
        %v3494 = vpop.f32.mrb[0].mxu0
        %v3495 = vadd.f32 %v3302, %v3494
        %v3496 = vpop.f32.mrb[0].mxu0
        %v3497 = vadd.f32 %v3304, %v3496
        %v3498 = vpop.f32.mrb[0].mxu0
        %v3499 = vadd.f32 %v3306, %v3498
        %3500 = vmatprep.mubr.bf16.mxu0 %v955
        %3501 = vmatmul.mubr.bf16.gmra.mrb[0].mxu0 %v954
        %v3502 = vpop.f32.mrb[0].mxu0
        %v3503 = vadd.f32 %v3310, %v3502
        %v3504 = vpop.f32.mrb[0].mxu0
        %v3505 = vadd.f32 %v3312, %v3504
        %v3506 = vpop.f32.mrb[0].mxu0
        %v3507 = vadd.f32 %v3314, %v3506
        %v3508 = vpop.f32.mrb[0].mxu0
        %v3509 = vadd.f32 %v3316, %v3508
        %3510 = vmatprep.mubr.bf16.mxu0 %v959
        %3511 = vmatmul.mubr.bf16.gmra.mrb[0].mxu0 %v958
        %v3512 = vpop.f32.mrb[0].mxu0
        %v3513 = vadd.f32 %v3320, %v3512
        %v3514 = vpop.f32.mrb[0].mxu0
        %v3515 = vadd.f32 %v3322, %v3514
        %v3516 = vpop.f32.mrb[0].mxu0
        %v3517 = vadd.f32 %v3324, %v3516
        %v3518 = vpop.f32.mrb[0].mxu0
        %v3519 = vadd.f32 %v3326, %v3518
        %3520 = vmatprep.mubr.bf16.mxu0 %v963
        %3521 = vmatmul.mubr.bf16.gmra.mrb[0].mxu0 %v962
        %v3522 = vpop.f32.mrb[0].mxu0
        %v3523 = vadd.f32 %v3330, %v3522
        %v3524 = vpop.f32.mrb[0].mxu0
        %v3525 = vadd.f32 %v3332, %v3524
        %v3526 = vpop.f32.mrb[0].mxu0
        %v3527 = vadd.f32 %v3334, %v3526
        %v3528 = vpop.f32.mrb[0].mxu0
        %v3529 = vadd.f32 %v3336, %v3528
        %3530 = vmatprep.mubr.bf16.mxu0 %v967
        %3531 = vmatmul.mubr.bf16.gmra.mrb[0].mxu0 %v966
        %v3532 = vpop.f32.mrb[0].mxu0
        %v3533 = vadd.f32 %v3340, %v3532
        %v3534 = vpop.f32.mrb[0].mxu0
        %v3535 = vadd.f32 %v3342, %v3534
        %v3536 = vpop.f32.mrb[0].mxu0
        %v3537 = vadd.f32 %v3344, %v3536
        %v3538 = vpop.f32.mrb[0].mxu0
        %v3539 = vadd.f32 %v3346, %v3538
        %3540 = vmatprep.mubr.bf16.mxu0 %v971
        %3541 = vmatmul.mubr.bf16.gmra.mrb[0].mxu0 %v970
        %v3542 = vpop.f32.mrb[0].mxu0
        %v3543 = vadd.f32 %v3350, %v3542
        %v3544 = vpop.f32.mrb[0].mxu0
        %v3545 = vadd.f32 %v3352, %v3544
        %v3546 = vpop.f32.mrb[0].mxu0
        %v3547 = vadd.f32 %v3354, %v3546
        %v3548 = vpop.f32.mrb[0].mxu0
        %v3549 = vadd.f32 %v3356, %v3548
        %3550 = vmatprep.mubr.bf16.mxu0 %v975
        %3551 = vmatmul.mubr.bf16.gmra.mrb[0].mxu0 %v974
        %v3552 = vpop.f32.mrb[0].mxu0
        %v3553 = vadd.f32 %v3360, %v3552
        %v3554 = vpop.f32.mrb[0].mxu0
        %v3555 = vadd.f32 %v3362, %v3554
        %v3556 = vpop.f32.mrb[0].mxu0
        %v3557 = vadd.f32 %v3364, %v3556
        %v3558 = vpop.f32.mrb[0].mxu0
        %v3559 = vadd.f32 %v3366, %v3558
        %3560 = vmatprep.mubr.bf16.mxu0 %v979
        %3561 = vmatmul.mubr.bf16.gmra.mrb[0].mxu0 %v978
        %v3562 = vpop.f32.mrb[0].mxu0
        %v3563 = vadd.f32 %v3370, %v3562
        %v3564 = vpop.f32.mrb[0].mxu0
        %v3565 = vadd.f32 %v3372, %v3564
        %v3566 = vpop.f32.mrb[0].mxu0
        %v3567 = vadd.f32 %v3374, %v3566
        %v3568 = vpop.f32.mrb[0].mxu0
        %v3569 = vadd.f32 %v3376, %v3568
        %3570 = vmatprep.mubr.bf16.mxu0 %v983
        %3571 = vmatmul.mubr.bf16.gmra.mrb[0].mxu0 %v982
        %v3572 = vpop.f32.mrb[0].mxu0
        %v3573 = vadd.f32 %v3380, %v3572
        %v3574 = vpop.f32.mrb[0].mxu0
        %v3575 = vadd.f32 %v3382, %v3574
        %v3576 = vpop.f32.mrb[0].mxu0
        %v3577 = vadd.f32 %v3384, %v3576
        %v3578 = vpop.f32.mrb[0].mxu0
        %v3579 = vadd.f32 %v3386, %v3578
        %3580 = vmatprep.mubr.bf16.mxu0 %v987
        %3581 = vmatmul.mubr.bf16.gmra.mrb[0].mxu0 %v986
        %v3582 = vpop.f32.mrb[0].mxu0
        %v3583 = vadd.f32 %v3390, %v3582
        %v3584 = vpop.f32.mrb[0].mxu0
        %v3585 = vadd.f32 %v3392, %v3584
        %v3586 = vpop.f32.mrb[0].mxu0
        %v3587 = vadd.f32 %v3394, %v3586
        %v3588 = vpop.f32.mrb[0].mxu0
        %v3589 = vadd.f32 %v3396, %v3588
        %3590 = vdwg.mxu0
        %3591 = vmatprep.subr.bf16.mxu0 0
        %3592 = vmatpush1.bf16.msra.mxu0 %v1991
        %3593 = vmatprep.subr.bf16.mxu0 0
        %3594 = vmatpush1.bf16.msra.mxu0 %v1998
        %3595 = vmatprep.subr.bf16.mxu0 0
        %3596 = vmatpush1.bf16.msra.mxu0 %v2005
        %3597 = vmatprep.subr.bf16.mxu0 0
        %3598 = vmatpush1.bf16.msra.mxu0 %v2012
        %3599 = vmatprep.subr.bf16.mxu0 0
        %3600 = vmatpush1.bf16.msra.mxu0 %v2019
        %3601 = vmatprep.subr.bf16.mxu0 0
        %3602 = vmatpush1.bf16.msra.mxu0 %v2026
        %3603 = vmatprep.subr.bf16.mxu0 0
        %3604 = vmatpush1.bf16.msra.mxu0 %v2033
        %3605 = vmatprep.subr.bf16.mxu0 0
        %3606 = vmatpush1.bf16.msra.mxu0 %v2040
        %3607 = vmatprep.subr.bf16.mxu0 0
        %3608 = vmatpush1.bf16.msra.mxu0 %v2047
        %3609 = vmatprep.subr.bf16.mxu0 0
        %3610 = vmatpush1.bf16.msra.mxu0 %v2054
        %3611 = vmatprep.subr.bf16.mxu0 0
        %3612 = vmatpush1.bf16.msra.mxu0 %v2061
        %3613 = vmatprep.subr.bf16.mxu0 0
        %3614 = vmatpush1.bf16.msra.mxu0 %v2068
        %3615 = vmatprep.subr.bf16.mxu0 0
        %3616 = vmatpush1.bf16.msra.mxu0 %v2075
        %3617 = vmatprep.subr.bf16.mxu0 0
        %3618 = vmatpush1.bf16.msra.mxu0 %v2082
        %3619 = vmatprep.subr.bf16.mxu0 0
        %3620 = vmatpush1.bf16.msra.mxu0 %v2089
        %3621 = vmatprep.subr.bf16.mxu0 0
        %3622 = vmatpush1.bf16.msra.mxu0 %v2096
        %3623 = vmatprep.mubr.bf16.mxu0 %v925
        %3624 = vmatmul.mubr.bf16.gmra.mrb[0].mxu0 %v924
        %v3625 = vpop.f32.mrb[0].mxu0
        %v3626 = vadd.f32 %v1273, %v3625
        %v3627 = vpop.f32.mrb[0].mxu0
        %v3628 = vpop.f32.mrb[0].mxu0
        %v3629 = vadd.f32 %v1273, %v3628
        %v3630 = vpop.f32.mrb[0].mxu0
        %3631 = vmatprep.mubr.bf16.mxu0 %v929
        %3632 = vmatmul.mubr.bf16.gmra.mrb[0].mxu0 %v928
        %v3633 = vpop.f32.mrb[0].mxu0
        %v3634 = vadd.f32 %v1273, %v3633
        %v3635 = vpop.f32.mrb[0].mxu0
        %v3636 = vpop.f32.mrb[0].mxu0
        %v3637 = vadd.f32 %v1273, %v3636
        %v3638 = vpop.f32.mrb[0].mxu0
        %3639 = vmatprep.mubr.bf16.mxu0 %v933
        %3640 = vmatmul.mubr.bf16.gmra.mrb[0].mxu0 %v932
        %v3641 = vpop.f32.mrb[0].mxu0
        %v3642 = vadd.f32 %v1273, %v3641
        %v3643 = vpop.f32.mrb[0].mxu0
        %v3644 = vpop.f32.mrb[0].mxu0
        %v3645 = vadd.f32 %v1273, %v3644
        %v3646 = vpop.f32.mrb[0].mxu0
        %3647 = vmatprep.mubr.bf16.mxu0 %v937
        %3648 = vmatmul.mubr.bf16.gmra.mrb[0].mxu0 %v936
        %v3649 = vpop.f32.mrb[0].mxu0
        %v3650 = vadd.f32 %v1273, %v3649
        %v3651 = vpop.f32.mrb[0].mxu0
        %v3652 = vpop.f32.mrb[0].mxu0
        %v3653 = vadd.f32 %v1273, %v3652
        %v3654 = vpop.f32.mrb[0].mxu0
        %3655 = vmatprep.mubr.bf16.mxu0 %v941
        %3656 = vmatmul.mubr.bf16.gmra.mrb[0].mxu0 %v940
        %v3657 = vpop.f32.mrb[0].mxu0
        %v3658 = vadd.f32 %v1273, %v3657
        %v3659 = vpop.f32.mrb[0].mxu0
        %v3660 = vpop.f32.mrb[0].mxu0
        %v3661 = vadd.f32 %v1273, %v3660
        %v3662 = vpop.f32.mrb[0].mxu0
        %3663 = vmatprep.mubr.bf16.mxu0 %v945
        %3664 = vmatmul.mubr.bf16.gmra.mrb[0].mxu0 %v944
        %v3665 = vpop.f32.mrb[0].mxu0
        %v3666 = vadd.f32 %v1273, %v3665
        %v3667 = vpop.f32.mrb[0].mxu0
        %v3668 = vpop.f32.mrb[0].mxu0
        %v3669 = vadd.f32 %v1273, %v3668
        %v3670 = vpop.f32.mrb[0].mxu0
        %3671 = vmatprep.mubr.bf16.mxu0 %v949
        %3672 = vmatmul.mubr.bf16.gmra.mrb[0].mxu0 %v948
        %v3673 = vpop.f32.mrb[0].mxu0
        %v3674 = vadd.f32 %v1273, %v3673
        %v3675 = vpop.f32.mrb[0].mxu0
        %v3676 = vpop.f32.mrb[0].mxu0
        %v3677 = vadd.f32 %v1273, %v3676
        %v3678 = vpop.f32.mrb[0].mxu0
        %3679 = vmatprep.mubr.bf16.mxu0 %v953
        %3680 = vmatmul.mubr.bf16.gmra.mrb[0].mxu0 %v952
        %v3681 = vpop.f32.mrb[0].mxu0
        %v3682 = vadd.f32 %v1273, %v3681
        %v3683 = vpop.f32.mrb[0].mxu0
        %v3684 = vpop.f32.mrb[0].mxu0
        %v3685 = vadd.f32 %v1273, %v3684
        %v3686 = vpop.f32.mrb[0].mxu0
        %3687 = vmatprep.mubr.bf16.mxu0 %v957
        %3688 = vmatmul.mubr.bf16.gmra.mrb[0].mxu0 %v956
        %v3689 = vpop.f32.mrb[0].mxu0
        %v3690 = vadd.f32 %v1273, %v3689
        %v3691 = vpop.f32.mrb[0].mxu0
        %v3692 = vpop.f32.mrb[0].mxu0
        %v3693 = vadd.f32 %v1273, %v3692
        %v3694 = vpop.f32.mrb[0].mxu0
        %3695 = vmatprep.mubr.bf16.mxu0 %v961
        %3696 = vmatmul.mubr.bf16.gmra.mrb[0].mxu0 %v960
        %v3697 = vpop.f32.mrb[0].mxu0
        %v3698 = vadd.f32 %v1273, %v3697
        %v3699 = vpop.f32.mrb[0].mxu0
        %v3700 = vpop.f32.mrb[0].mxu0
        %v3701 = vadd.f32 %v1273, %v3700
        %v3702 = vpop.f32.mrb[0].mxu0
        %3703 = vmatprep.mubr.bf16.mxu0 %v965
        %3704 = vmatmul.mubr.bf16.gmra.mrb[0].mxu0 %v964
        %v3705 = vpop.f32.mrb[0].mxu0
        %v3706 = vadd.f32 %v1273, %v3705
        %v3707 = vpop.f32.mrb[0].mxu0
        %v3708 = vpop.f32.mrb[0].mxu0
        %v3709 = vadd.f32 %v1273, %v3708
        %v3710 = vpop.f32.mrb[0].mxu0
        %3711 = vmatprep.mubr.bf16.mxu0 %v969
        %3712 = vmatmul.mubr.bf16.gmra.mrb[0].mxu0 %v968
        %v3713 = vpop.f32.mrb[0].mxu0
        %v3714 = vadd.f32 %v1273, %v3713
        %v3715 = vpop.f32.mrb[0].mxu0
        %v3716 = vpop.f32.mrb[0].mxu0
        %v3717 = vadd.f32 %v1273, %v3716
        %v3718 = vpop.f32.mrb[0].mxu0
        %3719 = vmatprep.mubr.bf16.mxu0 %v973
        %3720 = vmatmul.mubr.bf16.gmra.mrb[0].mxu0 %v972
        %v3721 = vpop.f32.mrb[0].mxu0
        %v3722 = vadd.f32 %v1273, %v3721
        %v3723 = vpop.f32.mrb[0].mxu0
        %v3724 = vpop.f32.mrb[0].mxu0
        %v3725 = vadd.f32 %v1273, %v3724
        %v3726 = vpop.f32.mrb[0].mxu0
        %3727 = vmatprep.mubr.bf16.mxu0 %v977
        %3728 = vmatmul.mubr.bf16.gmra.mrb[0].mxu0 %v976
        %v3729 = vpop.f32.mrb[0].mxu0
        %v3730 = vadd.f32 %v1273, %v3729
        %v3731 = vpop.f32.mrb[0].mxu0
        %v3732 = vpop.f32.mrb[0].mxu0
        %v3733 = vadd.f32 %v1273, %v3732
        %v3734 = vpop.f32.mrb[0].mxu0
        %3735 = vmatprep.mubr.bf16.mxu0 %v981
        %3736 = vmatmul.mubr.bf16.gmra.mrb[0].mxu0 %v980
        %v3737 = vpop.f32.mrb[0].mxu0
        %v3738 = vadd.f32 %v1273, %v3737
        %v3739 = vpop.f32.mrb[0].mxu0
        %v3740 = vpop.f32.mrb[0].mxu0
        %v3741 = vadd.f32 %v1273, %v3740
        %v3742 = vpop.f32.mrb[0].mxu0
        %3743 = vmatprep.mubr.bf16.mxu0 %v985
        %3744 = vmatmul.mubr.bf16.gmra.mrb[0].mxu0 %v984
        %v3745 = vpop.f32.mrb[0].mxu0
        %v3746 = vadd.f32 %v1273, %v3745
        %v3747 = vpop.f32.mrb[0].mxu0
        %v3748 = vpop.f32.mrb[0].mxu0
        %v3749 = vadd.f32 %v1273, %v3748
        %v3750 = vpop.f32.mrb[0].mxu0
        %3751 = vdwg.mxu0
        %3752 = vmatprep.subr.bf16.mxu0 0
        %3753 = vmatpush1.bf16.msra.mxu0 %v2103
        %3754 = vmatprep.subr.bf16.mxu0 0
        %3755 = vmatpush1.bf16.msra.mxu0 %v2110
        %3756 = vmatprep.subr.bf16.mxu0 0
        %3757 = vmatpush1.bf16.msra.mxu0 %v2117
        %3758 = vmatprep.subr.bf16.mxu0 0
        %3759 = vmatpush1.bf16.msra.mxu0 %v2124
        %3760 = vmatprep.subr.bf16.mxu0 0
        %3761 = vmatpush1.bf16.msra.mxu0 %v2131
        %3762 = vmatprep.subr.bf16.mxu0 0
        %3763 = vmatpush1.bf16.msra.mxu0 %v2138
        %3764 = vmatprep.subr.bf16.mxu0 0
        %3765 = vmatpush1.bf16.msra.mxu0 %v2145
        %3766 = vmatprep.subr.bf16.mxu0 0
        %3767 = vmatpush1.bf16.msra.mxu0 %v2152
        %3768 = vmatprep.subr.bf16.mxu0 0
        %3769 = vmatpush1.bf16.msra.mxu0 %v2159
        %3770 = vmatprep.subr.bf16.mxu0 0
        %3771 = vmatpush1.bf16.msra.mxu0 %v2166
        %3772 = vmatprep.subr.bf16.mxu0 0
        %3773 = vmatpush1.bf16.msra.mxu0 %v2173
        %3774 = vmatprep.subr.bf16.mxu0 0
        %3775 = vmatpush1.bf16.msra.mxu0 %v2180
        %3776 = vmatprep.subr.bf16.mxu0 0
        %3777 = vmatpush1.bf16.msra.mxu0 %v2187
        %3778 = vmatprep.subr.bf16.mxu0 0
        %3779 = vmatpush1.bf16.msra.mxu0 %v2194
        %3780 = vmatprep.subr.bf16.mxu0 0
        %3781 = vmatpush1.bf16.msra.mxu0 %v2201
        %3782 = vmatprep.subr.bf16.mxu0 0
        %3783 = vmatpush1.bf16.msra.mxu0 %v2208
        %3784 = vmatprep.mubr.bf16.mxu0 %v927
        %3785 = vmatmul.mubr.bf16.gmra.mrb[0].mxu0 %v926
        %v3786 = vpop.f32.mrb[0].mxu0
        %v3787 = vadd.f32 %v3626, %v3786
        %v3788 = vpop.f32.mrb[0].mxu0
        %v3789 = vpop.f32.mrb[0].mxu0
        %v3790 = vadd.f32 %v3629, %v3789
        %v3791 = vpop.f32.mrb[0].mxu0
        %3792 = vmatprep.mubr.bf16.mxu0 %v931
        %3793 = vmatmul.mubr.bf16.gmra.mrb[0].mxu0 %v930
        %v3794 = vpop.f32.mrb[0].mxu0
        %v3795 = vadd.f32 %v3634, %v3794
        %v3796 = vpop.f32.mrb[0].mxu0
        %v3797 = vpop.f32.mrb[0].mxu0
        %v3798 = vadd.f32 %v3637, %v3797
        %v3799 = vpop.f32.mrb[0].mxu0
        %3800 = vmatprep.mubr.bf16.mxu0 %v935
        %3801 = vmatmul.mubr.bf16.gmra.mrb[0].mxu0 %v934
        %v3802 = vpop.f32.mrb[0].mxu0
        %v3803 = vadd.f32 %v3642, %v3802
        %v3804 = vpop.f32.mrb[0].mxu0
        %v3805 = vpop.f32.mrb[0].mxu0
        %v3806 = vadd.f32 %v3645, %v3805
        %v3807 = vpop.f32.mrb[0].mxu0
        %3808 = vmatprep.mubr.bf16.mxu0 %v939
        %3809 = vmatmul.mubr.bf16.gmra.mrb[0].mxu0 %v938
        %v3810 = vpop.f32.mrb[0].mxu0
        %v3811 = vadd.f32 %v3650, %v3810
        %v3812 = vpop.f32.mrb[0].mxu0
        %v3813 = vpop.f32.mrb[0].mxu0
        %v3814 = vadd.f32 %v3653, %v3813
        %v3815 = vpop.f32.mrb[0].mxu0
        %3816 = vmatprep.mubr.bf16.mxu0 %v943
        %3817 = vmatmul.mubr.bf16.gmra.mrb[0].mxu0 %v942
        %v3818 = vpop.f32.mrb[0].mxu0
        %v3819 = vadd.f32 %v3658, %v3818
        %v3820 = vpop.f32.mrb[0].mxu0
        %v3821 = vpop.f32.mrb[0].mxu0
        %v3822 = vadd.f32 %v3661, %v3821
        %v3823 = vpop.f32.mrb[0].mxu0
        %3824 = vmatprep.mubr.bf16.mxu0 %v947
        %3825 = vmatmul.mubr.bf16.gmra.mrb[0].mxu0 %v946
        %v3826 = vpop.f32.mrb[0].mxu0
        %v3827 = vadd.f32 %v3666, %v3826
        %v3828 = vpop.f32.mrb[0].mxu0
        %v3829 = vpop.f32.mrb[0].mxu0
        %v3830 = vadd.f32 %v3669, %v3829
        %v3831 = vpop.f32.mrb[0].mxu0
        %3832 = vmatprep.mubr.bf16.mxu0 %v951
        %3833 = vmatmul.mubr.bf16.gmra.mrb[0].mxu0 %v950
        %v3834 = vpop.f32.mrb[0].mxu0
        %v3835 = vadd.f32 %v3674, %v3834
        %v3836 = vpop.f32.mrb[0].mxu0
        %v3837 = vpop.f32.mrb[0].mxu0
        %v3838 = vadd.f32 %v3677, %v3837
        %v3839 = vpop.f32.mrb[0].mxu0
        %3840 = vmatprep.mubr.bf16.mxu0 %v955
        %3841 = vmatmul.mubr.bf16.gmra.mrb[0].mxu0 %v954
        %v3842 = vpop.f32.mrb[0].mxu0
        %v3843 = vadd.f32 %v3682, %v3842
        %v3844 = vpop.f32.mrb[0].mxu0
        %v3845 = vpop.f32.mrb[0].mxu0
        %v3846 = vadd.f32 %v3685, %v3845
        %v3847 = vpop.f32.mrb[0].mxu0
        %3848 = vmatprep.mubr.bf16.mxu0 %v959
        %3849 = vmatmul.mubr.bf16.gmra.mrb[0].mxu0 %v958
        %v3850 = vpop.f32.mrb[0].mxu0
        %v3851 = vadd.f32 %v3690, %v3850
        %v3852 = vpop.f32.mrb[0].mxu0
        %v3853 = vpop.f32.mrb[0].mxu0
        %v3854 = vadd.f32 %v3693, %v3853
        %v3855 = vpop.f32.mrb[0].mxu0
        %3856 = vmatprep.mubr.bf16.mxu0 %v963
        %3857 = vmatmul.mubr.bf16.gmra.mrb[0].mxu0 %v962
        %v3858 = vpop.f32.mrb[0].mxu0
        %v3859 = vadd.f32 %v3698, %v3858
        %v3860 = vpop.f32.mrb[0].mxu0
        %v3861 = vpop.f32.mrb[0].mxu0
        %v3862 = vadd.f32 %v3701, %v3861
        %v3863 = vpop.f32.mrb[0].mxu0
        %3864 = vmatprep.mubr.bf16.mxu0 %v967
        %3865 = vmatmul.mubr.bf16.gmra.mrb[0].mxu0 %v966
        %v3866 = vpop.f32.mrb[0].mxu0
        %v3867 = vadd.f32 %v3706, %v3866
        %v3868 = vpop.f32.mrb[0].mxu0
        %v3869 = vpop.f32.mrb[0].mxu0
        %v3870 = vadd.f32 %v3709, %v3869
        %v3871 = vpop.f32.mrb[0].mxu0
        %3872 = vmatprep.mubr.bf16.mxu0 %v971
        %3873 = vmatmul.mubr.bf16.gmra.mrb[0].mxu0 %v970
        %v3874 = vpop.f32.mrb[0].mxu0
        %v3875 = vadd.f32 %v3714, %v3874
        %v3876 = vpop.f32.mrb[0].mxu0
        %v3877 = vpop.f32.mrb[0].mxu0
        %v3878 = vadd.f32 %v3717, %v3877
        %v3879 = vpop.f32.mrb[0].mxu0
        %3880 = vmatprep.mubr.bf16.mxu0 %v975
        %3881 = vmatmul.mubr.bf16.gmra.mrb[0].mxu0 %v974
        %v3882 = vpop.f32.mrb[0].mxu0
        %v3883 = vadd.f32 %v3722, %v3882
        %v3884 = vpop.f32.mrb[0].mxu0
        %v3885 = vpop.f32.mrb[0].mxu0
        %v3886 = vadd.f32 %v3725, %v3885
        %v3887 = vpop.f32.mrb[0].mxu0
        %3888 = vmatprep.mubr.bf16.mxu0 %v979
        %3889 = vmatmul.mubr.bf16.gmra.mrb[0].mxu0 %v978
        %v3890 = vpop.f32.mrb[0].mxu0
        %v3891 = vadd.f32 %v3730, %v3890
        %v3892 = vpop.f32.mrb[0].mxu0
        %v3893 = vpop.f32.mrb[0].mxu0
        %v3894 = vadd.f32 %v3733, %v3893
        %v3895 = vpop.f32.mrb[0].mxu0
        %3896 = vmatprep.mubr.bf16.mxu0 %v983
        %3897 = vmatmul.mubr.bf16.gmra.mrb[0].mxu0 %v982
        %v3898 = vpop.f32.mrb[0].mxu0
        %v3899 = vadd.f32 %v3738, %v3898
        %v3900 = vpop.f32.mrb[0].mxu0
        %v3901 = vpop.f32.mrb[0].mxu0
        %v3902 = vadd.f32 %v3741, %v3901
        %v3903 = vpop.f32.mrb[0].mxu0
        %3904 = vmatprep.mubr.bf16.mxu0 %v987
        %3905 = vmatmul.mubr.bf16.gmra.mrb[0].mxu0 %v986
        %v3906 = vpop.f32.mrb[0].mxu0
        %v3907 = vadd.f32 %v3746, %v3906
        %v3908 = vpop.f32.mrb[0].mxu0
        %v3909 = vpop.f32.mrb[0].mxu0
        %v3910 = vadd.f32 %v3749, %v3909
        %v3911 = vpop.f32.mrb[0].mxu0
        %3912 = vdwg.mxu0
        %v3913 = vmul.f32 %v2661, 0.5
        %v3914 = vmul.f32 %v2663, 0.5
        %v3915 = vmul.f32 %v3047, 0.5
        %v3916 = vmul.f32 %v3049, 0.5
        %v3917 = vmul.f32 %v3433, 0.5
        %v3918 = vmul.f32 %v3435, 0.5
        %v3919 = vmul.f32 %v3787, 0.5
        %v3920 = vmul.f32 %v2665, 0.5
        %v3921 = vmul.f32 %v2667, 0.5
        %v3922 = vmul.f32 %v3051, 0.5
        %v3923 = vmul.f32 %v3053, 0.5
        %v3924 = vmul.f32 %v3437, 0.5
        %v3925 = vmul.f32 %v3439, 0.5
        %v3926 = vmul.f32 %v3790, 0.5
        %v3927 = vmul.f32 %v2671, 0.5
        %v3928 = vmul.f32 %v2673, 0.5
        %v3929 = vmul.f32 %v3057, 0.5
        %v3930 = vmul.f32 %v3059, 0.5
        %v3931 = vmul.f32 %v3443, 0.5
        %v3932 = vmul.f32 %v3445, 0.5
        %v3933 = vmul.f32 %v3795, 0.5
        %v3934 = vmul.f32 %v2675, 0.5
        %v3935 = vmul.f32 %v2677, 0.5
        %v3936 = vmul.f32 %v3061, 0.5
        %v3937 = vmul.f32 %v3063, 0.5
        %v3938 = vmul.f32 %v3447, 0.5
        %v3939 = vmul.f32 %v3449, 0.5
        %v3940 = vmul.f32 %v3798, 0.5
        %v3941 = vmul.f32 %v2681, 0.5
        %v3942 = vmul.f32 %v2683, 0.5
        %v3943 = vmul.f32 %v3067, 0.5
        %v3944 = vmul.f32 %v3069, 0.5
        %v3945 = vmul.f32 %v3453, 0.5
        %v3946 = vmul.f32 %v3455, 0.5
        %v3947 = vmul.f32 %v3803, 0.5
        %v3948 = vmul.f32 %v2685, 0.5
        %v3949 = vmul.f32 %v2687, 0.5
        %v3950 = vmul.f32 %v3071, 0.5
        %v3951 = vmul.f32 %v3073, 0.5
        %v3952 = vmul.f32 %v3457, 0.5
        %v3953 = vmul.f32 %v3459, 0.5
        %v3954 = vmul.f32 %v3806, 0.5
        %v3955 = vmul.f32 %v2691, 0.5
        %v3956 = vmul.f32 %v2693, 0.5
        %v3957 = vmul.f32 %v3077, 0.5
        %v3958 = vmul.f32 %v3079, 0.5
        %v3959 = vmul.f32 %v3463, 0.5
        %v3960 = vmul.f32 %v3465, 0.5
        %v3961 = vmul.f32 %v3811, 0.5
        %v3962 = vmul.f32 %v2695, 0.5
        %v3963 = vmul.f32 %v2697, 0.5
        %v3964 = vmul.f32 %v3081, 0.5
        %v3965 = vmul.f32 %v3083, 0.5
        %v3966 = vmul.f32 %v3467, 0.5
        %v3967 = vmul.f32 %v3469, 0.5
        %v3968 = vmul.f32 %v3814, 0.5
        %v3969 = vmul.f32 %v2701, 0.5
        %v3970 = vmul.f32 %v2703, 0.5
        %v3971 = vmul.f32 %v3087, 0.5
        %v3972 = vmul.f32 %v3089, 0.5
        %v3973 = vmul.f32 %v3473, 0.5
        %v3974 = vmul.f32 %v3475, 0.5
        %v3975 = vmul.f32 %v3819, 0.5
        %v3976 = vmul.f32 %v2705, 0.5
        %v3977 = vmul.f32 %v2707, 0.5
        %v3978 = vmul.f32 %v3091, 0.5
        %v3979 = vmul.f32 %v3093, 0.5
        %v3980 = vmul.f32 %v3477, 0.5
        %v3981 = vmul.f32 %v3479, 0.5
        %v3982 = vmul.f32 %v3822, 0.5
        %v3983 = vmul.f32 %v2711, 0.5
        %v3984 = vmul.f32 %v2713, 0.5
        %v3985 = vmul.f32 %v3097, 0.5
        %v3986 = vmul.f32 %v3099, 0.5
        %v3987 = vmul.f32 %v3483, 0.5
        %v3988 = vmul.f32 %v3485, 0.5
        %v3989 = vmul.f32 %v3827, 0.5
        %v3990 = vmul.f32 %v2715, 0.5
        %v3991 = vmul.f32 %v2717, 0.5
        %v3992 = vmul.f32 %v3101, 0.5
        %v3993 = vmul.f32 %v3103, 0.5
        %v3994 = vmul.f32 %v3487, 0.5
        %v3995 = vmul.f32 %v3489, 0.5
        %v3996 = vmul.f32 %v3830, 0.5
        %v3997 = vmul.f32 %v2721, 0.5
        %v3998 = vmul.f32 %v2723, 0.5
        %v3999 = vmul.f32 %v3107, 0.5
        %v4000 = vmul.f32 %v3109, 0.5
        %v4001 = vmul.f32 %v3493, 0.5
        %v4002 = vmul.f32 %v3495, 0.5
        %v4003 = vmul.f32 %v3835, 0.5
        %v4004 = vmul.f32 %v2725, 0.5
        %v4005 = vmul.f32 %v2727, 0.5
        %v4006 = vmul.f32 %v3111, 0.5
        %v4007 = vmul.f32 %v3113, 0.5
        %v4008 = vmul.f32 %v3497, 0.5
        %v4009 = vmul.f32 %v3499, 0.5
        %v4010 = vmul.f32 %v3838, 0.5
        %v4011 = vmul.f32 %v2731, 0.5
        %v4012 = vmul.f32 %v2733, 0.5
        %v4013 = vmul.f32 %v3117, 0.5
        %v4014 = vmul.f32 %v3119, 0.5
        %v4015 = vmul.f32 %v3503, 0.5
        %v4016 = vmul.f32 %v3505, 0.5
        %v4017 = vmul.f32 %v3843, 0.5
        %v4018 = vmul.f32 %v2735, 0.5
        %v4019 = vmul.f32 %v2737, 0.5
        %v4020 = vmul.f32 %v3121, 0.5
        %v4021 = vmul.f32 %v3123, 0.5
        %v4022 = vmul.f32 %v3507, 0.5
        %v4023 = vmul.f32 %v3509, 0.5
        %v4024 = vmul.f32 %v3846, 0.5
        %v4025 = vmul.f32 %v2741, 0.5
        %v4026 = vmul.f32 %v2743, 0.5
        %v4027 = vmul.f32 %v3127, 0.5
        %v4028 = vmul.f32 %v3129, 0.5
        %v4029 = vmul.f32 %v3513, 0.5
        %v4030 = vmul.f32 %v3515, 0.5
        %v4031 = vmul.f32 %v3851, 0.5
        %v4032 = vmul.f32 %v2745, 0.5
        %v4033 = vmul.f32 %v2747, 0.5
        %v4034 = vmul.f32 %v3131, 0.5
        %v4035 = vmul.f32 %v3133, 0.5
        %v4036 = vmul.f32 %v3517, 0.5
        %v4037 = vmul.f32 %v3519, 0.5
        %v4038 = vmul.f32 %v3854, 0.5
        %v4039 = vmul.f32 %v2751, 0.5
        %v4040 = vmul.f32 %v2753, 0.5
        %v4041 = vmul.f32 %v3137, 0.5
        %v4042 = vmul.f32 %v3139, 0.5
        %v4043 = vmul.f32 %v3523, 0.5
        %v4044 = vmul.f32 %v3525, 0.5
        %v4045 = vmul.f32 %v3859, 0.5
        %v4046 = vmul.f32 %v2755, 0.5
        %v4047 = vmul.f32 %v2757, 0.5
        %v4048 = vmul.f32 %v3141, 0.5
        %v4049 = vmul.f32 %v3143, 0.5
        %v4050 = vmul.f32 %v3527, 0.5
        %v4051 = vmul.f32 %v3529, 0.5
        %v4052 = vmul.f32 %v3862, 0.5
        %v4053 = vmul.f32 %v2761, 0.5
        %v4054 = vmul.f32 %v2763, 0.5
        %v4055 = vmul.f32 %v3147, 0.5
        %v4056 = vmul.f32 %v3149, 0.5
        %v4057 = vmul.f32 %v3533, 0.5
        %v4058 = vmul.f32 %v3535, 0.5
        %v4059 = vmul.f32 %v3867, 0.5
        %v4060 = vmul.f32 %v2765, 0.5
        %v4061 = vmul.f32 %v2767, 0.5
        %v4062 = vmul.f32 %v3151, 0.5
        %v4063 = vmul.f32 %v3153, 0.5
        %v4064 = vmul.f32 %v3537, 0.5
        %v4065 = vmul.f32 %v3539, 0.5
        %v4066 = vmul.f32 %v3870, 0.5
        %v4067 = vmul.f32 %v2771, 0.5
        %v4068 = vmul.f32 %v2773, 0.5
        %v4069 = vmul.f32 %v3157, 0.5
        %v4070 = vmul.f32 %v3159, 0.5
        %v4071 = vmul.f32 %v3543, 0.5
        %v4072 = vmul.f32 %v3545, 0.5
        %v4073 = vmul.f32 %v3875, 0.5
        %v4074 = vmul.f32 %v2775, 0.5
        %v4075 = vmul.f32 %v2777, 0.5
        %v4076 = vmul.f32 %v3161, 0.5
        %v4077 = vmul.f32 %v3163, 0.5
        %v4078 = vmul.f32 %v3547, 0.5
        %v4079 = vmul.f32 %v3549, 0.5
        %v4080 = vmul.f32 %v3878, 0.5
        %v4081 = vmul.f32 %v2781, 0.5
        %v4082 = vmul.f32 %v2783, 0.5
        %v4083 = vmul.f32 %v3167, 0.5
        %v4084 = vmul.f32 %v3169, 0.5
        %v4085 = vmul.f32 %v3553, 0.5
        %v4086 = vmul.f32 %v3555, 0.5
        %v4087 = vmul.f32 %v3883, 0.5
        %v4088 = vmul.f32 %v2785, 0.5
        %v4089 = vmul.f32 %v2787, 0.5
        %v4090 = vmul.f32 %v3171, 0.5
        %v4091 = vmul.f32 %v3173, 0.5
        %v4092 = vmul.f32 %v3557, 0.5
        %v4093 = vmul.f32 %v3559, 0.5
        %v4094 = vmul.f32 %v3886, 0.5
        %v4095 = vmul.f32 %v2791, 0.5
        %v4096 = vmul.f32 %v2793, 0.5
        %v4097 = vmul.f32 %v3177, 0.5
        %v4098 = vmul.f32 %v3179, 0.5
        %v4099 = vmul.f32 %v3563, 0.5
        %v4100 = vmul.f32 %v3565, 0.5
        %v4101 = vmul.f32 %v3891, 0.5
        %v4102 = vmul.f32 %v2795, 0.5
        %v4103 = vmul.f32 %v2797, 0.5
        %v4104 = vmul.f32 %v3181, 0.5
        %v4105 = vmul.f32 %v3183, 0.5
        %v4106 = vmul.f32 %v3567, 0.5
        %v4107 = vmul.f32 %v3569, 0.5
        %v4108 = vmul.f32 %v3894, 0.5
        %v4109 = vmul.f32 %v2801, 0.5
        %v4110 = vmul.f32 %v2803, 0.5
        %v4111 = vmul.f32 %v3187, 0.5
        %v4112 = vmul.f32 %v3189, 0.5
        %v4113 = vmul.f32 %v3573, 0.5
        %v4114 = vmul.f32 %v3575, 0.5
        %v4115 = vmul.f32 %v3899, 0.5
        %v4116 = vmul.f32 %v2805, 0.5
        %v4117 = vmul.f32 %v2807, 0.5
        %v4118 = vmul.f32 %v3191, 0.5
        %v4119 = vmul.f32 %v3193, 0.5
        %v4120 = vmul.f32 %v3577, 0.5
        %v4121 = vmul.f32 %v3579, 0.5
        %v4122 = vmul.f32 %v3902, 0.5
        %v4123 = vmul.f32 %v2811, 0.5
        %v4124 = vmul.f32 %v2813, 0.5
        %v4125 = vmul.f32 %v3197, 0.5
        %v4126 = vmul.f32 %v3199, 0.5
        %v4127 = vmul.f32 %v3583, 0.5
        %v4128 = vmul.f32 %v3585, 0.5
        %v4129 = vmul.f32 %v3907, 0.5
        %v4130 = vmul.f32 %v2815, 0.5
        %v4131 = vmul.f32 %v2817, 0.5
        %v4132 = vmul.f32 %v3201, 0.5
        %v4133 = vmul.f32 %v3203, 0.5
        %v4134 = vmul.f32 %v3587, 0.5
        %v4135 = vmul.f32 %v3589, 0.5
        %v4136 = vmul.f32 %v3910, 0.5
        %v4137 = vtanh.pop %v3913
        %v4138 = vtanh.pop %v3914
        %v4139 = vtanh.pop %v3915
        %v4140 = vtanh.pop %v3916
        %v4141 = vtanh.pop %v3917
        %v4142 = vtanh.pop %v3918
        %v4143 = vtanh.pop %v3919
        %v4144 = vtanh.pop %v3920
        %v4145 = vtanh.pop %v3921
        %v4146 = vtanh.pop %v3922
        %v4147 = vtanh.pop %v3923
        %v4148 = vtanh.pop %v3924
        %v4149 = vtanh.pop %v3925
        %v4150 = vtanh.pop %v3926
        %v4151 = vtanh.pop %v3927
        %v4152 = vtanh.pop %v3928
        %v4153 = vtanh.pop %v3929
        %v4154 = vtanh.pop %v3930
        %v4155 = vtanh.pop %v3931
        %v4156 = vtanh.pop %v3932
        %v4157 = vtanh.pop %v3933
        %v4158 = vtanh.pop %v3934
        %v4159 = vtanh.pop %v3935
        %v4160 = vtanh.pop %v3936
        %v4161 = vtanh.pop %v3937
        %v4162 = vtanh.pop %v3938
        %v4163 = vtanh.pop %v3939
        %v4164 = vtanh.pop %v3940
        %v4165 = vtanh.pop %v3941
        %v4166 = vtanh.pop %v3942
        %v4167 = vtanh.pop %v3943
        %v4168 = vtanh.pop %v3944
        %v4169 = vtanh.pop %v3945
        %v4170 = vtanh.pop %v3946
        %v4171 = vtanh.pop %v3947
        %v4172 = vtanh.pop %v3948
        %v4173 = vtanh.pop %v3949
        %v4174 = vtanh.pop %v3950
        %v4175 = vtanh.pop %v3951
        %v4176 = vtanh.pop %v3952
        %v4177 = vtanh.pop %v3953
        %v4178 = vtanh.pop %v3954
        %v4179 = vtanh.pop %v3955
        %v4180 = vtanh.pop %v3956
        %v4181 = vtanh.pop %v3957
        %v4182 = vtanh.pop %v3958
        %v4183 = vtanh.pop %v3959
        %v4184 = vtanh.pop %v3960
        %v4185 = vtanh.pop %v3961
        %v4186 = vtanh.pop %v3962
        %v4187 = vtanh.pop %v3963
        %v4188 = vtanh.pop %v3964
        %v4189 = vtanh.pop %v3965
        %v4190 = vtanh.pop %v3966
        %v4191 = vtanh.pop %v3967
        %v4192 = vtanh.pop %v3968
        %v4193 = vtanh.pop %v3969
        %v4194 = vtanh.pop %v3970
        %v4195 = vtanh.pop %v3971
        %v4196 = vtanh.pop %v3972
        %v4197 = vtanh.pop %v3973
        %v4198 = vtanh.pop %v3974
        %v4199 = vtanh.pop %v3975
        %v4200 = vtanh.pop %v3976
        %v4201 = vtanh.pop %v3977
        %v4202 = vtanh.pop %v3978
        %v4203 = vtanh.pop %v3979
        %v4204 = vtanh.pop %v3980
        %v4205 = vtanh.pop %v3981
        %v4206 = vtanh.pop %v3982
        %v4207 = vtanh.pop %v3983
        %v4208 = vtanh.pop %v3984
        %v4209 = vtanh.pop %v3985
        %v4210 = vtanh.pop %v3986
        %v4211 = vtanh.pop %v3987
        %v4212 = vtanh.pop %v3988
        %v4213 = vtanh.pop %v3989
        %v4214 = vtanh.pop %v3990
        %v4215 = vtanh.pop %v3991
        %v4216 = vtanh.pop %v3992
        %v4217 = vtanh.pop %v3993
        %v4218 = vtanh.pop %v3994
        %v4219 = vtanh.pop %v3995
        %v4220 = vtanh.pop %v3996
        %v4221 = vtanh.pop %v3997
        %v4222 = vtanh.pop %v3998
        %v4223 = vtanh.pop %v3999
        %v4224 = vtanh.pop %v4000
        %v4225 = vtanh.pop %v4001
        %v4226 = vtanh.pop %v4002
        %v4227 = vtanh.pop %v4003
        %v4228 = vtanh.pop %v4004
        %v4229 = vtanh.pop %v4005
        %v4230 = vtanh.pop %v4006
        %v4231 = vtanh.pop %v4007
        %v4232 = vtanh.pop %v4008
        %v4233 = vtanh.pop %v4009
        %v4234 = vtanh.pop %v4010
        %v4235 = vtanh.pop %v4011
        %v4236 = vtanh.pop %v4012
        %v4237 = vtanh.pop %v4013
        %v4238 = vtanh.pop %v4014
        %v4239 = vtanh.pop %v4015
        %v4240 = vtanh.pop %v4016
        %v4241 = vtanh.pop %v4017
        %v4242 = vtanh.pop %v4018
        %v4243 = vtanh.pop %v4019
        %v4244 = vtanh.pop %v4020
        %v4245 = vtanh.pop %v4021
        %v4246 = vtanh.pop %v4022
        %v4247 = vtanh.pop %v4023
        %v4248 = vtanh.pop %v4024
        %v4249 = vtanh.pop %v4025
        %v4250 = vtanh.pop %v4026
        %v4251 = vtanh.pop %v4027
        %v4252 = vtanh.pop %v4028
        %v4253 = vtanh.pop %v4029
        %v4254 = vtanh.pop %v4030
        %v4255 = vtanh.pop %v4031
        %v4256 = vtanh.pop %v4032
        %v4257 = vtanh.pop %v4033
        %v4258 = vtanh.pop %v4034
        %v4259 = vtanh.pop %v4035
        %v4260 = vtanh.pop %v4036
        %v4261 = vtanh.pop %v4037
        %v4262 = vtanh.pop %v4038
        %v4263 = vtanh.pop %v4039
        %v4264 = vtanh.pop %v4040
        %v4265 = vtanh.pop %v4041
        %v4266 = vtanh.pop %v4042
        %v4267 = vtanh.pop %v4043
        %v4268 = vtanh.pop %v4044
        %v4269 = vtanh.pop %v4045
        %v4270 = vtanh.pop %v4046
        %v4271 = vtanh.pop %v4047
        %v4272 = vtanh.pop %v4048
        %v4273 = vtanh.pop %v4049
        %v4274 = vtanh.pop %v4050
        %v4275 = vtanh.pop %v4051
        %v4276 = vtanh.pop %v4052
        %v4277 = vtanh.pop %v4053
        %v4278 = vtanh.pop %v4054
        %v4279 = vtanh.pop %v4055
        %v4280 = vtanh.pop %v4056
        %v4281 = vtanh.pop %v4057
        %v4282 = vtanh.pop %v4058
        %v4283 = vtanh.pop %v4059
        %v4284 = vtanh.pop %v4060
        %v4285 = vtanh.pop %v4061
        %v4286 = vtanh.pop %v4062
        %v4287 = vtanh.pop %v4063
        %v4288 = vtanh.pop %v4064
        %v4289 = vtanh.pop %v4065
        %v4290 = vtanh.pop %v4066
        %v4291 = vtanh.pop %v4067
        %v4292 = vtanh.pop %v4068
        %v4293 = vtanh.pop %v4069
        %v4294 = vtanh.pop %v4070
        %v4295 = vtanh.pop %v4071
        %v4296 = vtanh.pop %v4072
        %v4297 = vtanh.pop %v4073
        %v4298 = vtanh.pop %v4074
        %v4299 = vtanh.pop %v4075
        %v4300 = vtanh.pop %v4076
        %v4301 = vtanh.pop %v4077
        %v4302 = vtanh.pop %v4078
        %v4303 = vtanh.pop %v4079
        %v4304 = vtanh.pop %v4080
        %v4305 = vtanh.pop %v4081
        %v4306 = vtanh.pop %v4082
        %v4307 = vtanh.pop %v4083
        %v4308 = vtanh.pop %v4084
        %v4309 = vtanh.pop %v4085
        %v4310 = vtanh.pop %v4086
        %v4311 = vtanh.pop %v4087
        %v4312 = vtanh.pop %v4088
        %v4313 = vtanh.pop %v4089
        %v4314 = vtanh.pop %v4090
        %v4315 = vtanh.pop %v4091
        %v4316 = vtanh.pop %v4092
        %v4317 = vtanh.pop %v4093
        %v4318 = vtanh.pop %v4094
        %v4319 = vtanh.pop %v4095
        %v4320 = vtanh.pop %v4096
        %v4321 = vtanh.pop %v4097
        %v4322 = vtanh.pop %v4098
        %v4323 = vtanh.pop %v4099
        %v4324 = vtanh.pop %v4100
        %v4325 = vtanh.pop %v4101
        %v4326 = vtanh.pop %v4102
        %v4327 = vtanh.pop %v4103
        %v4328 = vtanh.pop %v4104
        %v4329 = vtanh.pop %v4105
        %v4330 = vtanh.pop %v4106
        %v4331 = vtanh.pop %v4107
        %v4332 = vtanh.pop %v4108
        %v4333 = vtanh.pop %v4109
        %v4334 = vtanh.pop %v4110
        %v4335 = vtanh.pop %v4111
        %v4336 = vtanh.pop %v4112
        %v4337 = vtanh.pop %v4113
        %v4338 = vtanh.pop %v4114
        %v4339 = vtanh.pop %v4115
        %v4340 = vtanh.pop %v4116
        %v4341 = vtanh.pop %v4117
        %v4342 = vtanh.pop %v4118
        %v4343 = vtanh.pop %v4119
        %v4344 = vtanh.pop %v4120
        %v4345 = vtanh.pop %v4121
        %v4346 = vtanh.pop %v4122
        %v4347 = vtanh.pop %v4123
        %v4348 = vtanh.pop %v4124
        %v4349 = vtanh.pop %v4125
        %v4350 = vtanh.pop %v4126
        %v4351 = vtanh.pop %v4127
        %v4352 = vtanh.pop %v4128
        %v4353 = vtanh.pop %v4129
        %v4354 = vtanh.pop %v4130
        %v4355 = vtanh.pop %v4131
        %v4356 = vtanh.pop %v4132
        %v4357 = vtanh.pop %v4133
        %v4358 = vtanh.pop %v4134
        %v4359 = vtanh.pop %v4135
        %v4360 = vtanh.pop %v4136
        %v4361 = vadd.f32 %v4137, 1.0
        %v4362 = vadd.f32 %v4138, 1.0
        %v4363 = vadd.f32 %v4139, 1.0
        %v4364 = vadd.f32 %v4140, 1.0
        %v4365 = vadd.f32 %v4141, 1.0
        %v4366 = vadd.f32 %v4142, 1.0
        %v4367 = vadd.f32 %v4143, 1.0
        %v4368 = vadd.f32 %v4144, 1.0
        %v4369 = vadd.f32 %v4145, 1.0
        %v4370 = vadd.f32 %v4146, 1.0
        %v4371 = vadd.f32 %v4147, 1.0
        %v4372 = vadd.f32 %v4148, 1.0
        %v4373 = vadd.f32 %v4149, 1.0
        %v4374 = vadd.f32 %v4150, 1.0
        %v4375 = vadd.f32 %v4151, 1.0
        %v4376 = vadd.f32 %v4152, 1.0
        %v4377 = vadd.f32 %v4153, 1.0
        %v4378 = vadd.f32 %v4154, 1.0
        %v4379 = vadd.f32 %v4155, 1.0
        %v4380 = vadd.f32 %v4156, 1.0
        %v4381 = vadd.f32 %v4157, 1.0
        %v4382 = vadd.f32 %v4158, 1.0
        %v4383 = vadd.f32 %v4159, 1.0
        %v4384 = vadd.f32 %v4160, 1.0
        %v4385 = vadd.f32 %v4161, 1.0
        %v4386 = vadd.f32 %v4162, 1.0
        %v4387 = vadd.f32 %v4163, 1.0
        %v4388 = vadd.f32 %v4164, 1.0
        %v4389 = vadd.f32 %v4165, 1.0
        %v4390 = vadd.f32 %v4166, 1.0
        %v4391 = vadd.f32 %v4167, 1.0
        %v4392 = vadd.f32 %v4168, 1.0
        %v4393 = vadd.f32 %v4169, 1.0
        %v4394 = vadd.f32 %v4170, 1.0
        %v4395 = vadd.f32 %v4171, 1.0
        %v4396 = vadd.f32 %v4172, 1.0
        %v4397 = vadd.f32 %v4173, 1.0
        %v4398 = vadd.f32 %v4174, 1.0
        %v4399 = vadd.f32 %v4175, 1.0
        %v4400 = vadd.f32 %v4176, 1.0
        %v4401 = vadd.f32 %v4177, 1.0
        %v4402 = vadd.f32 %v4178, 1.0
        %v4403 = vadd.f32 %v4179, 1.0
        %v4404 = vadd.f32 %v4180, 1.0
        %v4405 = vadd.f32 %v4181, 1.0
        %v4406 = vadd.f32 %v4182, 1.0
        %v4407 = vadd.f32 %v4183, 1.0
        %v4408 = vadd.f32 %v4184, 1.0
        %v4409 = vadd.f32 %v4185, 1.0
        %v4410 = vadd.f32 %v4186, 1.0
        %v4411 = vadd.f32 %v4187, 1.0
        %v4412 = vadd.f32 %v4188, 1.0
        %v4413 = vadd.f32 %v4189, 1.0
        %v4414 = vadd.f32 %v4190, 1.0
        %v4415 = vadd.f32 %v4191, 1.0
        %v4416 = vadd.f32 %v4192, 1.0
        %v4417 = vadd.f32 %v4193, 1.0
        %v4418 = vadd.f32 %v4194, 1.0
        %v4419 = vadd.f32 %v4195, 1.0
        %v4420 = vadd.f32 %v4196, 1.0
        %v4421 = vadd.f32 %v4197, 1.0
        %v4422 = vadd.f32 %v4198, 1.0
        %v4423 = vadd.f32 %v4199, 1.0
        %v4424 = vadd.f32 %v4200, 1.0
        %v4425 = vadd.f32 %v4201, 1.0
        %v4426 = vadd.f32 %v4202, 1.0
        %v4427 = vadd.f32 %v4203, 1.0
        %v4428 = vadd.f32 %v4204, 1.0
        %v4429 = vadd.f32 %v4205, 1.0
        %v4430 = vadd.f32 %v4206, 1.0
        %v4431 = vadd.f32 %v4207, 1.0
        %v4432 = vadd.f32 %v4208, 1.0
        %v4433 = vadd.f32 %v4209, 1.0
        %v4434 = vadd.f32 %v4210, 1.0
        %v4435 = vadd.f32 %v4211, 1.0
        %v4436 = vadd.f32 %v4212, 1.0
        %v4437 = vadd.f32 %v4213, 1.0
        %v4438 = vadd.f32 %v4214, 1.0
        %v4439 = vadd.f32 %v4215, 1.0
        %v4440 = vadd.f32 %v4216, 1.0
        %v4441 = vadd.f32 %v4217, 1.0
        %v4442 = vadd.f32 %v4218, 1.0
        %v4443 = vadd.f32 %v4219, 1.0
        %v4444 = vadd.f32 %v4220, 1.0
        %v4445 = vadd.f32 %v4221, 1.0
        %v4446 = vadd.f32 %v4222, 1.0
        %v4447 = vadd.f32 %v4223, 1.0
        %v4448 = vadd.f32 %v4224, 1.0
        %v4449 = vadd.f32 %v4225, 1.0
        %v4450 = vadd.f32 %v4226, 1.0
        %v4451 = vadd.f32 %v4227, 1.0
        %v4452 = vadd.f32 %v4228, 1.0
        %v4453 = vadd.f32 %v4229, 1.0
        %v4454 = vadd.f32 %v4230, 1.0
        %v4455 = vadd.f32 %v4231, 1.0
        %v4456 = vadd.f32 %v4232, 1.0
        %v4457 = vadd.f32 %v4233, 1.0
        %v4458 = vadd.f32 %v4234, 1.0
        %v4459 = vadd.f32 %v4235, 1.0
        %v4460 = vadd.f32 %v4236, 1.0
        %v4461 = vadd.f32 %v4237, 1.0
        %v4462 = vadd.f32 %v4238, 1.0
        %v4463 = vadd.f32 %v4239, 1.0
        %v4464 = vadd.f32 %v4240, 1.0
        %v4465 = vadd.f32 %v4241, 1.0
        %v4466 = vadd.f32 %v4242, 1.0
        %v4467 = vadd.f32 %v4243, 1.0
        %v4468 = vadd.f32 %v4244, 1.0
        %v4469 = vadd.f32 %v4245, 1.0
        %v4470 = vadd.f32 %v4246, 1.0
        %v4471 = vadd.f32 %v4247, 1.0
        %v4472 = vadd.f32 %v4248, 1.0
        %v4473 = vadd.f32 %v4249, 1.0
        %v4474 = vadd.f32 %v4250, 1.0
        %v4475 = vadd.f32 %v4251, 1.0
        %v4476 = vadd.f32 %v4252, 1.0
        %v4477 = vadd.f32 %v4253, 1.0
        %v4478 = vadd.f32 %v4254, 1.0
        %v4479 = vadd.f32 %v4255, 1.0
        %v4480 = vadd.f32 %v4256, 1.0
        %v4481 = vadd.f32 %v4257, 1.0
        %v4482 = vadd.f32 %v4258, 1.0
        %v4483 = vadd.f32 %v4259, 1.0
        %v4484 = vadd.f32 %v4260, 1.0
        %v4485 = vadd.f32 %v4261, 1.0
        %v4486 = vadd.f32 %v4262, 1.0
        %v4487 = vadd.f32 %v4263, 1.0
        %v4488 = vadd.f32 %v4264, 1.0
        %v4489 = vadd.f32 %v4265, 1.0
        %v4490 = vadd.f32 %v4266, 1.0
        %v4491 = vadd.f32 %v4267, 1.0
        %v4492 = vadd.f32 %v4268, 1.0
        %v4493 = vadd.f32 %v4269, 1.0
        %v4494 = vadd.f32 %v4270, 1.0
        %v4495 = vadd.f32 %v4271, 1.0
        %v4496 = vadd.f32 %v4272, 1.0
        %v4497 = vadd.f32 %v4273, 1.0
        %v4498 = vadd.f32 %v4274, 1.0
        %v4499 = vadd.f32 %v4275, 1.0
        %v4500 = vadd.f32 %v4276, 1.0
        %v4501 = vadd.f32 %v4277, 1.0
        %v4502 = vadd.f32 %v4278, 1.0
        %v4503 = vadd.f32 %v4279, 1.0
        %v4504 = vadd.f32 %v4280, 1.0
        %v4505 = vadd.f32 %v4281, 1.0
        %v4506 = vadd.f32 %v4282, 1.0
        %v4507 = vadd.f32 %v4283, 1.0
        %v4508 = vadd.f32 %v4284, 1.0
        %v4509 = vadd.f32 %v4285, 1.0
        %v4510 = vadd.f32 %v4286, 1.0
        %v4511 = vadd.f32 %v4287, 1.0
        %v4512 = vadd.f32 %v4288, 1.0
        %v4513 = vadd.f32 %v4289, 1.0
        %v4514 = vadd.f32 %v4290, 1.0
        %v4515 = vadd.f32 %v4291, 1.0
        %v4516 = vadd.f32 %v4292, 1.0
        %v4517 = vadd.f32 %v4293, 1.0
        %v4518 = vadd.f32 %v4294, 1.0
        %v4519 = vadd.f32 %v4295, 1.0
        %v4520 = vadd.f32 %v4296, 1.0
        %v4521 = vadd.f32 %v4297, 1.0
        %v4522 = vadd.f32 %v4298, 1.0
        %v4523 = vadd.f32 %v4299, 1.0
        %v4524 = vadd.f32 %v4300, 1.0
        %v4525 = vadd.f32 %v4301, 1.0
        %v4526 = vadd.f32 %v4302, 1.0
        %v4527 = vadd.f32 %v4303, 1.0
        %v4528 = vadd.f32 %v4304, 1.0
        %v4529 = vadd.f32 %v4305, 1.0
        %v4530 = vadd.f32 %v4306, 1.0
        %v4531 = vadd.f32 %v4307, 1.0
        %v4532 = vadd.f32 %v4308, 1.0
        %v4533 = vadd.f32 %v4309, 1.0
        %v4534 = vadd.f32 %v4310, 1.0
        %v4535 = vadd.f32 %v4311, 1.0
        %v4536 = vadd.f32 %v4312, 1.0
        %v4537 = vadd.f32 %v4313, 1.0
        %v4538 = vadd.f32 %v4314, 1.0
        %v4539 = vadd.f32 %v4315, 1.0
        %v4540 = vadd.f32 %v4316, 1.0
        %v4541 = vadd.f32 %v4317, 1.0
        %v4542 = vadd.f32 %v4318, 1.0
        %v4543 = vadd.f32 %v4319, 1.0
        %v4544 = vadd.f32 %v4320, 1.0
        %v4545 = vadd.f32 %v4321, 1.0
        %v4546 = vadd.f32 %v4322, 1.0
        %v4547 = vadd.f32 %v4323, 1.0
        %v4548 = vadd.f32 %v4324, 1.0
        %v4549 = vadd.f32 %v4325, 1.0
        %v4550 = vadd.f32 %v4326, 1.0
        %v4551 = vadd.f32 %v4327, 1.0
        %v4552 = vadd.f32 %v4328, 1.0
        %v4553 = vadd.f32 %v4329, 1.0
        %v4554 = vadd.f32 %v4330, 1.0
        %v4555 = vadd.f32 %v4331, 1.0
        %v4556 = vadd.f32 %v4332, 1.0
        %v4557 = vadd.f32 %v4333, 1.0
        %v4558 = vadd.f32 %v4334, 1.0
        %v4559 = vadd.f32 %v4335, 1.0
        %v4560 = vadd.f32 %v4336, 1.0
        %v4561 = vadd.f32 %v4337, 1.0
        %v4562 = vadd.f32 %v4338, 1.0
        %v4563 = vadd.f32 %v4339, 1.0
        %v4564 = vadd.f32 %v4340, 1.0
        %v4565 = vadd.f32 %v4341, 1.0
        %v4566 = vadd.f32 %v4342, 1.0
        %v4567 = vadd.f32 %v4343, 1.0
        %v4568 = vadd.f32 %v4344, 1.0
        %v4569 = vadd.f32 %v4345, 1.0
        %v4570 = vadd.f32 %v4346, 1.0
        %v4571 = vadd.f32 %v4347, 1.0
        %v4572 = vadd.f32 %v4348, 1.0
        %v4573 = vadd.f32 %v4349, 1.0
        %v4574 = vadd.f32 %v4350, 1.0
        %v4575 = vadd.f32 %v4351, 1.0
        %v4576 = vadd.f32 %v4352, 1.0
        %v4577 = vadd.f32 %v4353, 1.0
        %v4578 = vadd.f32 %v4354, 1.0
        %v4579 = vadd.f32 %v4355, 1.0
        %v4580 = vadd.f32 %v4356, 1.0
        %v4581 = vadd.f32 %v4357, 1.0
        %v4582 = vadd.f32 %v4358, 1.0
        %v4583 = vadd.f32 %v4359, 1.0
        %v4584 = vadd.f32 %v4360, 1.0
        %v4585 = vmul.f32 %v4361, 0.5
        %v4586 = vmul.f32 %v4362, 0.5
        %v4587 = vmul.f32 %v4363, 0.5
        %v4588 = vmul.f32 %v4364, 0.5
        %v4589 = vmul.f32 %v4365, 0.5
        %v4590 = vmul.f32 %v4366, 0.5
        %v4591 = vmul.f32 %v4367, 0.5
        %v4592 = vmul.f32 %v4368, 0.5
        %v4593 = vmul.f32 %v4369, 0.5
        %v4594 = vmul.f32 %v4370, 0.5
        %v4595 = vmul.f32 %v4371, 0.5
        %v4596 = vmul.f32 %v4372, 0.5
        %v4597 = vmul.f32 %v4373, 0.5
        %v4598 = vmul.f32 %v4374, 0.5
        %v4599 = vmul.f32 %v4375, 0.5
        %v4600 = vmul.f32 %v4376, 0.5
        %v4601 = vmul.f32 %v4377, 0.5
        %v4602 = vmul.f32 %v4378, 0.5
        %v4603 = vmul.f32 %v4379, 0.5
        %v4604 = vmul.f32 %v4380, 0.5
        %v4605 = vmul.f32 %v4381, 0.5
        %v4606 = vmul.f32 %v4382, 0.5
        %v4607 = vmul.f32 %v4383, 0.5
        %v4608 = vmul.f32 %v4384, 0.5
        %v4609 = vmul.f32 %v4385, 0.5
        %v4610 = vmul.f32 %v4386, 0.5
        %v4611 = vmul.f32 %v4387, 0.5
        %v4612 = vmul.f32 %v4388, 0.5
        %v4613 = vmul.f32 %v4389, 0.5
        %v4614 = vmul.f32 %v4390, 0.5
        %v4615 = vmul.f32 %v4391, 0.5
        %v4616 = vmul.f32 %v4392, 0.5
        %v4617 = vmul.f32 %v4393, 0.5
        %v4618 = vmul.f32 %v4394, 0.5
        %v4619 = vmul.f32 %v4395, 0.5
        %v4620 = vmul.f32 %v4396, 0.5
        %v4621 = vmul.f32 %v4397, 0.5
        %v4622 = vmul.f32 %v4398, 0.5
        %v4623 = vmul.f32 %v4399, 0.5
        %v4624 = vmul.f32 %v4400, 0.5
        %v4625 = vmul.f32 %v4401, 0.5
        %v4626 = vmul.f32 %v4402, 0.5
        %v4627 = vmul.f32 %v4403, 0.5
        %v4628 = vmul.f32 %v4404, 0.5
        %v4629 = vmul.f32 %v4405, 0.5
        %v4630 = vmul.f32 %v4406, 0.5
        %v4631 = vmul.f32 %v4407, 0.5
        %v4632 = vmul.f32 %v4408, 0.5
        %v4633 = vmul.f32 %v4409, 0.5
        %v4634 = vmul.f32 %v4410, 0.5
        %v4635 = vmul.f32 %v4411, 0.5
        %v4636 = vmul.f32 %v4412, 0.5
        %v4637 = vmul.f32 %v4413, 0.5
        %v4638 = vmul.f32 %v4414, 0.5
        %v4639 = vmul.f32 %v4415, 0.5
        %v4640 = vmul.f32 %v4416, 0.5
        %v4641 = vmul.f32 %v4417, 0.5
        %v4642 = vmul.f32 %v4418, 0.5
        %v4643 = vmul.f32 %v4419, 0.5
        %v4644 = vmul.f32 %v4420, 0.5
        %v4645 = vmul.f32 %v4421, 0.5
        %v4646 = vmul.f32 %v4422, 0.5
        %v4647 = vmul.f32 %v4423, 0.5
        %v4648 = vmul.f32 %v4424, 0.5
        %v4649 = vmul.f32 %v4425, 0.5
        %v4650 = vmul.f32 %v4426, 0.5
        %v4651 = vmul.f32 %v4427, 0.5
        %v4652 = vmul.f32 %v4428, 0.5
        %v4653 = vmul.f32 %v4429, 0.5
        %v4654 = vmul.f32 %v4430, 0.5
        %v4655 = vmul.f32 %v4431, 0.5
        %v4656 = vmul.f32 %v4432, 0.5
        %v4657 = vmul.f32 %v4433, 0.5
        %v4658 = vmul.f32 %v4434, 0.5
        %v4659 = vmul.f32 %v4435, 0.5
        %v4660 = vmul.f32 %v4436, 0.5
        %v4661 = vmul.f32 %v4437, 0.5
        %v4662 = vmul.f32 %v4438, 0.5
        %v4663 = vmul.f32 %v4439, 0.5
        %v4664 = vmul.f32 %v4440, 0.5
        %v4665 = vmul.f32 %v4441, 0.5
        %v4666 = vmul.f32 %v4442, 0.5
        %v4667 = vmul.f32 %v4443, 0.5
        %v4668 = vmul.f32 %v4444, 0.5
        %v4669 = vmul.f32 %v4445, 0.5
        %v4670 = vmul.f32 %v4446, 0.5
        %v4671 = vmul.f32 %v4447, 0.5
        %v4672 = vmul.f32 %v4448, 0.5
        %v4673 = vmul.f32 %v4449, 0.5
        %v4674 = vmul.f32 %v4450, 0.5
        %v4675 = vmul.f32 %v4451, 0.5
        %v4676 = vmul.f32 %v4452, 0.5
        %v4677 = vmul.f32 %v4453, 0.5
        %v4678 = vmul.f32 %v4454, 0.5
        %v4679 = vmul.f32 %v4455, 0.5
        %v4680 = vmul.f32 %v4456, 0.5
        %v4681 = vmul.f32 %v4457, 0.5
        %v4682 = vmul.f32 %v4458, 0.5
        %v4683 = vmul.f32 %v4459, 0.5
        %v4684 = vmul.f32 %v4460, 0.5
        %v4685 = vmul.f32 %v4461, 0.5
        %v4686 = vmul.f32 %v4462, 0.5
        %v4687 = vmul.f32 %v4463, 0.5
        %v4688 = vmul.f32 %v4464, 0.5
        %v4689 = vmul.f32 %v4465, 0.5
        %v4690 = vmul.f32 %v4466, 0.5
        %v4691 = vmul.f32 %v4467, 0.5
        %v4692 = vmul.f32 %v4468, 0.5
        %v4693 = vmul.f32 %v4469, 0.5
        %v4694 = vmul.f32 %v4470, 0.5
        %v4695 = vmul.f32 %v4471, 0.5
        %v4696 = vmul.f32 %v4472, 0.5
        %v4697 = vmul.f32 %v4473, 0.5
        %v4698 = vmul.f32 %v4474, 0.5
        %v4699 = vmul.f32 %v4475, 0.5
        %v4700 = vmul.f32 %v4476, 0.5
        %v4701 = vmul.f32 %v4477, 0.5
        %v4702 = vmul.f32 %v4478, 0.5
        %v4703 = vmul.f32 %v4479, 0.5
        %v4704 = vmul.f32 %v4480, 0.5
        %v4705 = vmul.f32 %v4481, 0.5
        %v4706 = vmul.f32 %v4482, 0.5
        %v4707 = vmul.f32 %v4483, 0.5
        %v4708 = vmul.f32 %v4484, 0.5
        %v4709 = vmul.f32 %v4485, 0.5
        %v4710 = vmul.f32 %v4486, 0.5
        %v4711 = vmul.f32 %v4487, 0.5
        %v4712 = vmul.f32 %v4488, 0.5
        %v4713 = vmul.f32 %v4489, 0.5
        %v4714 = vmul.f32 %v4490, 0.5
        %v4715 = vmul.f32 %v4491, 0.5
        %v4716 = vmul.f32 %v4492, 0.5
        %v4717 = vmul.f32 %v4493, 0.5
        %v4718 = vmul.f32 %v4494, 0.5
        %v4719 = vmul.f32 %v4495, 0.5
        %v4720 = vmul.f32 %v4496, 0.5
        %v4721 = vmul.f32 %v4497, 0.5
        %v4722 = vmul.f32 %v4498, 0.5
        %v4723 = vmul.f32 %v4499, 0.5
        %v4724 = vmul.f32 %v4500, 0.5
        %v4725 = vmul.f32 %v4501, 0.5
        %v4726 = vmul.f32 %v4502, 0.5
        %v4727 = vmul.f32 %v4503, 0.5
        %v4728 = vmul.f32 %v4504, 0.5
        %v4729 = vmul.f32 %v4505, 0.5
        %v4730 = vmul.f32 %v4506, 0.5
        %v4731 = vmul.f32 %v4507, 0.5
        %v4732 = vmul.f32 %v4508, 0.5
        %v4733 = vmul.f32 %v4509, 0.5
        %v4734 = vmul.f32 %v4510, 0.5
        %v4735 = vmul.f32 %v4511, 0.5
        %v4736 = vmul.f32 %v4512, 0.5
        %v4737 = vmul.f32 %v4513, 0.5
        %v4738 = vmul.f32 %v4514, 0.5
        %v4739 = vmul.f32 %v4515, 0.5
        %v4740 = vmul.f32 %v4516, 0.5
        %v4741 = vmul.f32 %v4517, 0.5
        %v4742 = vmul.f32 %v4518, 0.5
        %v4743 = vmul.f32 %v4519, 0.5
        %v4744 = vmul.f32 %v4520, 0.5
        %v4745 = vmul.f32 %v4521, 0.5
        %v4746 = vmul.f32 %v4522, 0.5
        %v4747 = vmul.f32 %v4523, 0.5
        %v4748 = vmul.f32 %v4524, 0.5
        %v4749 = vmul.f32 %v4525, 0.5
        %v4750 = vmul.f32 %v4526, 0.5
        %v4751 = vmul.f32 %v4527, 0.5
        %v4752 = vmul.f32 %v4528, 0.5
        %v4753 = vmul.f32 %v4529, 0.5
        %v4754 = vmul.f32 %v4530, 0.5
        %v4755 = vmul.f32 %v4531, 0.5
        %v4756 = vmul.f32 %v4532, 0.5
        %v4757 = vmul.f32 %v4533, 0.5
        %v4758 = vmul.f32 %v4534, 0.5
        %v4759 = vmul.f32 %v4535, 0.5
        %v4760 = vmul.f32 %v4536, 0.5
        %v4761 = vmul.f32 %v4537, 0.5
        %v4762 = vmul.f32 %v4538, 0.5
        %v4763 = vmul.f32 %v4539, 0.5
        %v4764 = vmul.f32 %v4540, 0.5
        %v4765 = vmul.f32 %v4541, 0.5
        %v4766 = vmul.f32 %v4542, 0.5
        %v4767 = vmul.f32 %v4543, 0.5
        %v4768 = vmul.f32 %v4544, 0.5
        %v4769 = vmul.f32 %v4545, 0.5
        %v4770 = vmul.f32 %v4546, 0.5
        %v4771 = vmul.f32 %v4547, 0.5
        %v4772 = vmul.f32 %v4548, 0.5
        %v4773 = vmul.f32 %v4549, 0.5
        %v4774 = vmul.f32 %v4550, 0.5
        %v4775 = vmul.f32 %v4551, 0.5
        %v4776 = vmul.f32 %v4552, 0.5
        %v4777 = vmul.f32 %v4553, 0.5
        %v4778 = vmul.f32 %v4554, 0.5
        %v4779 = vmul.f32 %v4555, 0.5
        %v4780 = vmul.f32 %v4556, 0.5
        %v4781 = vmul.f32 %v4557, 0.5
        %v4782 = vmul.f32 %v4558, 0.5
        %v4783 = vmul.f32 %v4559, 0.5
        %v4784 = vmul.f32 %v4560, 0.5
        %v4785 = vmul.f32 %v4561, 0.5
        %v4786 = vmul.f32 %v4562, 0.5
        %v4787 = vmul.f32 %v4563, 0.5
        %v4788 = vmul.f32 %v4564, 0.5
        %v4789 = vmul.f32 %v4565, 0.5
        %v4790 = vmul.f32 %v4566, 0.5
        %v4791 = vmul.f32 %v4567, 0.5
        %v4792 = vmul.f32 %v4568, 0.5
        %v4793 = vmul.f32 %v4569, 0.5
        %v4794 = vmul.f32 %v4570, 0.5
        %v4795 = vmul.f32 %v4571, 0.5
        %v4796 = vmul.f32 %v4572, 0.5
        %v4797 = vmul.f32 %v4573, 0.5
        %v4798 = vmul.f32 %v4574, 0.5
        %v4799 = vmul.f32 %v4575, 0.5
        %v4800 = vmul.f32 %v4576, 0.5
        %v4801 = vmul.f32 %v4577, 0.5
        %v4802 = vmul.f32 %v4578, 0.5
        %v4803 = vmul.f32 %v4579, 0.5
        %v4804 = vmul.f32 %v4580, 0.5
        %v4805 = vmul.f32 %v4581, 0.5
        %v4806 = vmul.f32 %v4582, 0.5
        %v4807 = vmul.f32 %v4583, 0.5
        %v4808 = vmul.f32 %v4584, 0.5
        %v4809 = vpack.c.bf16 %v4592, %v4585
        %v4810 = vpack.c.bf16 %v4593, %v4586
        %v4811 = vpack.c.bf16 %v4594, %v4587
        %v4812 = vpack.c.bf16 %v4595, %v4588
        %v4813 = vpack.c.bf16 %v4596, %v4589
        %v4814 = vpack.c.bf16 %v4597, %v4590
        %v4815 = vpack.c.bf16 %v4598, %v4591
        %v4816 = vpack.c.bf16 %v4606, %v4599
        %v4817 = vpack.c.bf16 %v4607, %v4600
        %v4818 = vpack.c.bf16 %v4608, %v4601
        %v4819 = vpack.c.bf16 %v4609, %v4602
        %v4820 = vpack.c.bf16 %v4610, %v4603
        %v4821 = vpack.c.bf16 %v4611, %v4604
        %v4822 = vpack.c.bf16 %v4612, %v4605
        %v4823 = vpack.c.bf16 %v4620, %v4613
        %v4824 = vpack.c.bf16 %v4621, %v4614
        %v4825 = vpack.c.bf16 %v4622, %v4615
        %v4826 = vpack.c.bf16 %v4623, %v4616
        %v4827 = vpack.c.bf16 %v4624, %v4617
        %v4828 = vpack.c.bf16 %v4625, %v4618
        %v4829 = vpack.c.bf16 %v4626, %v4619
        %v4830 = vpack.c.bf16 %v4634, %v4627
        %v4831 = vpack.c.bf16 %v4635, %v4628
        %v4832 = vpack.c.bf16 %v4636, %v4629
        %v4833 = vpack.c.bf16 %v4637, %v4630
        %v4834 = vpack.c.bf16 %v4638, %v4631
        %v4835 = vpack.c.bf16 %v4639, %v4632
        %v4836 = vpack.c.bf16 %v4640, %v4633
        %v4837 = vpack.c.bf16 %v4648, %v4641
        %v4838 = vpack.c.bf16 %v4649, %v4642
        %v4839 = vpack.c.bf16 %v4650, %v4643
        %v4840 = vpack.c.bf16 %v4651, %v4644
        %v4841 = vpack.c.bf16 %v4652, %v4645
        %v4842 = vpack.c.bf16 %v4653, %v4646
        %v4843 = vpack.c.bf16 %v4654, %v4647
        %v4844 = vpack.c.bf16 %v4662, %v4655
        %v4845 = vpack.c.bf16 %v4663, %v4656
        %v4846 = vpack.c.bf16 %v4664, %v4657
        %v4847 = vpack.c.bf16 %v4665, %v4658
        %v4848 = vpack.c.bf16 %v4666, %v4659
        %v4849 = vpack.c.bf16 %v4667, %v4660
        %v4850 = vpack.c.bf16 %v4668, %v4661
        %v4851 = vpack.c.bf16 %v4676, %v4669
        %v4852 = vpack.c.bf16 %v4677, %v4670
        %v4853 = vpack.c.bf16 %v4678, %v4671
        %v4854 = vpack.c.bf16 %v4679, %v4672
        %v4855 = vpack.c.bf16 %v4680, %v4673
        %v4856 = vpack.c.bf16 %v4681, %v4674
        %v4857 = vpack.c.bf16 %v4682, %v4675
        %v4858 = vpack.c.bf16 %v4690, %v4683
        %v4859 = vpack.c.bf16 %v4691, %v4684
        %v4860 = vpack.c.bf16 %v4692, %v4685
        %v4861 = vpack.c.bf16 %v4693, %v4686
        %v4862 = vpack.c.bf16 %v4694, %v4687
        %v4863 = vpack.c.bf16 %v4695, %v4688
        %v4864 = vpack.c.bf16 %v4696, %v4689
        %v4865 = vpack.c.bf16 %v4704, %v4697
        %v4866 = vpack.c.bf16 %v4705, %v4698
        %v4867 = vpack.c.bf16 %v4706, %v4699
        %v4868 = vpack.c.bf16 %v4707, %v4700
        %v4869 = vpack.c.bf16 %v4708, %v4701
        %v4870 = vpack.c.bf16 %v4709, %v4702
        %v4871 = vpack.c.bf16 %v4710, %v4703
        %v4872 = vpack.c.bf16 %v4718, %v4711
        %v4873 = vpack.c.bf16 %v4719, %v4712
        %v4874 = vpack.c.bf16 %v4720, %v4713
        %v4875 = vpack.c.bf16 %v4721, %v4714
        %v4876 = vpack.c.bf16 %v4722, %v4715
        %v4877 = vpack.c.bf16 %v4723, %v4716
        %v4878 = vpack.c.bf16 %v4724, %v4717
        %v4879 = vpack.c.bf16 %v4732, %v4725
        %v4880 = vpack.c.bf16 %v4733, %v4726
        %v4881 = vpack.c.bf16 %v4734, %v4727
        %v4882 = vpack.c.bf16 %v4735, %v4728
        %v4883 = vpack.c.bf16 %v4736, %v4729
        %v4884 = vpack.c.bf16 %v4737, %v4730
        %v4885 = vpack.c.bf16 %v4738, %v4731
        %v4886 = vpack.c.bf16 %v4746, %v4739
        %v4887 = vpack.c.bf16 %v4747, %v4740
        %v4888 = vpack.c.bf16 %v4748, %v4741
        %v4889 = vpack.c.bf16 %v4749, %v4742
        %v4890 = vpack.c.bf16 %v4750, %v4743
        %v4891 = vpack.c.bf16 %v4751, %v4744
        %v4892 = vpack.c.bf16 %v4752, %v4745
        %v4893 = vpack.c.bf16 %v4760, %v4753
        %v4894 = vpack.c.bf16 %v4761, %v4754
        %v4895 = vpack.c.bf16 %v4762, %v4755
        %v4896 = vpack.c.bf16 %v4763, %v4756
        %v4897 = vpack.c.bf16 %v4764, %v4757
        %v4898 = vpack.c.bf16 %v4765, %v4758
        %v4899 = vpack.c.bf16 %v4766, %v4759
        %v4900 = vpack.c.bf16 %v4774, %v4767
        %v4901 = vpack.c.bf16 %v4775, %v4768
        %v4902 = vpack.c.bf16 %v4776, %v4769
        %v4903 = vpack.c.bf16 %v4777, %v4770
        %v4904 = vpack.c.bf16 %v4778, %v4771
        %v4905 = vpack.c.bf16 %v4779, %v4772
        %v4906 = vpack.c.bf16 %v4780, %v4773
        %v4907 = vpack.c.bf16 %v4788, %v4781
        %v4908 = vpack.c.bf16 %v4789, %v4782
        %v4909 = vpack.c.bf16 %v4790, %v4783
        %v4910 = vpack.c.bf16 %v4791, %v4784
        %v4911 = vpack.c.bf16 %v4792, %v4785
        %v4912 = vpack.c.bf16 %v4793, %v4786
        %v4913 = vpack.c.bf16 %v4794, %v4787
        %v4914 = vpack.c.bf16 %v4802, %v4795
        %v4915 = vpack.c.bf16 %v4803, %v4796
        %v4916 = vpack.c.bf16 %v4804, %v4797
        %v4917 = vpack.c.bf16 %v4805, %v4798
        %v4918 = vpack.c.bf16 %v4806, %v4799
        %v4919 = vpack.c.bf16 %v4807, %v4800
        %v4920 = vpack.c.bf16 %v4808, %v4801
        %v5033 = vunpack.c.l.b16 %v4809
        %v5034 = vunpack.c.l.b16 %v4810
        %v5035 = vunpack.c.l.b16 %v4811
        %v5036 = vunpack.c.l.b16 %v4812
        %v5037 = vunpack.c.l.b16 %v4813
        %v5038 = vunpack.c.l.b16 %v4814
        %v5039 = vunpack.c.l.b16 %v4815
        %v5040 = vunpack.c.h.b16 %v4809
        %v5041 = vunpack.c.h.b16 %v4810
        %v5042 = vunpack.c.h.b16 %v4811
        %v5043 = vunpack.c.h.b16 %v4812
        %v5044 = vunpack.c.h.b16 %v4813
        %v5045 = vunpack.c.h.b16 %v4814
        %v5046 = vunpack.c.h.b16 %v4815
        %v5047 = vunpack.c.l.b16 %v4816
        %v5048 = vunpack.c.l.b16 %v4817
        %v5049 = vunpack.c.l.b16 %v4818
        %v5050 = vunpack.c.l.b16 %v4819
        %v5051 = vunpack.c.l.b16 %v4820
        %v5052 = vunpack.c.l.b16 %v4821
        %v5053 = vunpack.c.l.b16 %v4822
        %v5054 = vunpack.c.h.b16 %v4816
        %v5055 = vunpack.c.h.b16 %v4817
        %v5056 = vunpack.c.h.b16 %v4818
        %v5057 = vunpack.c.h.b16 %v4819
        %v5058 = vunpack.c.h.b16 %v4820
        %v5059 = vunpack.c.h.b16 %v4821
        %v5060 = vunpack.c.h.b16 %v4822
        %v5061 = vunpack.c.l.b16 %v4823
        %v5062 = vunpack.c.l.b16 %v4824
        %v5063 = vunpack.c.l.b16 %v4825
        %v5064 = vunpack.c.l.b16 %v4826
        %v5065 = vunpack.c.l.b16 %v4827
        %v5066 = vunpack.c.l.b16 %v4828
        %v5067 = vunpack.c.l.b16 %v4829
        %v5068 = vunpack.c.h.b16 %v4823
        %v5069 = vunpack.c.h.b16 %v4824
        %v5070 = vunpack.c.h.b16 %v4825
        %v5071 = vunpack.c.h.b16 %v4826
        %v5072 = vunpack.c.h.b16 %v4827
        %v5073 = vunpack.c.h.b16 %v4828
        %v5074 = vunpack.c.h.b16 %v4829
        %v5075 = vunpack.c.l.b16 %v4830
        %v5076 = vunpack.c.l.b16 %v4831
        %v5077 = vunpack.c.l.b16 %v4832
        %v5078 = vunpack.c.l.b16 %v4833
        %v5079 = vunpack.c.l.b16 %v4834
        %v5080 = vunpack.c.l.b16 %v4835
        %v5081 = vunpack.c.l.b16 %v4836
        %v5082 = vunpack.c.h.b16 %v4830
        %v5083 = vunpack.c.h.b16 %v4831
        %v5084 = vunpack.c.h.b16 %v4832
        %v5085 = vunpack.c.h.b16 %v4833
        %v5086 = vunpack.c.h.b16 %v4834
        %v5087 = vunpack.c.h.b16 %v4835
        %v5088 = vunpack.c.h.b16 %v4836
        %v5089 = vunpack.c.l.b16 %v4837
        %v5090 = vunpack.c.l.b16 %v4838
        %v5091 = vunpack.c.l.b16 %v4839
        %v5092 = vunpack.c.l.b16 %v4840
        %v5093 = vunpack.c.l.b16 %v4841
        %v5094 = vunpack.c.l.b16 %v4842
        %v5095 = vunpack.c.l.b16 %v4843
        %v5096 = vunpack.c.h.b16 %v4837
        %v5097 = vunpack.c.h.b16 %v4838
        %v5098 = vunpack.c.h.b16 %v4839
        %v5099 = vunpack.c.h.b16 %v4840
        %v5100 = vunpack.c.h.b16 %v4841
        %v5101 = vunpack.c.h.b16 %v4842
        %v5102 = vunpack.c.h.b16 %v4843
        %v5103 = vunpack.c.l.b16 %v4844
        %v5104 = vunpack.c.l.b16 %v4845
        %v5105 = vunpack.c.l.b16 %v4846
        %v5106 = vunpack.c.l.b16 %v4847
        %v5107 = vunpack.c.l.b16 %v4848
        %v5108 = vunpack.c.l.b16 %v4849
        %v5109 = vunpack.c.l.b16 %v4850
        %v5110 = vunpack.c.h.b16 %v4844
        %v5111 = vunpack.c.h.b16 %v4845
        %v5112 = vunpack.c.h.b16 %v4846
        %v5113 = vunpack.c.h.b16 %v4847
        %v5114 = vunpack.c.h.b16 %v4848
        %v5115 = vunpack.c.h.b16 %v4849
        %v5116 = vunpack.c.h.b16 %v4850
        %v5117 = vunpack.c.l.b16 %v4851
        %v5118 = vunpack.c.l.b16 %v4852
        %v5119 = vunpack.c.l.b16 %v4853
        %v5120 = vunpack.c.l.b16 %v4854
        %v5121 = vunpack.c.l.b16 %v4855
        %v5122 = vunpack.c.l.b16 %v4856
        %v5123 = vunpack.c.l.b16 %v4857
        %v5124 = vunpack.c.h.b16 %v4851
        %v5125 = vunpack.c.h.b16 %v4852
        %v5126 = vunpack.c.h.b16 %v4853
        %v5127 = vunpack.c.h.b16 %v4854
        %v5128 = vunpack.c.h.b16 %v4855
        %v5129 = vunpack.c.h.b16 %v4856
        %v5130 = vunpack.c.h.b16 %v4857
        %v5131 = vunpack.c.l.b16 %v4858
        %v5132 = vunpack.c.l.b16 %v4859
        %v5133 = vunpack.c.l.b16 %v4860
        %v5134 = vunpack.c.l.b16 %v4861
        %v5135 = vunpack.c.l.b16 %v4862
        %v5136 = vunpack.c.l.b16 %v4863
        %v5137 = vunpack.c.l.b16 %v4864
        %v5138 = vunpack.c.h.b16 %v4858
        %v5139 = vunpack.c.h.b16 %v4859
        %v5140 = vunpack.c.h.b16 %v4860
        %v5141 = vunpack.c.h.b16 %v4861
        %v5142 = vunpack.c.h.b16 %v4862
        %v5143 = vunpack.c.h.b16 %v4863
        %v5144 = vunpack.c.h.b16 %v4864
        %v5145 = vunpack.c.l.b16 %v4865
        %v5146 = vunpack.c.l.b16 %v4866
        %v5147 = vunpack.c.l.b16 %v4867
        %v5148 = vunpack.c.l.b16 %v4868
        %v5149 = vunpack.c.l.b16 %v4869
        %v5150 = vunpack.c.l.b16 %v4870
        %v5151 = vunpack.c.l.b16 %v4871
        %v5152 = vunpack.c.h.b16 %v4865
        %v5153 = vunpack.c.h.b16 %v4866
        %v5154 = vunpack.c.h.b16 %v4867
        %v5155 = vunpack.c.h.b16 %v4868
        %v5156 = vunpack.c.h.b16 %v4869
        %v5157 = vunpack.c.h.b16 %v4870
        %v5158 = vunpack.c.h.b16 %v4871
        %v5159 = vunpack.c.l.b16 %v4872
        %v5160 = vunpack.c.l.b16 %v4873
        %v5161 = vunpack.c.l.b16 %v4874
        %v5162 = vunpack.c.l.b16 %v4875
        %v5163 = vunpack.c.l.b16 %v4876
        %v5164 = vunpack.c.l.b16 %v4877
        %v5165 = vunpack.c.l.b16 %v4878
        %v5166 = vunpack.c.h.b16 %v4872
        %v5167 = vunpack.c.h.b16 %v4873
        %v5168 = vunpack.c.h.b16 %v4874
        %v5169 = vunpack.c.h.b16 %v4875
        %v5170 = vunpack.c.h.b16 %v4876
        %v5171 = vunpack.c.h.b16 %v4877
        %v5172 = vunpack.c.h.b16 %v4878
        %v5173 = vunpack.c.l.b16 %v4879
        %v5174 = vunpack.c.l.b16 %v4880
        %v5175 = vunpack.c.l.b16 %v4881
        %v5176 = vunpack.c.l.b16 %v4882
        %v5177 = vunpack.c.l.b16 %v4883
        %v5178 = vunpack.c.l.b16 %v4884
        %v5179 = vunpack.c.l.b16 %v4885
        %v5180 = vunpack.c.h.b16 %v4879
        %v5181 = vunpack.c.h.b16 %v4880
        %v5182 = vunpack.c.h.b16 %v4881
        %v5183 = vunpack.c.h.b16 %v4882
        %v5184 = vunpack.c.h.b16 %v4883
        %v5185 = vunpack.c.h.b16 %v4884
        %v5186 = vunpack.c.h.b16 %v4885
        %v5187 = vunpack.c.l.b16 %v4886
        %v5188 = vunpack.c.l.b16 %v4887
        %v5189 = vunpack.c.l.b16 %v4888
        %v5190 = vunpack.c.l.b16 %v4889
        %v5191 = vunpack.c.l.b16 %v4890
        %v5192 = vunpack.c.l.b16 %v4891
        %v5193 = vunpack.c.l.b16 %v4892
        %v5194 = vunpack.c.h.b16 %v4886
        %v5195 = vunpack.c.h.b16 %v4887
        %v5196 = vunpack.c.h.b16 %v4888
        %v5197 = vunpack.c.h.b16 %v4889
        %v5198 = vunpack.c.h.b16 %v4890
        %v5199 = vunpack.c.h.b16 %v4891
        %v5200 = vunpack.c.h.b16 %v4892
        %v5201 = vunpack.c.l.b16 %v4893
        %v5202 = vunpack.c.l.b16 %v4894
        %v5203 = vunpack.c.l.b16 %v4895
        %v5204 = vunpack.c.l.b16 %v4896
        %v5205 = vunpack.c.l.b16 %v4897
        %v5206 = vunpack.c.l.b16 %v4898
        %v5207 = vunpack.c.l.b16 %v4899
        %v5208 = vunpack.c.h.b16 %v4893
        %v5209 = vunpack.c.h.b16 %v4894
        %v5210 = vunpack.c.h.b16 %v4895
        %v5211 = vunpack.c.h.b16 %v4896
        %v5212 = vunpack.c.h.b16 %v4897
        %v5213 = vunpack.c.h.b16 %v4898
        %v5214 = vunpack.c.h.b16 %v4899
        %v5215 = vunpack.c.l.b16 %v4900
        %v5216 = vunpack.c.l.b16 %v4901
        %v5217 = vunpack.c.l.b16 %v4902
        %v5218 = vunpack.c.l.b16 %v4903
        %v5219 = vunpack.c.l.b16 %v4904
        %v5220 = vunpack.c.l.b16 %v4905
        %v5221 = vunpack.c.l.b16 %v4906
        %v5222 = vunpack.c.h.b16 %v4900
        %v5223 = vunpack.c.h.b16 %v4901
        %v5224 = vunpack.c.h.b16 %v4902
        %v5225 = vunpack.c.h.b16 %v4903
        %v5226 = vunpack.c.h.b16 %v4904
        %v5227 = vunpack.c.h.b16 %v4905
        %v5228 = vunpack.c.h.b16 %v4906
        %v5229 = vunpack.c.l.b16 %v4907
        %v5230 = vunpack.c.l.b16 %v4908
        %v5231 = vunpack.c.l.b16 %v4909
        %v5232 = vunpack.c.l.b16 %v4910
        %v5233 = vunpack.c.l.b16 %v4911
        %v5234 = vunpack.c.l.b16 %v4912
        %v5235 = vunpack.c.l.b16 %v4913
        %v5236 = vunpack.c.h.b16 %v4907
        %v5237 = vunpack.c.h.b16 %v4908
        %v5238 = vunpack.c.h.b16 %v4909
        %v5239 = vunpack.c.h.b16 %v4910
        %v5240 = vunpack.c.h.b16 %v4911
        %v5241 = vunpack.c.h.b16 %v4912
        %v5242 = vunpack.c.h.b16 %v4913
        %v5243 = vunpack.c.l.b16 %v4914
        %v5244 = vunpack.c.l.b16 %v4915
        %v5245 = vunpack.c.l.b16 %v4916
        %v5246 = vunpack.c.l.b16 %v4917
        %v5247 = vunpack.c.l.b16 %v4918
        %v5248 = vunpack.c.l.b16 %v4919
        %v5249 = vunpack.c.l.b16 %v4920
        %v5250 = vunpack.c.h.b16 %v4914
        %v5251 = vunpack.c.h.b16 %v4915
        %v5252 = vunpack.c.h.b16 %v4916
        %v5253 = vunpack.c.h.b16 %v4917
        %v5254 = vunpack.c.h.b16 %v4918
        %v5255 = vunpack.c.h.b16 %v4919
        %v5256 = vunpack.c.h.b16 %v4920
        %v5257 = vpack.c.b16 %v5034, %v5033
        %v5258 = vpack.c.b16 %v5036, %v5035
        %v5259 = vpack.c.b16 %v5038, %v5037
        %v5260 = vpack.c.b16 %v5039, %v5039
        %v5261 = vpack.c.b16 %v5041, %v5040
        %v5262 = vpack.c.b16 %v5043, %v5042
        %v5263 = vpack.c.b16 %v5045, %v5044
        %v5264 = vpack.c.b16 %v5046, %v5046
        %v5265 = vpack.c.b16 %v5048, %v5047
        %v5266 = vpack.c.b16 %v5050, %v5049
        %v5267 = vpack.c.b16 %v5052, %v5051
        %v5268 = vpack.c.b16 %v5053, %v5053
        %v5269 = vpack.c.b16 %v5055, %v5054
        %v5270 = vpack.c.b16 %v5057, %v5056
        %v5271 = vpack.c.b16 %v5059, %v5058
        %v5272 = vpack.c.b16 %v5060, %v5060
        %v5273 = vpack.c.b16 %v5062, %v5061
        %v5274 = vpack.c.b16 %v5064, %v5063
        %v5275 = vpack.c.b16 %v5066, %v5065
        %v5276 = vpack.c.b16 %v5067, %v5067
        %v5277 = vpack.c.b16 %v5069, %v5068
        %v5278 = vpack.c.b16 %v5071, %v5070
        %v5279 = vpack.c.b16 %v5073, %v5072
        %v5280 = vpack.c.b16 %v5074, %v5074
        %v5281 = vpack.c.b16 %v5076, %v5075
        %v5282 = vpack.c.b16 %v5078, %v5077
        %v5283 = vpack.c.b16 %v5080, %v5079
        %v5284 = vpack.c.b16 %v5081, %v5081
        %v5285 = vpack.c.b16 %v5083, %v5082
        %v5286 = vpack.c.b16 %v5085, %v5084
        %v5287 = vpack.c.b16 %v5087, %v5086
        %v5288 = vpack.c.b16 %v5088, %v5088
        %v5289 = vpack.c.b16 %v5090, %v5089
        %v5290 = vpack.c.b16 %v5092, %v5091
        %v5291 = vpack.c.b16 %v5094, %v5093
        %v5292 = vpack.c.b16 %v5095, %v5095
        %v5293 = vpack.c.b16 %v5097, %v5096
        %v5294 = vpack.c.b16 %v5099, %v5098
        %v5295 = vpack.c.b16 %v5101, %v5100
        %v5296 = vpack.c.b16 %v5102, %v5102
        %v5297 = vpack.c.b16 %v5104, %v5103
        %v5298 = vpack.c.b16 %v5106, %v5105
        %v5299 = vpack.c.b16 %v5108, %v5107
        %v5300 = vpack.c.b16 %v5109, %v5109
        %v5301 = vpack.c.b16 %v5111, %v5110
        %v5302 = vpack.c.b16 %v5113, %v5112
        %v5303 = vpack.c.b16 %v5115, %v5114
        %v5304 = vpack.c.b16 %v5116, %v5116
        %v5305 = vpack.c.b16 %v5118, %v5117
        %v5306 = vpack.c.b16 %v5120, %v5119
        %v5307 = vpack.c.b16 %v5122, %v5121
        %v5308 = vpack.c.b16 %v5123, %v5123
        %v5309 = vpack.c.b16 %v5125, %v5124
        %v5310 = vpack.c.b16 %v5127, %v5126
        %v5311 = vpack.c.b16 %v5129, %v5128
        %v5312 = vpack.c.b16 %v5130, %v5130
        %v5313 = vpack.c.b16 %v5132, %v5131
        %v5314 = vpack.c.b16 %v5134, %v5133
        %v5315 = vpack.c.b16 %v5136, %v5135
        %v5316 = vpack.c.b16 %v5137, %v5137
        %v5317 = vpack.c.b16 %v5139, %v5138
        %v5318 = vpack.c.b16 %v5141, %v5140
        %v5319 = vpack.c.b16 %v5143, %v5142
        %v5320 = vpack.c.b16 %v5144, %v5144
        %v5321 = vpack.c.b16 %v5146, %v5145
        %v5322 = vpack.c.b16 %v5148, %v5147
        %v5323 = vpack.c.b16 %v5150, %v5149
        %v5324 = vpack.c.b16 %v5151, %v5151
        %v5325 = vpack.c.b16 %v5153, %v5152
        %v5326 = vpack.c.b16 %v5155, %v5154
        %v5327 = vpack.c.b16 %v5157, %v5156
        %v5328 = vpack.c.b16 %v5158, %v5158
        %v5329 = vpack.c.b16 %v5160, %v5159
        %v5330 = vpack.c.b16 %v5162, %v5161
        %v5331 = vpack.c.b16 %v5164, %v5163
        %v5332 = vpack.c.b16 %v5165, %v5165
        %v5333 = vpack.c.b16 %v5167, %v5166
        %v5334 = vpack.c.b16 %v5169, %v5168
        %v5335 = vpack.c.b16 %v5171, %v5170
        %v5336 = vpack.c.b16 %v5172, %v5172
        %v5337 = vpack.c.b16 %v5174, %v5173
        %v5338 = vpack.c.b16 %v5176, %v5175
        %v5339 = vpack.c.b16 %v5178, %v5177
        %v5340 = vpack.c.b16 %v5179, %v5179
        %v5341 = vpack.c.b16 %v5181, %v5180
        %v5342 = vpack.c.b16 %v5183, %v5182
        %v5343 = vpack.c.b16 %v5185, %v5184
        %v5344 = vpack.c.b16 %v5186, %v5186
        %v5345 = vpack.c.b16 %v5188, %v5187
        %v5346 = vpack.c.b16 %v5190, %v5189
        %v5347 = vpack.c.b16 %v5192, %v5191
        %v5348 = vpack.c.b16 %v5193, %v5193
        %v5349 = vpack.c.b16 %v5195, %v5194
        %v5350 = vpack.c.b16 %v5197, %v5196
        %v5351 = vpack.c.b16 %v5199, %v5198
        %v5352 = vpack.c.b16 %v5200, %v5200
        %v5353 = vpack.c.b16 %v5202, %v5201
        %v5354 = vpack.c.b16 %v5204, %v5203
        %v5355 = vpack.c.b16 %v5206, %v5205
        %v5356 = vpack.c.b16 %v5207, %v5207
        %v5357 = vpack.c.b16 %v5209, %v5208
        %v5358 = vpack.c.b16 %v5211, %v5210
        %v5359 = vpack.c.b16 %v5213, %v5212
        %v5360 = vpack.c.b16 %v5214, %v5214
        %v5361 = vpack.c.b16 %v5216, %v5215
        %v5362 = vpack.c.b16 %v5218, %v5217
        %v5363 = vpack.c.b16 %v5220, %v5219
        %v5364 = vpack.c.b16 %v5221, %v5221
        %v5365 = vpack.c.b16 %v5223, %v5222
        %v5366 = vpack.c.b16 %v5225, %v5224
        %v5367 = vpack.c.b16 %v5227, %v5226
        %v5368 = vpack.c.b16 %v5228, %v5228
        %v5369 = vpack.c.b16 %v5230, %v5229
        %v5370 = vpack.c.b16 %v5232, %v5231
        %v5371 = vpack.c.b16 %v5234, %v5233
        %v5372 = vpack.c.b16 %v5235, %v5235
        %v5373 = vpack.c.b16 %v5237, %v5236
        %v5374 = vpack.c.b16 %v5239, %v5238
        %v5375 = vpack.c.b16 %v5241, %v5240
        %v5376 = vpack.c.b16 %v5242, %v5242
        %v5377 = vpack.c.b16 %v5244, %v5243
        %v5378 = vpack.c.b16 %v5246, %v5245
        %v5379 = vpack.c.b16 %v5248, %v5247
        %v5380 = vpack.c.b16 %v5249, %v5249
        %v5381 = vpack.c.b16 %v5251, %v5250
        %v5382 = vpack.c.b16 %v5253, %v5252
        %v5383 = vpack.c.b16 %v5255, %v5254
        %v5384 = vpack.c.b16 %v5256, %v5256
        %5513 = vst [vmem:[%s233] sm:$0xff] %v5257
        %5514 = vst [vmem:[%s233 + $0x8] sm:$0xff] %v5258
        %5515 = vst [vmem:[%s233 + $0x10] sm:$0xff] %v5259
        %5516 = vst [vmem:[%s233 + $0x18] sm:$0xf] %v5260
        %5517 = vst [vmem:[%s233 + $0x1c] sm:$0xff] %v5261
        %5518 = vst [vmem:[%s233 + $0x24] sm:$0xff] %v5262
        %5519 = vst [vmem:[%s233 + $0x2c] sm:$0xff] %v5263
        %5520 = vst [vmem:[%s233 + $0x34] sm:$0xf] %v5264
        %5521 = vst [vmem:[%s233 + $0x38] sm:$0xff] %v5265
        %5522 = vst [vmem:[%s233 + $0x40] sm:$0xff] %v5266
        %5523 = vst [vmem:[%s233 + $0x48] sm:$0xff] %v5267
        %5524 = vst [vmem:[%s233 + $0x50] sm:$0xf] %v5268
        %5525 = vst [vmem:[%s233 + $0x54] sm:$0xff] %v5269
        %5526 = vst [vmem:[%s233 + $0x5c] sm:$0xff] %v5270
        %5527 = vst [vmem:[%s233 + $0x64] sm:$0xff] %v5271
        %5528 = vst [vmem:[%s233 + $0x6c] sm:$0xf] %v5272
        %5529 = vst [vmem:[%s233 + $0x70] sm:$0xff] %v5273
        %5530 = vst [vmem:[%s233 + $0x78] sm:$0xff] %v5274
        %5531 = vst [vmem:[%s233 + $0x80] sm:$0xff] %v5275
        %5532 = vst [vmem:[%s233 + $0x88] sm:$0xf] %v5276
        %5533 = vst [vmem:[%s233 + $0x8c] sm:$0xff] %v5277
        %5534 = vst [vmem:[%s233 + $0x94] sm:$0xff] %v5278
        %5535 = vst [vmem:[%s233 + $0x9c] sm:$0xff] %v5279
        %5536 = vst [vmem:[%s233 + $0xa4] sm:$0xf] %v5280
        %5537 = vst [vmem:[%s233 + $0xa8] sm:$0xff] %v5281
        %5538 = vst [vmem:[%s233 + $0xb0] sm:$0xff] %v5282
        %5539 = vst [vmem:[%s233 + $0xb8] sm:$0xff] %v5283
        %5540 = vst [vmem:[%s233 + $0xc0] sm:$0xf] %v5284
        %5541 = vst [vmem:[%s233 + $0xc4] sm:$0xff] %v5285
        %5542 = vst [vmem:[%s233 + $0xcc] sm:$0xff] %v5286
        %5543 = vst [vmem:[%s233 + $0xd4] sm:$0xff] %v5287
        %5544 = vst [vmem:[%s233 + $0xdc] sm:$0xf] %v5288
        %5545 = vst [vmem:[%s233 + $0xe0] sm:$0xff] %v5289
        %5546 = vst [vmem:[%s233 + $0xe8] sm:$0xff] %v5290
        %5547 = vst [vmem:[%s233 + $0xf0] sm:$0xff] %v5291
        %5548 = vst [vmem:[%s233 + $0xf8] sm:$0xf] %v5292
        %5549 = vst [vmem:[%s233 + $0xfc] sm:$0xff] %v5293
        %5550 = vst [vmem:[%s233 + $0x104] sm:$0xff] %v5294
        %5551 = vst [vmem:[%s233 + $0x10c] sm:$0xff] %v5295
        %5552 = vst [vmem:[%s233 + $0x114] sm:$0xf] %v5296
        %5553 = vst [vmem:[%s233 + $0x118] sm:$0xff] %v5297
        %5554 = vst [vmem:[%s233 + $0x120] sm:$0xff] %v5298
        %5555 = vst [vmem:[%s233 + $0x128] sm:$0xff] %v5299
        %5556 = vst [vmem:[%s233 + $0x130] sm:$0xf] %v5300
        %5557 = vst [vmem:[%s233 + $0x134] sm:$0xff] %v5301
        %5558 = vst [vmem:[%s233 + $0x13c] sm:$0xff] %v5302
        %5559 = vst [vmem:[%s233 + $0x144] sm:$0xff] %v5303
        %5560 = vst [vmem:[%s233 + $0x14c] sm:$0xf] %v5304
        %5561 = vst [vmem:[%s233 + $0x150] sm:$0xff] %v5305
        %5562 = vst [vmem:[%s233 + $0x158] sm:$0xff] %v5306
        %5563 = vst [vmem:[%s233 + $0x160] sm:$0xff] %v5307
        %5564 = vst [vmem:[%s233 + $0x168] sm:$0xf] %v5308
        %5565 = vst [vmem:[%s233 + $0x16c] sm:$0xff] %v5309
        %5566 = vst [vmem:[%s233 + $0x174] sm:$0xff] %v5310
        %5567 = vst [vmem:[%s233 + $0x17c] sm:$0xff] %v5311
        %5568 = vst [vmem:[%s233 + $0x184] sm:$0xf] %v5312
        %5569 = vst [vmem:[%s233 + $0x188] sm:$0xff] %v5313
        %5570 = vst [vmem:[%s233 + $0x190] sm:$0xff] %v5314
        %5571 = vst [vmem:[%s233 + $0x198] sm:$0xff] %v5315
        %5572 = vst [vmem:[%s233 + $0x1a0] sm:$0xf] %v5316
        %5573 = vst [vmem:[%s233 + $0x1a4] sm:$0xff] %v5317
        %5574 = vst [vmem:[%s233 + $0x1ac] sm:$0xff] %v5318
        %5575 = vst [vmem:[%s233 + $0x1b4] sm:$0xff] %v5319
        %5576 = vst [vmem:[%s233 + $0x1bc] sm:$0xf] %v5320
        %5577 = vst [vmem:[%s233 + $0x1c0] sm:$0xff] %v5321
        %5578 = vst [vmem:[%s233 + $0x1c8] sm:$0xff] %v5322
        %5579 = vst [vmem:[%s233 + $0x1d0] sm:$0xff] %v5323
        %5580 = vst [vmem:[%s233 + $0x1d8] sm:$0xf] %v5324
        %5581 = vst [vmem:[%s233 + $0x1dc] sm:$0xff] %v5325
        %5582 = vst [vmem:[%s233 + $0x1e4] sm:$0xff] %v5326
        %5583 = vst [vmem:[%s233 + $0x1ec] sm:$0xff] %v5327
        %5584 = vst [vmem:[%s233 + $0x1f4] sm:$0xf] %v5328
        %5585 = vst [vmem:[%s233 + $0x1f8] sm:$0xff] %v5329
        %5586 = vst [vmem:[%s233 + $0x200] sm:$0xff] %v5330
        %5587 = vst [vmem:[%s233 + $0x208] sm:$0xff] %v5331
        %5588 = vst [vmem:[%s233 + $0x210] sm:$0xf] %v5332
        %5589 = vst [vmem:[%s233 + $0x214] sm:$0xff] %v5333
        %5590 = vst [vmem:[%s233 + $0x21c] sm:$0xff] %v5334
        %5591 = vst [vmem:[%s233 + $0x224] sm:$0xff] %v5335
        %5592 = vst [vmem:[%s233 + $0x22c] sm:$0xf] %v5336
        %5593 = vst [vmem:[%s233 + $0x230] sm:$0xff] %v5337
        %5594 = vst [vmem:[%s233 + $0x238] sm:$0xff] %v5338
        %5595 = vst [vmem:[%s233 + $0x240] sm:$0xff] %v5339
        %5596 = vst [vmem:[%s233 + $0x248] sm:$0xf] %v5340
        %5597 = vst [vmem:[%s233 + $0x24c] sm:$0xff] %v5341
        %5598 = vst [vmem:[%s233 + $0x254] sm:$0xff] %v5342
        %5599 = vst [vmem:[%s233 + $0x25c] sm:$0xff] %v5343
        %5600 = vst [vmem:[%s233 + $0x264] sm:$0xf] %v5344
        %5601 = vst [vmem:[%s233 + $0x268] sm:$0xff] %v5345
        %5602 = vst [vmem:[%s233 + $0x270] sm:$0xff] %v5346
        %5603 = vst [vmem:[%s233 + $0x278] sm:$0xff] %v5347
        %5604 = vst [vmem:[%s233 + $0x280] sm:$0xf] %v5348
        %5605 = vst [vmem:[%s233 + $0x284] sm:$0xff] %v5349
        %5606 = vst [vmem:[%s233 + $0x28c] sm:$0xff] %v5350
        %5607 = vst [vmem:[%s233 + $0x294] sm:$0xff] %v5351
        %5608 = vst [vmem:[%s233 + $0x29c] sm:$0xf] %v5352
        %5609 = vst [vmem:[%s233 + $0x2a0] sm:$0xff] %v5353
        %5610 = vst [vmem:[%s233 + $0x2a8] sm:$0xff] %v5354
        %5611 = vst [vmem:[%s233 + $0x2b0] sm:$0xff] %v5355
        %5612 = vst [vmem:[%s233 + $0x2b8] sm:$0xf] %v5356
        %5613 = vst [vmem:[%s233 + $0x2bc] sm:$0xff] %v5357
        %5614 = vst [vmem:[%s233 + $0x2c4] sm:$0xff] %v5358
        %5615 = vst [vmem:[%s233 + $0x2cc] sm:$0xff] %v5359
        %5616 = vst [vmem:[%s233 + $0x2d4] sm:$0xf] %v5360
        %5617 = vst [vmem:[%s233 + $0x2d8] sm:$0xff] %v5361
        %5618 = vst [vmem:[%s233 + $0x2e0] sm:$0xff] %v5362
        %5619 = vst [vmem:[%s233 + $0x2e8] sm:$0xff] %v5363
        %5620 = vst [vmem:[%s233 + $0x2f0] sm:$0xf] %v5364
        %5621 = vst [vmem:[%s233 + $0x2f4] sm:$0xff] %v5365
        %5622 = vst [vmem:[%s233 + $0x2fc] sm:$0xff] %v5366
        %5623 = vst [vmem:[%s233 + $0x304] sm:$0xff] %v5367
        %5624 = vst [vmem:[%s233 + $0x30c] sm:$0xf] %v5368
        %5625 = vst [vmem:[%s233 + $0x310] sm:$0xff] %v5369
        %5626 = vst [vmem:[%s233 + $0x318] sm:$0xff] %v5370
        %5627 = vst [vmem:[%s233 + $0x320] sm:$0xff] %v5371
        %5628 = vst [vmem:[%s233 + $0x328] sm:$0xf] %v5372
        %5629 = vst [vmem:[%s233 + $0x32c] sm:$0xff] %v5373
        %5630 = vst [vmem:[%s233 + $0x334] sm:$0xff] %v5374
        %5631 = vst [vmem:[%s233 + $0x33c] sm:$0xff] %v5375
        %5632 = vst [vmem:[%s233 + $0x344] sm:$0xf] %v5376
        %5633 = vst [vmem:[%s233 + $0x348] sm:$0xff] %v5377
        %5634 = vst [vmem:[%s233 + $0x350] sm:$0xff] %v5378
        %5635 = vst [vmem:[%s233 + $0x358] sm:$0xff] %v5379
        %5636 = vst [vmem:[%s233 + $0x360] sm:$0xf] %v5380
        %5637 = vst [vmem:[%s233 + $0x364] sm:$0xff] %v5381
        %5638 = vst [vmem:[%s233 + $0x36c] sm:$0xff] %v5382
        %5639 = vst [vmem:[%s233 + $0x374] sm:$0xff] %v5383
        %5640 = vst [vmem:[%s233 + $0x37c] sm:$0xf] %v5384
        %s5641 = sand.u32 %s138, 1
        %s5642 = scalar_lea.sflag [#allocation4], %s5641
        %s5643 = sand.u32 %s138, 1
        %s5644 = smul.addr %s5643, 896
        %s5645 = scalar_lea.vmem [#allocation5], %s5644
        // Predicated region
        $region45: #{tpu_custom_call.1} parent=39 // pred_check
          %p5646 = pneg %p148
        $region46: #{tpu_custom_call.1} parent=39 // pred_check_branch
          %5648 = sbr.rel (%p5646) target = $region48
        $region47: #{tpu_custom_call.1} parent=39 // pred_region
          %s5649 = smul.u32 32, %s20
          %s5651 = ssub.s32 14336, 14336
          %5652 = vsyncadd %s5642, %s5651
          %s5653 = smul.addr %s5649, 7
          %s5654 = smul.addr %s5653, 64
          %s5655 = scalar_lea.hbm %s5, %s5654
          %s5656 = sshll.u32 %s5645, 4
          %s5657 = int_to_ptr.vmem [resolvable:$true] %s5656
          %5662 = dma.vmem_to_hbm [thread:$0]  %s5657, 14336, %s5655, %s5642, 448, 448, 28
        $region48: #{tpu_custom_call.1} parent=39 // pred_fallthru
          _
      $region40: #{tpu_custom_call.1} parent=5 // pred_fallthru
        _
      %p5663 = scmp.le.s32.totalorder 2, %s15
      // Predicated region
      $region49: #{tpu_custom_call.1} parent=5 // pred_check
        %p5664 = pneg %p5663
      $region50: #{tpu_custom_call.1} parent=5 // pred_check_branch
        %5666 = sbr.rel (%p5664) target = $region52
      $region51: #{tpu_custom_call.1} parent=5 // pred_region
        %s5667 = ssub.s32 %s15, 2
        // Predicated region
        $region53: #{tpu_custom_call.1} parent=51 // pred_check
          %p5668 = pneg %p154
        $region54: #{tpu_custom_call.1} parent=51 // pred_check_branch
          %5670 = sbr.rel (%p5668) target = $region56
        $region55: #{tpu_custom_call.1} parent=51 // pred_region
          %s5671 = sand.u32 %s139, 1
          %s5672 = scalar_lea.sflag [#allocation4], %s5671
          %s5673 = sand.u32 %s139, 1
          %s5674 = smul.addr %s5673, 896
          %s5675 = scalar_lea.vmem [#allocation5], %s5674
          %5676 = dma.done %s5672, 14336
        $region56: #{tpu_custom_call.1} parent=51 // pred_fallthru
          _
      $region52: #{tpu_custom_call.1} parent=5 // pred_fallthru
        _
    $region6: #{tpu_custom_call.1} parent=1 // loop_footer
      %s19 = sadd.s32 1, %s15
    $region7: #{tpu_custom_call.1} parent=1 // loop_footer_branch
      %14 = sbr.rel target = $region3
    $region8: #{tpu_custom_call.1} parent=1 // loop_exit
      _
    %5677 = vsyncpa [#allocation3], 1
    %s5678 = scalar_lea.sflag [#allocation3], 1
    %5679 = vsyncpa %s5678, 1
    %5680 = vsyncpa [#allocation4], 1
    %s5681 = scalar_lea.sflag [#allocation4], 1
    %5682 = vsyncpa %s5681, 1

</llo_original>
